<compile_context>
chip_gen: v6e
topology: v6e:2x2x1
jax: 0.10.0
libtpu: 0.0.40
codegen_flags: <defaults>
</compile_context>

<pallas_src>
import jax
import jax.numpy as jnp
from jax import lax
from jax.experimental import pallas as pl
from jax.experimental.pallas import tpu as pltpu


# ----------------------------------------------------------------------------
# Pallas kernel: whole bottleneck block for `Nb` batch elements per grid step.
#   conv1(1x1) -> bn1 -> relu -> conv2(3x3, pad=1) -> bn2 -> relu
#   -> conv3(1x1) -> bn3 -> (+ identity residual) -> relu
# ----------------------------------------------------------------------------
def bottleneck_kernel(x_ref, w1_ref, s1_ref, b1_ref,
                      w2_ref, s2_ref, b2_ref,
                      w3_ref, s3_ref, b3_ref, out_ref):
    Nb, H, W, Cin = x_ref.shape
    Pp = w1_ref.shape[1]           # padded planes
    Ce = w3_ref.shape[1]           # padded planes*4 (== Cin, identity residual)
    HW = H * W
    R = Nb * HW                    # matmul row dimension (batch folded in)
    f32 = jnp.float32
    bf16 = jnp.bfloat16

    # ---- conv1: 1x1 conv == matmul over channels, then bn1 + relu ----------
    xb = x_ref[...].reshape(R, Cin).astype(bf16)
    h1 = jnp.dot(xb, w1_ref[...], preferred_element_type=f32)
    h1 = jnp.maximum(h1 * s1_ref[...] + b1_ref[...], 0.0)        # (R, Pp) f32

    # ---- conv2: 3x3, stride 1, padding 1 -----------------------------------
    # dx taps via sublane roll + edge masks, concatenated along channels;
    # each of the 3 dy taps is then a single (R, 3Pp) x (3Pp, Pp) MXU matmul.
    row = lax.broadcasted_iota(jnp.int32, (R, 1), 0)
    col_x = row % W                # x position inside an image row
    row_y = row % HW               # flattened (y, x) position inside one image

    left = jnp.where(col_x == 0, 0.0,
                     pltpu.roll(h1, 1, axis=0))                  # h1[y, x-1]
    right = jnp.where(col_x == W - 1, 0.0,
                      pltpu.roll(h1, R - 1, axis=0))             # h1[y, x+1]
    e = jnp.concatenate([left, h1, right], axis=1)               # (R, 3*Pp)

    # dy = 0 (center rows)
    acc = jnp.dot(e.astype(bf16), w2_ref[1], preferred_element_type=f32)
    # dy = -1 (rows from above; mask y == 0, which also masks image boundaries)
    up = jnp.where(row_y < W, 0.0, pltpu.roll(e, W, axis=0))
    acc = acc + jnp.dot(up.astype(bf16), w2_ref[0], preferred_element_type=f32)
    # dy = +1 (rows from below; mask y == H-1)
    down = jnp.where(row_y >= (H - 1) * W, 0.0, pltpu.roll(e, R - W, axis=0))
    acc = acc + jnp.dot(down.astype(bf16), w2_ref[2], preferred_element_type=f32)

    h2 = jnp.maximum(acc * s2_ref[...] + b2_ref[...], 0.0)       # (R, Pp) f32

    # ---- conv3: 1x1 conv + bn3 ---------------------------------------------
    h3 = jnp.dot(h2.astype(bf16), w3_ref[...], preferred_element_type=f32)
    h3 = h3 * s3_ref[...] + b3_ref[...]                          # (R, Ce) f32

    # ---- identity residual + relu (re-read x late: short live range) -------
    xr = x_ref[...].reshape(R, Ce)
    out_ref[...] = jnp.maximum(h3 + xr, 0.0).reshape(Nb, H, W, Ce)


# ----------------------------------------------------------------------------
# Wrapper: NCHW in / NCHW out.  Takes PyTorch-layout (OIHW) conv weights and
# folded BatchNorm scale/bias; re-layouts, pads channels to lane width, and
# casts matmul weights to bf16.
# ----------------------------------------------------------------------------
def _round_up(x, m):
    return (x + m - 1) // m * m


def bottleneck_forward(x_nchw, w1_oihw, s1, b1, w2_oihw, s2, b2,
                       w3_oihw, s3, b3, *, images_per_step=1):
    N, Cin, H, W = x_nchw.shape
    P = w1_oihw.shape[0]
    Cexp = w3_oihw.shape[0]
    assert Cexp == Cin == 4 * P, "identity residual requires inplanes == planes*4"
    assert N % images_per_step == 0

    Cp = _round_up(Cin, 128)       # padded inplanes (== padded planes*4)
    Pp = _round_up(P, 128)         # padded planes
    bf16 = jnp.bfloat16

    # input: NCHW -> NHWC, pad channels (padded channels carry zeros end-to-end)
    x = jnp.transpose(x_nchw, (0, 2, 3, 1))
    x = jnp.pad(x, ((0, 0), (0, 0), (0, 0), (0, Cp - Cin)))

    # conv1 weight: (O,I,1,1) -> (I, O), padded, bf16
    w1 = jnp.transpose(w1_oihw[:, :, 0, 0], (1, 0))
    w1 = jnp.pad(w1, ((0, Cp - Cin), (0, Pp - P))).astype(bf16)

    # conv2 weight: (O,I,3,3) -> (kh, kw, I, O) -> per-dy (3*Pp, Pp), bf16
    w2 = jnp.transpose(w2_oihw, (2, 3, 1, 0))
    w2 = jnp.pad(w2, ((0, 0), (0, 0), (0, Pp - P), (0, Pp - P)))
    w2 = w2.reshape(3, 3 * Pp, Pp).astype(bf16)

    # conv3 weight: (O,I,1,1) -> (I, O), padded, bf16
    w3 = jnp.transpose(w3_oihw[:, :, 0, 0], (1, 0))
    w3 = jnp.pad(w3, ((0, Pp - P), (0, Cp - Cexp))).astype(bf16)

    def pad_vec(v, c):
        v = v.reshape(1, -1).astype(jnp.float32)
        return jnp.pad(v, ((0, 0), (0, c - v.shape[-1])))

    s1p, b1p = pad_vec(s1, Pp), pad_vec(b1, Pp)
    s2p, b2p = pad_vec(s2, Pp), pad_vec(b2, Pp)
    s3p, b3p = pad_vec(s3, Cp), pad_vec(b3, Cp)

    Nb = images_per_step
    full = lambda a: pl.BlockSpec(a.shape, lambda n, nd=a.ndim: (0,) * nd)

    out = pl.pallas_call(
        bottleneck_kernel,
        out_shape=jax.ShapeDtypeStruct((N, H, W, Cp), jnp.float32),
        grid_spec=pltpu.PrefetchScalarGridSpec(
            num_scalar_prefetch=0,
            grid=(N // Nb,),
            in_specs=[
                pl.BlockSpec((Nb, H, W, Cp), lambda n: (n, 0, 0, 0)),   # x
                full(w1), full(s1p), full(b1p),
                full(w2), full(s2p), full(b2p),
                full(w3), full(s3p), full(b3p),
            ],
            out_specs=pl.BlockSpec((Nb, H, W, Cp), lambda n: (n, 0, 0, 0)),
        ),
        compiler_params=pltpu.CompilerParams(
            dimension_semantics=("parallel",),
            vmem_limit_bytes=64 * 1024 * 1024),
    )(x, w1, s1p, b1p, w2, s2p, b2p, w3, s3p, b3p)

    out = out[..., :Cexp]                      # drop channel padding
    return jnp.transpose(out, (0, 3, 1, 2))    # -> NCHW


# ----------------------------------------------------------------------------
# Pure-JAX (lax.conv, f32) reference for correctness checking.
# ----------------------------------------------------------------------------
def bottleneck_reference(x, w1_oihw, s1, b1, w2_oihw, s2, b2, w3_oihw, s3, b3):
    dn = ("NCHW", "OIHW", "NCHW")

    def bn(t, s, b):
        return t * s.reshape(1, -1, 1, 1) + b.reshape(1, -1, 1, 1)

    out = lax.conv_general_dilated(x, w1_oihw, (1, 1), "VALID",
                                   dimension_numbers=dn)
    out = jnp.maximum(bn(out, s1, b1), 0.0)
    out = lax.conv_general_dilated(out, w2_oihw, (1, 1), ((1, 1), (1, 1)),
                                   dimension_numbers=dn)
    out = jnp.maximum(bn(out, s2, b2), 0.0)
    out = lax.conv_general_dilated(out, w3_oihw, (1, 1), "VALID",
                                   dimension_numbers=dn)
    out = bn(out, s3, b3)
    return jnp.maximum(out + x, 0.0)


if __name__ == "__main__":
    # Small shapes: inplanes = planes * 4 so the identity residual applies
    # (stride=1, dilation=1, downsample=None).
    N, inplanes, planes, H, W = 2, 16, 4, 16, 16
    expansion = 4
    Cexp = planes * expansion                     # == inplanes

    key = jax.random.PRNGKey(0)
    ks = jax.random.split(key, 5)

    x = jax.random.normal(ks[0], (N, inplanes, H, W), jnp.float32)

    # Conv weights in PyTorch OIHW layout, scaled small.
    w1_oihw = 0.1 * jax.random.normal(ks[1], (planes, inplanes, 1, 1), jnp.float32)
    w2_oihw = 0.1 * jax.random.normal(ks[2], (planes, planes, 3, 3), jnp.float32)
    w3_oihw = 0.1 * jax.random.normal(ks[3], (Cexp, planes, 1, 1), jnp.float32)

    # Inference-mode BatchNorm params folded to per-channel scale / bias.
    eps = 1e-5

    def bn_fold(kg, kb, km, kv, c):
        gamma = 1.0 + 0.1 * jax.random.normal(kg, (c,), jnp.float32)
        beta = 0.1 * jax.random.normal(kb, (c,), jnp.float32)
        mean = 0.1 * jax.random.normal(km, (c,), jnp.float32)
        var = jnp.abs(1.0 + 0.1 * jax.random.normal(kv, (c,), jnp.float32))
        scale = gamma / jnp.sqrt(var + eps)
        bias = beta - mean * scale
        return scale, bias

    kbn = jax.random.split(ks[4], 12)
    s1, b1 = bn_fold(kbn[0], kbn[1], kbn[2], kbn[3], planes)
    s2, b2 = bn_fold(kbn[4], kbn[5], kbn[6], kbn[7], planes)
    s3, b3 = bn_fold(kbn[8], kbn[9], kbn[10], kbn[11], Cexp)

    out = bottleneck_forward(x, w1_oihw, s1, b1, w2_oihw, s2, b2,
                             w3_oihw, s3, b3, images_per_step=1)
    out = jax.block_until_ready(out)

    ref = bottleneck_reference(x, w1_oihw, s1, b1, w2_oihw, s2, b2,
                               w3_oihw, s3, b3)
    ref = jax.block_until_ready(ref)

    assert out.shape == (N, Cexp, H, W)
    # bf16 matmul path vs f32 reference -> loosened tolerance.
    max_err = float(jnp.max(jnp.abs(out - ref)))
    assert jnp.allclose(out, ref, atol=3e-2, rtol=3e-2), max_err

    print("KERNEL_OK")
</pallas_src>

<mosaic_0001>
module attributes {stable_mosaic.version = 11 : i64} {
  func.func @bottleneck_kernel(%arg0: i32, %arg1: memref<1x16x16x128xf32, #tpu.memory_space<vmem>>, %arg2: memref<128x128xbf16, #tpu.memory_space<vmem>>, %arg3: memref<1x128xf32, #tpu.memory_space<vmem>>, %arg4: memref<1x128xf32, #tpu.memory_space<vmem>>, %arg5: memref<3x384x128xbf16, #tpu.memory_space<vmem>>, %arg6: memref<1x128xf32, #tpu.memory_space<vmem>>, %arg7: memref<1x128xf32, #tpu.memory_space<vmem>>, %arg8: memref<128x128xbf16, #tpu.memory_space<vmem>>, %arg9: memref<1x128xf32, #tpu.memory_space<vmem>>, %arg10: memref<1x128xf32, #tpu.memory_space<vmem>>, %arg11: memref<1x16x16x128xf32, #tpu.memory_space<vmem>>) attributes {dimension_semantics = [#tpu.dimension_semantics<parallel>], iteration_bounds = array<i64: 2>, scalar_prefetch = 0 : i64, scratch_operands = 0 : i64, tpu.core_type = #tpu.core_type<tc>, window_params = [{transform_indices = @transform_0, window_bounds = array<i64: 1, 16, 16, 128>}, {pipeline_mode = #tpu.pipeline_mode<synchronous>, transform_indices = @transform_1, window_bounds = array<i64: 128, 128>}, {pipeline_mode = #tpu.pipeline_mode<synchronous>, transform_indices = @transform_2, window_bounds = array<i64: 1, 128>}, {pipeline_mode = #tpu.pipeline_mode<synchronous>, transform_indices = @transform_3, window_bounds = array<i64: 1, 128>}, {pipeline_mode = #tpu.pipeline_mode<synchronous>, transform_indices = @transform_4, window_bounds = array<i64: 3, 384, 128>}, {pipeline_mode = #tpu.pipeline_mode<synchronous>, transform_indices = @transform_5, window_bounds = array<i64: 1, 128>}, {pipeline_mode = #tpu.pipeline_mode<synchronous>, transform_indices = @transform_6, window_bounds = array<i64: 1, 128>}, {pipeline_mode = #tpu.pipeline_mode<synchronous>, transform_indices = @transform_7, window_bounds = array<i64: 128, 128>}, {pipeline_mode = #tpu.pipeline_mode<synchronous>, transform_indices = @transform_8, window_bounds = array<i64: 1, 128>}, {pipeline_mode = #tpu.pipeline_mode<synchronous>, transform_indices = @transform_9, window_bounds = array<i64: 1, 128>}, {transform_indices = @transform_10, window_bounds = array<i64: 1, 16, 16, 128>}]} {
    %c0 = arith.constant 0 : index
    %c0_0 = arith.constant 0 : index
    %c0_1 = arith.constant 0 : index
    %c0_2 = arith.constant 0 : index
    %0 = vector.load %arg1[%c0, %c0_0, %c0_1, %c0_2] : memref<1x16x16x128xf32, #tpu.memory_space<vmem>>, vector<1x16x16x128xf32>
    %1 = vector.shape_cast %0 : vector<1x16x16x128xf32> to vector<256x128xf32>
    %2 = arith.truncf %1 : vector<256x128xf32> to vector<256x128xbf16>
    %c0_3 = arith.constant 0 : index
    %c0_4 = arith.constant 0 : index
    %3 = vector.load %arg2[%c0_3, %c0_4] : memref<128x128xbf16, #tpu.memory_space<vmem>>, vector<128x128xbf16>
    %cst = arith.constant dense<0.000000e+00> : vector<256x128xf32>
    %4 = tpu.matmul %2, %3, %cst {dimension_numbers = #tpu.dot_dimension_numbers<[1], [0], [0], [1], [0, 0, 1, 1], [], []>} : vector<256x128xbf16>, vector<128x128xbf16>, vector<256x128xf32> -> vector<256x128xf32>
    %c0_5 = arith.constant 0 : index
    %c0_6 = arith.constant 0 : index
    %5 = vector.load %arg3[%c0_5, %c0_6] : memref<1x128xf32, #tpu.memory_space<vmem>>, vector<1x128xf32>
    %6 = vector.broadcast %5 : vector<1x128xf32> to vector<256x128xf32>
    %7 = arith.mulf %4, %6 : vector<256x128xf32>
    %c0_7 = arith.constant 0 : index
    %c0_8 = arith.constant 0 : index
    %8 = vector.load %arg4[%c0_7, %c0_8] : memref<1x128xf32, #tpu.memory_space<vmem>>, vector<1x128xf32>
    %9 = vector.broadcast %8 : vector<1x128xf32> to vector<256x128xf32>
    %10 = arith.addf %7, %9 : vector<256x128xf32>
    %cst_9 = arith.constant 0.000000e+00 : f32
    %11 = vector.broadcast %cst_9 : f32 to vector<256x128xf32>
    %12 = arith.maximumf %10, %11 : vector<256x128xf32>
    %13 = tpu.iota {dimensions = array<i32: 0>} : vector<256x1xi32>
    %c16_i32 = arith.constant 16 : i32
    %c0_i32 = arith.constant 0 : i32
    %14 = arith.cmpi eq, %c16_i32, %c0_i32 : i32
    %c1_i32 = arith.constant 1 : i32
    %15 = arith.select %14, %c1_i32, %c16_i32 : i32
    %16 = vector.broadcast %15 : i32 to vector<256x1xi32>
    %17 = arith.remsi %13, %16 : vector<256x1xi32>
    %c0_i32_10 = arith.constant 0 : i32
    %18 = vector.broadcast %c0_i32_10 : i32 to vector<256x1xi32>
    %19 = arith.cmpi ne, %17, %18 : vector<256x1xi32>
    %c0_i32_11 = arith.constant 0 : i32
    %20 = vector.broadcast %c0_i32_11 : i32 to vector<256x1xi32>
    %21 = arith.cmpi slt, %17, %20 : vector<256x1xi32>
    %c0_i32_12 = arith.constant 0 : i32
    %22 = arith.cmpi slt, %15, %c0_i32_12 : i32
    %23 = vector.broadcast %22 : i1 to vector<256x1xi1>
    %24 = vector.broadcast %23 : vector<256x1xi1> to vector<256x1xi1>
    %25 = arith.xori %21, %24 : vector<256x1xi1>
    %26 = arith.andi %25, %19 : vector<256x1xi1>
    %27 = vector.broadcast %15 : i32 to vector<256x1xi32>
    %28 = arith.addi %17, %27 : vector<256x1xi32>
    %29 = arith.select %26, %28, %17 : vector<256x1xi1>, vector<256x1xi32>
    %c256_i32 = arith.constant 256 : i32
    %c0_i32_13 = arith.constant 0 : i32
    %30 = arith.cmpi eq, %c256_i32, %c0_i32_13 : i32
    %c1_i32_14 = arith.constant 1 : i32
    %31 = arith.select %30, %c1_i32_14, %c256_i32 : i32
    %32 = vector.broadcast %31 : i32 to vector<256x1xi32>
    %33 = arith.remsi %13, %32 : vector<256x1xi32>
    %c0_i32_15 = arith.constant 0 : i32
    %34 = vector.broadcast %c0_i32_15 : i32 to vector<256x1xi32>
    %35 = arith.cmpi ne, %33, %34 : vector<256x1xi32>
    %c0_i32_16 = arith.constant 0 : i32
    %36 = vector.broadcast %c0_i32_16 : i32 to vector<256x1xi32>
    %37 = arith.cmpi slt, %33, %36 : vector<256x1xi32>
    %c0_i32_17 = arith.constant 0 : i32
    %38 = arith.cmpi slt, %31, %c0_i32_17 : i32
    %39 = vector.broadcast %38 : i1 to vector<256x1xi1>
    %40 = vector.broadcast %39 : vector<256x1xi1> to vector<256x1xi1>
    %41 = arith.xori %37, %40 : vector<256x1xi1>
    %42 = arith.andi %41, %35 : vector<256x1xi1>
    %43 = vector.broadcast %31 : i32 to vector<256x1xi32>
    %44 = arith.addi %33, %43 : vector<256x1xi32>
    %45 = arith.select %42, %44, %33 : vector<256x1xi1>, vector<256x1xi32>
    %c0_i32_18 = arith.constant 0 : i32
    %46 = vector.broadcast %c0_i32_18 : i32 to vector<256x1xi32>
    %47 = arith.cmpi eq, %29, %46 : vector<256x1xi32>
    %c1_i32_19 = arith.constant 1 : i32
    %48 = tpu.dynamic_rotate %12 by %c1_i32_19 dim 0 : vector<256x128xf32>, i32 -> vector<256x128xf32>
    %cst_20 = arith.constant 0.000000e+00 : f32
    %49 = vector.shape_cast %47 : vector<256x1xi1> to vector<256x1xi1>
    %50 = vector.broadcast %49 : vector<256x1xi1> to vector<256x128xi1>
    %51 = vector.broadcast %cst_20 : f32 to vector<256x128xf32>
    %52 = arith.select %50, %51, %48 : vector<256x128xi1>, vector<256x128xf32>
    %c15_i32 = arith.constant 15 : i32
    %53 = vector.broadcast %c15_i32 : i32 to vector<256x1xi32>
    %54 = arith.cmpi eq, %29, %53 : vector<256x1xi32>
    %c255_i32 = arith.constant 255 : i32
    %55 = tpu.dynamic_rotate %12 by %c255_i32 dim 0 : vector<256x128xf32>, i32 -> vector<256x128xf32>
    %cst_21 = arith.constant 0.000000e+00 : f32
    %56 = vector.shape_cast %54 : vector<256x1xi1> to vector<256x1xi1>
    %57 = vector.broadcast %56 : vector<256x1xi1> to vector<256x128xi1>
    %58 = vector.broadcast %cst_21 : f32 to vector<256x128xf32>
    %59 = arith.select %57, %58, %55 : vector<256x128xi1>, vector<256x128xf32>
    %60 = tpu.concatenate %52, %12, %59 in 1 : vector<256x128xf32>, vector<256x128xf32>, vector<256x128xf32> -> vector<256x384xf32>
    %61 = arith.truncf %60 : vector<256x384xf32> to vector<256x384xbf16>
    %c1 = arith.constant 1 : index
    %c0_22 = arith.constant 0 : index
    %c0_23 = arith.constant 0 : index
    %62 = vector.load %arg5[%c1, %c0_22, %c0_23] : memref<3x384x128xbf16, #tpu.memory_space<vmem>>, vector<1x384x128xbf16>
    %63 = vector.shape_cast %62 : vector<1x384x128xbf16> to vector<384x128xbf16>
    %cst_24 = arith.constant dense<0.000000e+00> : vector<256x128xf32>
    %64 = tpu.matmul %61, %63, %cst_24 {dimension_numbers = #tpu.dot_dimension_numbers<[1], [0], [0], [1], [0, 0, 1, 1], [], []>} : vector<256x384xbf16>, vector<384x128xbf16>, vector<256x128xf32> -> vector<256x128xf32>
    %c16_i32_25 = arith.constant 16 : i32
    %65 = vector.broadcast %c16_i32_25 : i32 to vector<256x1xi32>
    %66 = arith.cmpi slt, %45, %65 : vector<256x1xi32>
    %c16_i32_26 = arith.constant 16 : i32
    %67 = tpu.dynamic_rotate %60 by %c16_i32_26 dim 0 : vector<256x384xf32>, i32 -> vector<256x384xf32>
    %cst_27 = arith.constant 0.000000e+00 : f32
    %68 = vector.shape_cast %66 : vector<256x1xi1> to vector<256x1xi1>
    %69 = vector.broadcast %68 : vector<256x1xi1> to vector<256x384xi1>
    %70 = vector.broadcast %cst_27 : f32 to vector<256x384xf32>
    %71 = arith.select %69, %70, %67 : vector<256x384xi1>, vector<256x384xf32>
    %72 = arith.truncf %71 : vector<256x384xf32> to vector<256x384xbf16>
    %c0_28 = arith.constant 0 : index
    %c0_29 = arith.constant 0 : index
    %c0_30 = arith.constant 0 : index
    %73 = vector.load %arg5[%c0_28, %c0_29, %c0_30] : memref<3x384x128xbf16, #tpu.memory_space<vmem>>, vector<1x384x128xbf16>
    %74 = vector.shape_cast %73 : vector<1x384x128xbf16> to vector<384x128xbf16>
    %cst_31 = arith.constant dense<0.000000e+00> : vector<256x128xf32>
    %75 = tpu.matmul %72, %74, %cst_31 {dimension_numbers = #tpu.dot_dimension_numbers<[1], [0], [0], [1], [0, 0, 1, 1], [], []>} : vector<256x384xbf16>, vector<384x128xbf16>, vector<256x128xf32> -> vector<256x128xf32>
    %76 = arith.addf %64, %75 : vector<256x128xf32>
    %c240_i32 = arith.constant 240 : i32
    %77 = vector.broadcast %c240_i32 : i32 to vector<256x1xi32>
    %78 = arith.cmpi sge, %45, %77 : vector<256x1xi32>
    %c240_i32_32 = arith.constant 240 : i32
    %79 = tpu.dynamic_rotate %60 by %c240_i32_32 dim 0 : vector<256x384xf32>, i32 -> vector<256x384xf32>
    %cst_33 = arith.constant 0.000000e+00 : f32
    %80 = vector.shape_cast %78 : vector<256x1xi1> to vector<256x1xi1>
    %81 = vector.broadcast %80 : vector<256x1xi1> to vector<256x384xi1>
    %82 = vector.broadcast %cst_33 : f32 to vector<256x384xf32>
    %83 = arith.select %81, %82, %79 : vector<256x384xi1>, vector<256x384xf32>
    %84 = arith.truncf %83 : vector<256x384xf32> to vector<256x384xbf16>
    %c2 = arith.constant 2 : index
    %c0_34 = arith.constant 0 : index
    %c0_35 = arith.constant 0 : index
    %85 = vector.load %arg5[%c2, %c0_34, %c0_35] : memref<3x384x128xbf16, #tpu.memory_space<vmem>>, vector<1x384x128xbf16>
    %86 = vector.shape_cast %85 : vector<1x384x128xbf16> to vector<384x128xbf16>
    %cst_36 = arith.constant dense<0.000000e+00> : vector<256x128xf32>
    %87 = tpu.matmul %84, %86, %cst_36 {dimension_numbers = #tpu.dot_dimension_numbers<[1], [0], [0], [1], [0, 0, 1, 1], [], []>} : vector<256x384xbf16>, vector<384x128xbf16>, vector<256x128xf32> -> vector<256x128xf32>
    %88 = arith.addf %76, %87 : vector<256x128xf32>
    %c0_37 = arith.constant 0 : index
    %c0_38 = arith.constant 0 : index
    %89 = vector.load %arg6[%c0_37, %c0_38] : memref<1x128xf32, #tpu.memory_space<vmem>>, vector<1x128xf32>
    %90 = vector.broadcast %89 : vector<1x128xf32> to vector<256x128xf32>
    %91 = arith.mulf %88, %90 : vector<256x128xf32>
    %c0_39 = arith.constant 0 : index
    %c0_40 = arith.constant 0 : index
    %92 = vector.load %arg7[%c0_39, %c0_40] : memref<1x128xf32, #tpu.memory_space<vmem>>, vector<1x128xf32>
    %93 = vector.broadcast %92 : vector<1x128xf32> to vector<256x128xf32>
    %94 = arith.addf %91, %93 : vector<256x128xf32>
    %cst_41 = arith.constant 0.000000e+00 : f32
    %95 = vector.broadcast %cst_41 : f32 to vector<256x128xf32>
    %96 = arith.maximumf %94, %95 : vector<256x128xf32>
    %97 = arith.truncf %96 : vector<256x128xf32> to vector<256x128xbf16>
    %c0_42 = arith.constant 0 : index
    %c0_43 = arith.constant 0 : index
    %98 = vector.load %arg8[%c0_42, %c0_43] : memref<128x128xbf16, #tpu.memory_space<vmem>>, vector<128x128xbf16>
    %cst_44 = arith.constant dense<0.000000e+00> : vector<256x128xf32>
    %99 = tpu.matmul %97, %98, %cst_44 {dimension_numbers = #tpu.dot_dimension_numbers<[1], [0], [0], [1], [0, 0, 1, 1], [], []>} : vector<256x128xbf16>, vector<128x128xbf16>, vector<256x128xf32> -> vector<256x128xf32>
    %c0_45 = arith.constant 0 : index
    %c0_46 = arith.constant 0 : index
    %100 = vector.load %arg9[%c0_45, %c0_46] : memref<1x128xf32, #tpu.memory_space<vmem>>, vector<1x128xf32>
    %101 = vector.broadcast %100 : vector<1x128xf32> to vector<256x128xf32>
    %102 = arith.mulf %99, %101 : vector<256x128xf32>
    %c0_47 = arith.constant 0 : index
    %c0_48 = arith.constant 0 : index
    %103 = vector.load %arg10[%c0_47, %c0_48] : memref<1x128xf32, #tpu.memory_space<vmem>>, vector<1x128xf32>
    %104 = vector.broadcast %103 : vector<1x128xf32> to vector<256x128xf32>
    %105 = arith.addf %102, %104 : vector<256x128xf32>
    %c0_49 = arith.constant 0 : index
    %c0_50 = arith.constant 0 : index
    %c0_51 = arith.constant 0 : index
    %c0_52 = arith.constant 0 : index
    %106 = vector.load %arg1[%c0_49, %c0_50, %c0_51, %c0_52] : memref<1x16x16x128xf32, #tpu.memory_space<vmem>>, vector<1x16x16x128xf32>
    %107 = vector.shape_cast %106 : vector<1x16x16x128xf32> to vector<256x128xf32>
    %108 = arith.addf %105, %107 : vector<256x128xf32>
    %cst_53 = arith.constant 0.000000e+00 : f32
    %109 = vector.broadcast %cst_53 : f32 to vector<256x128xf32>
    %110 = arith.maximumf %108, %109 : vector<256x128xf32>
    %111 = vector.shape_cast %110 : vector<256x128xf32> to vector<1x16x16x128xf32>
    %c0_54 = arith.constant 0 : index
    %c0_55 = arith.constant 0 : index
    %c0_56 = arith.constant 0 : index
    %c0_57 = arith.constant 0 : index
    %112 = vector.load %arg11[%c0_54, %c0_55, %c0_56, %c0_57] : memref<1x16x16x128xf32, #tpu.memory_space<vmem>>, vector<1x16x16x128xf32>
    tpu.vector_store %arg11[%c0_54, %c0_55, %c0_56, %c0_57], %111 {strides = array<i32>} : memref<1x16x16x128xf32, #tpu.memory_space<vmem>>, vector<1x16x16x128xf32>,
    return
  }
  func.func @transform_0(%arg0: i32) -> (i32, i32, i32, i32) {
    %c0_i32 = arith.constant 0 : i32
    %c0_i32_0 = arith.constant 0 : i32
    %c0_i32_1 = arith.constant 0 : i32
    %c0_i32_2 = arith.constant 0 : i32
    return %arg0, %c0_i32, %c0_i32_0, %c0_i32_1 : i32, i32, i32, i32
  }
  func.func @transform_1(%arg0: i32) -> (i32, i32) {
    %c0_i32 = arith.constant 0 : i32
    %c0_i32_0 = arith.constant 0 : i32
    %c0_i32_1 = arith.constant 0 : i32
    return %c0_i32, %c0_i32_0 : i32, i32
  }
  func.func @transform_2(%arg0: i32) -> (i32, i32) {
    %c0_i32 = arith.constant 0 : i32
    %c0_i32_0 = arith.constant 0 : i32
    %c0_i32_1 = arith.constant 0 : i32
    return %c0_i32, %c0_i32_0 : i32, i32
  }
  func.func @transform_3(%arg0: i32) -> (i32, i32) {
    %c0_i32 = arith.constant 0 : i32
    %c0_i32_0 = arith.constant 0 : i32
    %c0_i32_1 = arith.constant 0 : i32
    return %c0_i32, %c0_i32_0 : i32, i32
  }
  func.func @transform_4(%arg0: i32) -> (i32, i32, i32) {
    %c0_i32 = arith.constant 0 : i32
    %c0_i32_0 = arith.constant 0 : i32
    %c0_i32_1 = arith.constant 0 : i32
    %c0_i32_2 = arith.constant 0 : i32
    return %c0_i32, %c0_i32_0, %c0_i32_1 : i32, i32, i32
  }
  func.func @transform_5(%arg0: i32) -> (i32, i32) {
    %c0_i32 = arith.constant 0 : i32
    %c0_i32_0 = arith.constant 0 : i32
    %c0_i32_1 = arith.constant 0 : i32
    return %c0_i32, %c0_i32_0 : i32, i32
  }
  func.func @transform_6(%arg0: i32) -> (i32, i32) {
    %c0_i32 = arith.constant 0 : i32
    %c0_i32_0 = arith.constant 0 : i32
    %c0_i32_1 = arith.constant 0 : i32
    return %c0_i32, %c0_i32_0 : i32, i32
  }
  func.func @transform_7(%arg0: i32) -> (i32, i32) {
    %c0_i32 = arith.constant 0 : i32
    %c0_i32_0 = arith.constant 0 : i32
    %c0_i32_1 = arith.constant 0 : i32
    return %c0_i32, %c0_i32_0 : i32, i32
  }
  func.func @transform_8(%arg0: i32) -> (i32, i32) {
    %c0_i32 = arith.constant 0 : i32
    %c0_i32_0 = arith.constant 0 : i32
    %c0_i32_1 = arith.constant 0 : i32
    return %c0_i32, %c0_i32_0 : i32, i32
  }
  func.func @transform_9(%arg0: i32) -> (i32, i32) {
    %c0_i32 = arith.constant 0 : i32
    %c0_i32_0 = arith.constant 0 : i32
    %c0_i32_1 = arith.constant 0 : i32
    return %c0_i32, %c0_i32_0 : i32, i32
  }
  func.func @transform_10(%arg0: i32) -> (i32, i32, i32, i32) {
    %c0_i32 = arith.constant 0 : i32
    %c0_i32_0 = arith.constant 0 : i32
    %c0_i32_1 = arith.constant 0 : i32
    %c0_i32_2 = arith.constant 0 : i32
    return %arg0, %c0_i32, %c0_i32_0, %c0_i32_1 : i32, i32, i32, i32
  }
}

</mosaic_0001>

<llo_original>
// kernel: tpu_custom_call.1
$region0: #{tpu_custom_call.1}
  #allocation0 [shape = 'u32[]', space=smem, size = 0x4, offset = 0x4, fixed_abs, tag = 'smem constant byte address 0x4 - core index']
  #allocation1 [shape = 'u32[144,128]{1,0:T(1,128)}', space=vmem, size = 0x12000, scoped, tag = 'internal scratch']
  %s0 = inlined_call_operand.hbm [shape: f32[2,16,16,128], index: 0, kind: input, shape index: {}]
  %s1 = inlined_call_operand.hbm [shape: bf16[128,128], index: 1, kind: input, shape index: {}]
  %s2 = inlined_call_operand.vmem [shape: f32[1,128], index: 2, kind: input, shape index: {}]
  %s3 = inlined_call_operand.vmem [shape: f32[1,128], index: 3, kind: input, shape index: {}]
  %s4 = inlined_call_operand.hbm [shape: bf16[3,384,128], index: 4, kind: input, shape index: {}]
  %s5 = inlined_call_operand.vmem [shape: f32[1,128], index: 5, kind: input, shape index: {}]
  %s6 = inlined_call_operand.vmem [shape: f32[1,128], index: 6, kind: input, shape index: {}]
  %s7 = inlined_call_operand.hbm [shape: bf16[128,128], index: 7, kind: input, shape index: {}]
  %s8 = inlined_call_operand.vmem [shape: f32[1,128], index: 8, kind: input, shape index: {}]
  %s9 = inlined_call_operand.vmem [shape: f32[1,128], index: 9, kind: input, shape index: {}]
  %s10 = inlined_call_operand.hbm [shape: f32[2,16,16,128], index: 10, kind: output, shape index: {}]
  %s11 = sld [smem:[#allocation0]]
  $region89: #{tpu_custom_call.1} parent=0
    _
  %s13 = ssub.s32 1, %s11
  %s14 = scalar_select 0, %s13, %s11
  $region1: #{tpu_custom_call.1} parent=0
    #allocation2 [shape = 'u8[262144]{0}', space=vmem, size = 0x40000, scoped, tag = 'input window, operand 0']
    #allocation3 [shape = 's32[2]{0}', space=sflag, size = 0x8, scoped, tag = 'scoped memory for tpu_custom_call.1']
    #allocation4 [shape = 's32[2]{0}', space=sflag, size = 0x8, scoped, tag = 'scoped memory for tpu_custom_call.1']
    #allocation5 [shape = 'u8[32768]{0}', space=vmem, size = 0x8000, scoped, tag = 'input window, operand 1, single buffered']
    #allocation6 [shape = 's32[1]{0}', space=sflag, size = 0x4, scoped, tag = 'scoped memory for tpu_custom_call.1']
    #allocation7 [shape = 'u8[294912]{0}', space=vmem, size = 0x48000, scoped, tag = 'input window, operand 4, single buffered']
    #allocation8 [shape = 'u8[32768]{0}', space=vmem, size = 0x8000, scoped, tag = 'input window, operand 7, single buffered']
    #allocation9 [shape = 's32[1]{0}', space=sflag, size = 0x4, scoped, tag = 'scoped memory for tpu_custom_call.1']
    #allocation10 [shape = 'u8[262144]{0}', space=vmem, size = 0x40000, scoped, tag = 'output window, operand 0']
    %15 = vsyncpa [#allocation3], 0
    %s16 = scalar_lea.sflag [#allocation3], 1
    %17 = vsyncpa %s16, 0
    %18 = vsyncpa [#allocation6], 0
    %19 = vsyncpa [#allocation9], 0
    %20 = vsyncpa [#allocation4], 0
    %s21 = scalar_lea.sflag [#allocation4], 1
    %22 = vsyncpa %s21, 0
    loop: start=0, step=1, limit=4
    $region2: #{tpu_custom_call.1} parent=1 // loop_pre_header
      _
    $region3: #{tpu_custom_call.1} parent=1 // loop_header
      %s24 = sphi 0, %s28
      %p25 = scmp.ge.s32.totalorder %s24, 4
      %s34 = sphi 0, %s36
      %s37 = sphi 0, %s34
      %s38 = sphi 0, %s37
      %s54 = sphi 0, %s38
      %s58 = sphi 0, %s58
      %s60 = sphi 0, %s58
      %s61 = sphi 0, %s60
      %s75 = sphi 0, %s61
      %s79 = sphi 0, %s79
      %s81 = sphi 0, %s79
      %s82 = sphi 0, %s81
      %s96 = sphi 0, %s82
      %s100 = sphi 0, %s100
      %s102 = sphi 0, %s100
      %s103 = sphi 0, %s102
      %s117 = sphi 0, %s103
      %s121 = sphi 0, %s121
      %s123 = sphi 0, %s121
      %s124 = sphi 0, %s123
      %s138 = sphi 0, %s124
      %s142 = sphi 0, %s142
      %s144 = sphi 0, %s142
      %s145 = sphi 0, %s144
      %s159 = sphi 0, %s145
      %s163 = sphi 0, %s163
      %s165 = sphi 0, %s163
      %s166 = sphi 0, %s165
      %s180 = sphi 0, %s166
      %s184 = sphi 0, %s184
      %s186 = sphi 0, %s184
      %s187 = sphi 0, %s186
      %s201 = sphi 0, %s187
      %s205 = sphi 0, %s205
      %s207 = sphi 0, %s205
      %s208 = sphi 0, %s207
      %s222 = sphi 0, %s208
      %s226 = sphi 0, %s226
      %s228 = sphi 0, %s226
      %s229 = sphi 0, %s228
      %s243 = sphi 0, %s229
      %s249 = sphi 0, %s251
      %s252 = sphi 0, %s249
      %s253 = sphi 0, %s252
      %s269 = sphi 0, %s253
    $region4: #{tpu_custom_call.1} parent=1 // loop_header_branch
      %27 = sbr.rel (%p25) target = $region8
    $region5: #{tpu_custom_call.1} parent=1 // loop_body
      %s29 = ssub.s32 %s24, 1
      %s30 = ssub.s32 %s24, 2
      %s31 = sadd.s32 %s24, 1
      %s32 = ssub.s32 %s24, %s31
      %p33 = scmp.eq.s32.totalorder %s32, 0
      %s35 = sadd.s32 %s34, 1
      %s36 = scalar_select %p33, %s34, %s35
      %p39 = pneg %p33
      %p40 = scmp.eq.s32.totalorder %s24, 1
      %p41 = por %p39, %p40
      %p42 = scmp.ne.s32.totalorder %s34, %s37
      %p43 = scmp.eq.s32.totalorder %s24, 0
      %p44 = por %p42, %p43
      %p45 = scmp.ne.s32.totalorder %s34, %s37
      %p46 = scmp.eq.s32.totalorder %s29, 1
      %p47 = por %p45, %p46
      %p48 = scmp.ne.s32.totalorder %s37, %s38
      %p49 = scmp.eq.s32.totalorder %s29, 0
      %p50 = por %p48, %p49
      %p51 = scmp.ne.s32.totalorder %s37, %s38
      %p52 = scmp.eq.s32.totalorder %s30, 1
      %p53 = por %p51, %p52
      %p55 = scmp.ne.s32.totalorder %s38, %s54
      %p56 = scmp.eq.s32.totalorder %s30, 0
      %p57 = por %p55, %p56
      %s59 = sadd.s32 %s58, 1
      %p62 = scmp.eq.s32.totalorder %s24, 1
      %p63 = scmp.ne.s32.totalorder %s58, %s60
      %p64 = scmp.eq.s32.totalorder %s24, 0
      %p65 = por %p63, %p64
      %p66 = scmp.ne.s32.totalorder %s58, %s60
      %p67 = scmp.eq.s32.totalorder %s29, 1
      %p68 = por %p66, %p67
      %p69 = scmp.ne.s32.totalorder %s60, %s61
      %p70 = scmp.eq.s32.totalorder %s29, 0
      %p71 = por %p69, %p70
      %p72 = scmp.ne.s32.totalorder %s60, %s61
      %p73 = scmp.eq.s32.totalorder %s30, 1
      %p74 = por %p72, %p73
      %p76 = scmp.ne.s32.totalorder %s61, %s75
      %p77 = scmp.eq.s32.totalorder %s30, 0
      %p78 = por %p76, %p77
      %s80 = sadd.s32 %s79, 1
      %p83 = scmp.eq.s32.totalorder %s24, 1
      %p84 = scmp.ne.s32.totalorder %s79, %s81
      %p85 = scmp.eq.s32.totalorder %s24, 0
      %p86 = por %p84, %p85
      %p87 = scmp.ne.s32.totalorder %s79, %s81
      %p88 = scmp.eq.s32.totalorder %s29, 1
      %p89 = por %p87, %p88
      %p90 = scmp.ne.s32.totalorder %s81, %s82
      %p91 = scmp.eq.s32.totalorder %s29, 0
      %p92 = por %p90, %p91
      %p93 = scmp.ne.s32.totalorder %s81, %s82
      %p94 = scmp.eq.s32.totalorder %s30, 1
      %p95 = por %p93, %p94
      %p97 = scmp.ne.s32.totalorder %s82, %s96
      %p98 = scmp.eq.s32.totalorder %s30, 0
      %p99 = por %p97, %p98
      %s101 = sadd.s32 %s100, 1
      %p104 = scmp.eq.s32.totalorder %s24, 1
      %p105 = scmp.ne.s32.totalorder %s100, %s102
      %p106 = scmp.eq.s32.totalorder %s24, 0
      %p107 = por %p105, %p106
      %p108 = scmp.ne.s32.totalorder %s100, %s102
      %p109 = scmp.eq.s32.totalorder %s29, 1
      %p110 = por %p108, %p109
      %p111 = scmp.ne.s32.totalorder %s102, %s103
      %p112 = scmp.eq.s32.totalorder %s29, 0
      %p113 = por %p111, %p112
      %p114 = scmp.ne.s32.totalorder %s102, %s103
      %p115 = scmp.eq.s32.totalorder %s30, 1
      %p116 = por %p114, %p115
      %p118 = scmp.ne.s32.totalorder %s103, %s117
      %p119 = scmp.eq.s32.totalorder %s30, 0
      %p120 = por %p118, %p119
      %s122 = sadd.s32 %s121, 1
      %p125 = scmp.eq.s32.totalorder %s24, 1
      %p126 = scmp.ne.s32.totalorder %s121, %s123
      %p127 = scmp.eq.s32.totalorder %s24, 0
      %p128 = por %p126, %p127
      %p129 = scmp.ne.s32.totalorder %s121, %s123
      %p130 = scmp.eq.s32.totalorder %s29, 1
      %p131 = por %p129, %p130
      %p132 = scmp.ne.s32.totalorder %s123, %s124
      %p133 = scmp.eq.s32.totalorder %s29, 0
      %p134 = por %p132, %p133
      %p135 = scmp.ne.s32.totalorder %s123, %s124
      %p136 = scmp.eq.s32.totalorder %s30, 1
      %p137 = por %p135, %p136
      %p139 = scmp.ne.s32.totalorder %s124, %s138
      %p140 = scmp.eq.s32.totalorder %s30, 0
      %p141 = por %p139, %p140
      %s143 = sadd.s32 %s142, 1
      %p146 = scmp.eq.s32.totalorder %s24, 1
      %p147 = scmp.ne.s32.totalorder %s142, %s144
      %p148 = scmp.eq.s32.totalorder %s24, 0
      %p149 = por %p147, %p148
      %p150 = scmp.ne.s32.totalorder %s142, %s144
      %p151 = scmp.eq.s32.totalorder %s29, 1
      %p152 = por %p150, %p151
      %p153 = scmp.ne.s32.totalorder %s144, %s145
      %p154 = scmp.eq.s32.totalorder %s29, 0
      %p155 = por %p153, %p154
      %p156 = scmp.ne.s32.totalorder %s144, %s145
      %p157 = scmp.eq.s32.totalorder %s30, 1
      %p158 = por %p156, %p157
      %p160 = scmp.ne.s32.totalorder %s145, %s159
      %p161 = scmp.eq.s32.totalorder %s30, 0
      %p162 = por %p160, %p161
      %s164 = sadd.s32 %s163, 1
      %p167 = scmp.eq.s32.totalorder %s24, 1
      %p168 = scmp.ne.s32.totalorder %s163, %s165
      %p169 = scmp.eq.s32.totalorder %s24, 0
      %p170 = por %p168, %p169
      %p171 = scmp.ne.s32.totalorder %s163, %s165
      %p172 = scmp.eq.s32.totalorder %s29, 1
      %p173 = por %p171, %p172
      %p174 = scmp.ne.s32.totalorder %s165, %s166
      %p175 = scmp.eq.s32.totalorder %s29, 0
      %p176 = por %p174, %p175
      %p177 = scmp.ne.s32.totalorder %s165, %s166
      %p178 = scmp.eq.s32.totalorder %s30, 1
      %p179 = por %p177, %p178
      %p181 = scmp.ne.s32.totalorder %s166, %s180
      %p182 = scmp.eq.s32.totalorder %s30, 0
      %p183 = por %p181, %p182
      %s185 = sadd.s32 %s184, 1
      %p188 = scmp.eq.s32.totalorder %s24, 1
      %p189 = scmp.ne.s32.totalorder %s184, %s186
      %p190 = scmp.eq.s32.totalorder %s24, 0
      %p191 = por %p189, %p190
      %p192 = scmp.ne.s32.totalorder %s184, %s186
      %p193 = scmp.eq.s32.totalorder %s29, 1
      %p194 = por %p192, %p193
      %p195 = scmp.ne.s32.totalorder %s186, %s187
      %p196 = scmp.eq.s32.totalorder %s29, 0
      %p197 = por %p195, %p196
      %p198 = scmp.ne.s32.totalorder %s186, %s187
      %p199 = scmp.eq.s32.totalorder %s30, 1
      %p200 = por %p198, %p199
      %p202 = scmp.ne.s32.totalorder %s187, %s201
      %p203 = scmp.eq.s32.totalorder %s30, 0
      %p204 = por %p202, %p203
      %s206 = sadd.s32 %s205, 1
      %p209 = scmp.eq.s32.totalorder %s24, 1
      %p210 = scmp.ne.s32.totalorder %s205, %s207
      %p211 = scmp.eq.s32.totalorder %s24, 0
      %p212 = por %p210, %p211
      %p213 = scmp.ne.s32.totalorder %s205, %s207
      %p214 = scmp.eq.s32.totalorder %s29, 1
      %p215 = por %p213, %p214
      %p216 = scmp.ne.s32.totalorder %s207, %s208
      %p217 = scmp.eq.s32.totalorder %s29, 0
      %p218 = por %p216, %p217
      %p219 = scmp.ne.s32.totalorder %s207, %s208
      %p220 = scmp.eq.s32.totalorder %s30, 1
      %p221 = por %p219, %p220
      %p223 = scmp.ne.s32.totalorder %s208, %s222
      %p224 = scmp.eq.s32.totalorder %s30, 0
      %p225 = por %p223, %p224
      %s227 = sadd.s32 %s226, 1
      %p230 = scmp.eq.s32.totalorder %s24, 1
      %p231 = scmp.ne.s32.totalorder %s226, %s228
      %p232 = scmp.eq.s32.totalorder %s24, 0
      %p233 = por %p231, %p232
      %p234 = scmp.ne.s32.totalorder %s226, %s228
      %p235 = scmp.eq.s32.totalorder %s29, 1
      %p236 = por %p234, %p235
      %p237 = scmp.ne.s32.totalorder %s228, %s229
      %p238 = scmp.eq.s32.totalorder %s29, 0
      %p239 = por %p237, %p238
      %p240 = scmp.ne.s32.totalorder %s228, %s229
      %p241 = scmp.eq.s32.totalorder %s30, 1
      %p242 = por %p240, %p241
      %p244 = scmp.ne.s32.totalorder %s229, %s243
      %p245 = scmp.eq.s32.totalorder %s30, 0
      %p246 = por %p244, %p245
      %s247 = ssub.s32 %s24, %s31
      %p248 = scmp.eq.s32.totalorder %s247, 0
      %s250 = sadd.s32 %s249, 1
      %s251 = scalar_select %p248, %s249, %s250
      %p254 = pneg %p248
      %p255 = scmp.eq.s32.totalorder %s24, 1
      %p256 = por %p254, %p255
      %p257 = scmp.ne.s32.totalorder %s249, %s252
      %p258 = scmp.eq.s32.totalorder %s24, 0
      %p259 = por %p257, %p258
      %p260 = scmp.ne.s32.totalorder %s249, %s252
      %p261 = scmp.eq.s32.totalorder %s29, 1
      %p262 = por %p260, %p261
      %p263 = scmp.ne.s32.totalorder %s252, %s253
      %p264 = scmp.eq.s32.totalorder %s29, 0
      %p265 = por %p263, %p264
      %p266 = scmp.ne.s32.totalorder %s252, %s253
      %p267 = scmp.eq.s32.totalorder %s30, 1
      %p268 = por %p266, %p267
      %p270 = scmp.ne.s32.totalorder %s253, %s269
      %p271 = scmp.eq.s32.totalorder %s30, 0
      %p272 = por %p270, %p271
      %p273 = scmp.le.s32.totalorder 1, %s24
      %p274 = scmp.lt.s32.totalorder %s24, 3
      %p275 = pnand %p273, %p274
      %p276 = pneg %p275
      // Predicated region
      $region9: #{tpu_custom_call.1} parent=5 // pred_check
        _
      $region10: #{tpu_custom_call.1} parent=5 // pred_check_branch
        %278 = sbr.rel (%p275) target = $region12
      $region11: #{tpu_custom_call.1} parent=5 // pred_region
        %s279 = ssub.s32 %s24, 1
        // Predicated region
        $region13: #{tpu_custom_call.1} parent=11 // pred_check
          %p280 = pneg %p71
        $region14: #{tpu_custom_call.1} parent=11 // pred_check_branch
          %282 = sbr.rel (%p280) target = $region16
        $region15: #{tpu_custom_call.1} parent=11 // pred_region
          %s284 = ssub.s32 1024, 1024
          %285 = vsyncadd [#allocation6], %s284
          %s286 = sshll.u32 [#allocation5], 4
          %s287 = int_to_ptr.vmem [resolvable:$true] %s286
          %292 = dma.hbm_to_vmem [thread:$0]  %s1, 1024, %s287, [#allocation6], 64, 64, 4
        $region16: #{tpu_custom_call.1} parent=11 // pred_fallthru
          _
        // Predicated region
        $region17: #{tpu_custom_call.1} parent=11 // pred_check
          %p293 = pneg %p92
        $region18: #{tpu_custom_call.1} parent=11 // pred_check_branch
          %295 = sbr.rel (%p293) target = $region20
        $region19: #{tpu_custom_call.1} parent=11 // pred_region
          _
        $region20: #{tpu_custom_call.1} parent=11 // pred_fallthru
          _
        // Predicated region
        $region21: #{tpu_custom_call.1} parent=11 // pred_check
          %p296 = pneg %p113
        $region22: #{tpu_custom_call.1} parent=11 // pred_check_branch
          %298 = sbr.rel (%p296) target = $region24
        $region23: #{tpu_custom_call.1} parent=11 // pred_region
          _
        $region24: #{tpu_custom_call.1} parent=11 // pred_fallthru
          _
        // Predicated region
        $region25: #{tpu_custom_call.1} parent=11 // pred_check
          %p299 = pneg %p134
        $region26: #{tpu_custom_call.1} parent=11 // pred_check_branch
          %301 = sbr.rel (%p299) target = $region28
        $region27: #{tpu_custom_call.1} parent=11 // pred_region
          %s303 = ssub.s32 9216, 9216
          %304 = vsyncadd [#allocation6], %s303
          %s305 = sshll.u32 [#allocation7], 4
          %s306 = int_to_ptr.vmem [resolvable:$true] %s305
          %311 = dma.hbm_to_vmem [thread:$0]  %s4, 9216, %s306, [#allocation6], 64, 64, 4
        $region28: #{tpu_custom_call.1} parent=11 // pred_fallthru
          _
        // Predicated region
        $region29: #{tpu_custom_call.1} parent=11 // pred_check
          %p312 = pneg %p155
        $region30: #{tpu_custom_call.1} parent=11 // pred_check_branch
          %314 = sbr.rel (%p312) target = $region32
        $region31: #{tpu_custom_call.1} parent=11 // pred_region
          _
        $region32: #{tpu_custom_call.1} parent=11 // pred_fallthru
          _
        // Predicated region
        $region33: #{tpu_custom_call.1} parent=11 // pred_check
          %p315 = pneg %p176
        $region34: #{tpu_custom_call.1} parent=11 // pred_check_branch
          %317 = sbr.rel (%p315) target = $region36
        $region35: #{tpu_custom_call.1} parent=11 // pred_region
          _
        $region36: #{tpu_custom_call.1} parent=11 // pred_fallthru
          _
        // Predicated region
        $region37: #{tpu_custom_call.1} parent=11 // pred_check
          %p318 = pneg %p197
        $region38: #{tpu_custom_call.1} parent=11 // pred_check_branch
          %320 = sbr.rel (%p318) target = $region40
        $region39: #{tpu_custom_call.1} parent=11 // pred_region
          %s322 = ssub.s32 1024, 1024
          %323 = vsyncadd [#allocation9], %s322
          %s324 = sshll.u32 [#allocation8], 4
          %s325 = int_to_ptr.vmem [resolvable:$true] %s324
          %330 = dma.hbm_to_vmem [thread:$0]  %s7, 1024, %s325, [#allocation9], 64, 64, 4
        $region40: #{tpu_custom_call.1} parent=11 // pred_fallthru
          _
        // Predicated region
        $region41: #{tpu_custom_call.1} parent=11 // pred_check
          %p331 = pneg %p218
        $region42: #{tpu_custom_call.1} parent=11 // pred_check_branch
          %333 = sbr.rel (%p331) target = $region44
        $region43: #{tpu_custom_call.1} parent=11 // pred_region
          _
        $region44: #{tpu_custom_call.1} parent=11 // pred_fallthru
          _
        // Predicated region
        $region45: #{tpu_custom_call.1} parent=11 // pred_check
          %p334 = pneg %p239
        $region46: #{tpu_custom_call.1} parent=11 // pred_check_branch
          %336 = sbr.rel (%p334) target = $region48
        $region47: #{tpu_custom_call.1} parent=11 // pred_region
          _
        $region48: #{tpu_custom_call.1} parent=11 // pred_fallthru
          _
      $region12: #{tpu_custom_call.1} parent=5 // pred_fallthru
        _
      %p337 = scmp.lt.s32.totalorder %s24, 2
      // Predicated region
      $region49: #{tpu_custom_call.1} parent=5 // pred_check
        %p338 = pneg %p337
      $region50: #{tpu_custom_call.1} parent=5 // pred_check_branch
        %340 = sbr.rel (%p338) target = $region52
      $region51: #{tpu_custom_call.1} parent=5 // pred_region
        // Predicated region
        $region53: #{tpu_custom_call.1} parent=51 // pred_check
          %p341 = pneg %p44
        $region54: #{tpu_custom_call.1} parent=51 // pred_check_branch
          %343 = sbr.rel (%p341) target = $region56
        $region55: #{tpu_custom_call.1} parent=51 // pred_region
          %s344 = sand.u32 %s34, 1
          %s345 = scalar_lea.sflag [#allocation3], %s344
          %s346 = sand.u32 %s34, 1
          %s347 = smul.addr %s346, 256
          %s348 = scalar_lea.vmem [#allocation2], %s347
          %s350 = ssub.s32 4096, 4096
          %351 = vsyncadd %s345, %s350
          %s352 = smul.addr %s24, 32
          %s353 = smul.addr %s352, 128
          %s354 = scalar_lea.hbm %s0, %s353
          %s355 = sshll.u32 %s348, 4
          %s356 = int_to_ptr.vmem [resolvable:$true] %s355
          %361 = dma.hbm_to_vmem [thread:$0]  %s354, 4096, %s356, %s345, 128, 128, 8
        $region56: #{tpu_custom_call.1} parent=51 // pred_fallthru
          _
      $region52: #{tpu_custom_call.1} parent=5 // pred_fallthru
        _
      %p362 = scmp.le.s32.totalorder 1, %s24
      %p363 = scmp.lt.s32.totalorder %s24, 3
      %p364 = pnand %p362, %p363
      %p365 = pneg %p364
      // Predicated region
      $region57: #{tpu_custom_call.1} parent=5 // pred_check
        _
      $region58: #{tpu_custom_call.1} parent=5 // pred_check_branch
        %367 = sbr.rel (%p364) target = $region60
      $region59: #{tpu_custom_call.1} parent=5 // pred_region
        %s368 = ssub.s32 %s24, 1
        %s369 = sand.u32 %s37, 1
        %s370 = scalar_lea.sflag [#allocation3], %s369
        %s371 = sand.u32 %s37, 1
        %s372 = smul.addr %s371, 256
        %s373 = scalar_lea.vmem [#allocation2], %s372
        // Predicated region
        $region61: #{tpu_custom_call.1} parent=59 // pred_check
          %p374 = pneg %p50
        $region62: #{tpu_custom_call.1} parent=59 // pred_check_branch
          %376 = sbr.rel (%p374) target = $region64
        $region63: #{tpu_custom_call.1} parent=59 // pred_region
          %377 = dma.done %s370, 4096
        $region64: #{tpu_custom_call.1} parent=59 // pred_fallthru
          _
        // Predicated region
        $region65: #{tpu_custom_call.1} parent=59 // pred_check
          %p378 = pneg %p71
        $region66: #{tpu_custom_call.1} parent=59 // pred_check_branch
          %380 = sbr.rel (%p378) target = $region68
        $region67: #{tpu_custom_call.1} parent=59 // pred_region
          %381 = dma.done [#allocation6], 1024
        $region68: #{tpu_custom_call.1} parent=59 // pred_fallthru
          _
        // Predicated region
        $region69: #{tpu_custom_call.1} parent=59 // pred_check
          %p382 = pneg %p134
        $region70: #{tpu_custom_call.1} parent=59 // pred_check_branch
          %384 = sbr.rel (%p382) target = $region72
        $region71: #{tpu_custom_call.1} parent=59 // pred_region
          %385 = dma.done [#allocation6], 9216
        $region72: #{tpu_custom_call.1} parent=59 // pred_fallthru
          _
        // Predicated region
        $region73: #{tpu_custom_call.1} parent=59 // pred_check
          %p386 = pneg %p197
        $region74: #{tpu_custom_call.1} parent=59 // pred_check_branch
          %388 = sbr.rel (%p386) target = $region76
        $region75: #{tpu_custom_call.1} parent=59 // pred_region
          %389 = dma.done [#allocation9], 1024
        $region76: #{tpu_custom_call.1} parent=59 // pred_fallthru
          _
        %s390 = sand.u32 %s37, 1
        %s391 = scalar_lea.sflag [#allocation3], %s390
        %s392 = sand.u32 %s37, 1
        %s393 = smul.addr %s392, 256
        %s394 = scalar_lea.vmem [#allocation2], %s393
        %p395 = pneg %p50
        %p396 = pneg %p47
        %p397 = pneg %p71
        %p398 = pneg %p68
        %p399 = pneg %p92
        %p400 = pneg %p89
        %p401 = pneg %p113
        %p402 = pneg %p110
        %p403 = pneg %p134
        %p404 = pneg %p131
        %p405 = pneg %p155
        %p406 = pneg %p152
        %p407 = pneg %p176
        %p408 = pneg %p173
        %p409 = pneg %p197
        %p410 = pneg %p194
        %p411 = pneg %p218
        %p412 = pneg %p215
        %p413 = pneg %p239
        %p414 = pneg %p236
        %p415 = pneg %p265
        %p416 = pneg %p262
        %s417 = sand.u32 %s252, 1
        %s418 = scalar_lea.sflag [#allocation4], %s417
        %s419 = sand.u32 %s252, 1
        %s420 = smul.addr %s419, 256
        %s421 = scalar_lea.vmem [#allocation10], %s420
        %v423 = vld [vmem:[%s373] sm:$0xff]
        %v424 = vld [vmem:[%s373 + $0x8] sm:$0xff]
        %v425 = vld [vmem:[%s373 + $0x10] sm:$0xff]
        %v426 = vld [vmem:[%s373 + $0x18] sm:$0xff]
        %v427 = vld [vmem:[%s373 + $0x20] sm:$0xff]
        %v428 = vld [vmem:[%s373 + $0x28] sm:$0xff]
        %v429 = vld [vmem:[%s373 + $0x30] sm:$0xff]
        %v430 = vld [vmem:[%s373 + $0x38] sm:$0xff]
        %v431 = vld [vmem:[%s373 + $0x40] sm:$0xff]
        %v432 = vld [vmem:[%s373 + $0x48] sm:$0xff]
        %v433 = vld [vmem:[%s373 + $0x50] sm:$0xff]
        %v434 = vld [vmem:[%s373 + $0x58] sm:$0xff]
        %v435 = vld [vmem:[%s373 + $0x60] sm:$0xff]
        %v436 = vld [vmem:[%s373 + $0x68] sm:$0xff]
        %v437 = vld [vmem:[%s373 + $0x70] sm:$0xff]
        %v438 = vld [vmem:[%s373 + $0x78] sm:$0xff]
        %v439 = vld [vmem:[%s373 + $0x80] sm:$0xff]
        %v440 = vld [vmem:[%s373 + $0x88] sm:$0xff]
        %v441 = vld [vmem:[%s373 + $0x90] sm:$0xff]
        %v442 = vld [vmem:[%s373 + $0x98] sm:$0xff]
        %v443 = vld [vmem:[%s373 + $0xa0] sm:$0xff]
        %v444 = vld [vmem:[%s373 + $0xa8] sm:$0xff]
        %v445 = vld [vmem:[%s373 + $0xb0] sm:$0xff]
        %v446 = vld [vmem:[%s373 + $0xb8] sm:$0xff]
        %v447 = vld [vmem:[%s373 + $0xc0] sm:$0xff]
        %v448 = vld [vmem:[%s373 + $0xc8] sm:$0xff]
        %v449 = vld [vmem:[%s373 + $0xd0] sm:$0xff]
        %v450 = vld [vmem:[%s373 + $0xd8] sm:$0xff]
        %v451 = vld [vmem:[%s373 + $0xe0] sm:$0xff]
        %v452 = vld [vmem:[%s373 + $0xe8] sm:$0xff]
        %v453 = vld [vmem:[%s373 + $0xf0] sm:$0xff]
        %v454 = vld [vmem:[%s373 + $0xf8] sm:$0xff]
        %v455 = vpack.c.bf16 %v424, %v423
        %v456 = vpack.c.bf16 %v426, %v425
        %v457 = vpack.c.bf16 %v428, %v427
        %v458 = vpack.c.bf16 %v430, %v429
        %v459 = vpack.c.bf16 %v432, %v431
        %v460 = vpack.c.bf16 %v434, %v433
        %v461 = vpack.c.bf16 %v436, %v435
        %v462 = vpack.c.bf16 %v438, %v437
        %v463 = vpack.c.bf16 %v440, %v439
        %v464 = vpack.c.bf16 %v442, %v441
        %v465 = vpack.c.bf16 %v444, %v443
        %v466 = vpack.c.bf16 %v446, %v445
        %v467 = vpack.c.bf16 %v448, %v447
        %v468 = vpack.c.bf16 %v450, %v449
        %v469 = vpack.c.bf16 %v452, %v451
        %v470 = vpack.c.bf16 %v454, %v453
        %v471 = vld [vmem:[#allocation5] sm:$0xf]
        %v472 = vld [vmem:[#allocation5 + $0x4] sm:$0xf]
        %v473 = vld [vmem:[#allocation5 + $0x8] sm:$0xf]
        %v474 = vld [vmem:[#allocation5 + $0xc] sm:$0xf]
        %v475 = vld [vmem:[#allocation5 + $0x10] sm:$0xf]
        %v476 = vld [vmem:[#allocation5 + $0x14] sm:$0xf]
        %v477 = vld [vmem:[#allocation5 + $0x18] sm:$0xf]
        %v478 = vld [vmem:[#allocation5 + $0x1c] sm:$0xf]
        %v479 = vld [vmem:[#allocation5 + $0x20] sm:$0xf]
        %v480 = vld [vmem:[#allocation5 + $0x24] sm:$0xf]
        %v481 = vld [vmem:[#allocation5 + $0x28] sm:$0xf]
        %v482 = vld [vmem:[#allocation5 + $0x2c] sm:$0xf]
        %v483 = vld [vmem:[#allocation5 + $0x30] sm:$0xf]
        %v484 = vld [vmem:[#allocation5 + $0x34] sm:$0xf]
        %v485 = vld [vmem:[#allocation5 + $0x38] sm:$0xf]
        %v486 = vld [vmem:[#allocation5 + $0x3c] sm:$0xf]
        %v503 = vunpack.c.l.b16 %v471
        %v504 = vunpack.c.l.b16 %v472
        %v505 = vunpack.c.l.b16 %v473
        %v506 = vunpack.c.l.b16 %v474
        %v507 = vunpack.c.l.b16 %v475
        %v508 = vunpack.c.l.b16 %v476
        %v509 = vunpack.c.l.b16 %v477
        %v510 = vunpack.c.l.b16 %v478
        %v511 = vunpack.c.l.b16 %v479
        %v512 = vunpack.c.l.b16 %v480
        %v513 = vunpack.c.l.b16 %v481
        %v514 = vunpack.c.l.b16 %v482
        %v515 = vunpack.c.l.b16 %v483
        %v516 = vunpack.c.l.b16 %v484
        %v517 = vunpack.c.l.b16 %v485
        %v518 = vunpack.c.l.b16 %v486
        %v519 = vpack.c.b16 %v504, %v503
        %v520 = vpack.c.b16 %v506, %v505
        %v521 = vpack.c.b16 %v508, %v507
        %v522 = vpack.c.b16 %v510, %v509
        %v523 = vpack.c.b16 %v512, %v511
        %v524 = vpack.c.b16 %v514, %v513
        %v525 = vpack.c.b16 %v516, %v515
        %v526 = vpack.c.b16 %v518, %v517
        %535 = vmatprep.subr.bf16.mxu0 0
        %536 = vmatpush1.bf16.msra.mxu0 %v526
        %537 = vmatprep.subr.bf16.mxu0 0
        %538 = vmatpush1.bf16.msra.mxu0 %v525
        %539 = vmatprep.subr.bf16.mxu0 0
        %540 = vmatpush1.bf16.msra.mxu0 %v524
        %541 = vmatprep.subr.bf16.mxu0 0
        %542 = vmatpush1.bf16.msra.mxu0 %v523
        %543 = vmatprep.subr.bf16.mxu0 0
        %544 = vmatpush1.bf16.msra.mxu0 %v522
        %545 = vmatprep.subr.bf16.mxu0 0
        %546 = vmatpush1.bf16.msra.mxu0 %v521
        %547 = vmatprep.subr.bf16.mxu0 0
        %548 = vmatpush1.bf16.msra.mxu0 %v520
        %549 = vmatprep.subr.bf16.mxu0 0
        %550 = vmatpush1.bf16.msra.mxu0 %v519
        %551 = vmatprep.subr.bf16.mxu0 0
        %552 = vmatpush2.bf16.msra.mxu0 0
        %553 = vmatprep.subr.bf16.mxu0 0
        %554 = vmatpush2.bf16.msra.mxu0 0
        %555 = vmatprep.subr.bf16.mxu0 0
        %556 = vmatpush2.bf16.msra.mxu0 0
        %557 = vmatprep.subr.bf16.mxu0 0
        %558 = vmatpush2.bf16.msra.mxu0 0
        %559 = vmatprep.subr.bf16.mxu0 0
        %560 = vmatpush2.bf16.msra.mxu0 0
        %561 = vmatprep.subr.bf16.mxu0 0
        %562 = vmatpush2.bf16.msra.mxu0 0
        %563 = vmatprep.subr.bf16.mxu0 0
        %564 = vmatpush2.bf16.msra.mxu0 0
        %565 = vmatprep.subr.bf16.mxu0 0
        %566 = vmatpush2.bf16.msra.mxu0 0
        %567 = vmatprep.mubr.bf16.mxu0 0
        %568 = vmatmul.mubr.bf16.gmra.mxu0 %v455
        %v569 = vpop.f32.mrf.mxu0
        %v570 = vadd.f32 0.0, %v569
        %v571 = vpop.f32.mrf.mxu0
        %v572 = vpop.f32.mrf.mxu0
        %v573 = vadd.f32 0.0, %v572
        %v574 = vpop.f32.mrf.mxu0
        %575 = vmatprep.mubr.bf16.mxu0 0
        %576 = vmatmul.mubr.bf16.gmra.mxu0 %v456
        %v577 = vpop.f32.mrf.mxu0
        %v578 = vadd.f32 0.0, %v577
        %v579 = vpop.f32.mrf.mxu0
        %v580 = vpop.f32.mrf.mxu0
        %v581 = vadd.f32 0.0, %v580
        %v582 = vpop.f32.mrf.mxu0
        %583 = vmatprep.mubr.bf16.mxu0 0
        %584 = vmatmul.mubr.bf16.gmra.mxu0 %v457
        %v585 = vpop.f32.mrf.mxu0
        %v586 = vadd.f32 0.0, %v585
        %v587 = vpop.f32.mrf.mxu0
        %v588 = vpop.f32.mrf.mxu0
        %v589 = vadd.f32 0.0, %v588
        %v590 = vpop.f32.mrf.mxu0
        %591 = vmatprep.mubr.bf16.mxu0 0
        %592 = vmatmul.mubr.bf16.gmra.mxu0 %v458
        %v593 = vpop.f32.mrf.mxu0
        %v594 = vadd.f32 0.0, %v593
        %v595 = vpop.f32.mrf.mxu0
        %v596 = vpop.f32.mrf.mxu0
        %v597 = vadd.f32 0.0, %v596
        %v598 = vpop.f32.mrf.mxu0
        %599 = vmatprep.mubr.bf16.mxu0 0
        %600 = vmatmul.mubr.bf16.gmra.mxu0 %v459
        %v601 = vpop.f32.mrf.mxu0
        %v602 = vadd.f32 0.0, %v601
        %v603 = vpop.f32.mrf.mxu0
        %v604 = vpop.f32.mrf.mxu0
        %v605 = vadd.f32 0.0, %v604
        %v606 = vpop.f32.mrf.mxu0
        %607 = vmatprep.mubr.bf16.mxu0 0
        %608 = vmatmul.mubr.bf16.gmra.mxu0 %v460
        %v609 = vpop.f32.mrf.mxu0
        %v610 = vadd.f32 0.0, %v609
        %v611 = vpop.f32.mrf.mxu0
        %v612 = vpop.f32.mrf.mxu0
        %v613 = vadd.f32 0.0, %v612
        %v614 = vpop.f32.mrf.mxu0
        %615 = vmatprep.mubr.bf16.mxu0 0
        %616 = vmatmul.mubr.bf16.gmra.mxu0 %v461
        %v617 = vpop.f32.mrf.mxu0
        %v618 = vadd.f32 0.0, %v617
        %v619 = vpop.f32.mrf.mxu0
        %v620 = vpop.f32.mrf.mxu0
        %v621 = vadd.f32 0.0, %v620
        %v622 = vpop.f32.mrf.mxu0
        %623 = vmatprep.mubr.bf16.mxu0 0
        %624 = vmatmul.mubr.bf16.gmra.mxu0 %v462
        %v625 = vpop.f32.mrf.mxu0
        %v626 = vadd.f32 0.0, %v625
        %v627 = vpop.f32.mrf.mxu0
        %v628 = vpop.f32.mrf.mxu0
        %v629 = vadd.f32 0.0, %v628
        %v630 = vpop.f32.mrf.mxu0
        %631 = vmatprep.mubr.bf16.mxu0 0
        %632 = vmatmul.mubr.bf16.gmra.mxu0 %v463
        %v633 = vpop.f32.mrf.mxu0
        %v634 = vadd.f32 0.0, %v633
        %v635 = vpop.f32.mrf.mxu0
        %v636 = vpop.f32.mrf.mxu0
        %v637 = vadd.f32 0.0, %v636
        %v638 = vpop.f32.mrf.mxu0
        %639 = vmatprep.mubr.bf16.mxu0 0
        %640 = vmatmul.mubr.bf16.gmra.mxu0 %v464
        %v641 = vpop.f32.mrf.mxu0
        %v642 = vadd.f32 0.0, %v641
        %v643 = vpop.f32.mrf.mxu0
        %v644 = vpop.f32.mrf.mxu0
        %v645 = vadd.f32 0.0, %v644
        %v646 = vpop.f32.mrf.mxu0
        %647 = vmatprep.mubr.bf16.mxu0 0
        %648 = vmatmul.mubr.bf16.gmra.mxu0 %v465
        %v649 = vpop.f32.mrf.mxu0
        %v650 = vadd.f32 0.0, %v649
        %v651 = vpop.f32.mrf.mxu0
        %v652 = vpop.f32.mrf.mxu0
        %v653 = vadd.f32 0.0, %v652
        %v654 = vpop.f32.mrf.mxu0
        %655 = vmatprep.mubr.bf16.mxu0 0
        %656 = vmatmul.mubr.bf16.gmra.mxu0 %v466
        %v657 = vpop.f32.mrf.mxu0
        %v658 = vadd.f32 0.0, %v657
        %v659 = vpop.f32.mrf.mxu0
        %v660 = vpop.f32.mrf.mxu0
        %v661 = vadd.f32 0.0, %v660
        %v662 = vpop.f32.mrf.mxu0
        %663 = vmatprep.mubr.bf16.mxu0 0
        %664 = vmatmul.mubr.bf16.gmra.mxu0 %v467
        %v665 = vpop.f32.mrf.mxu0
        %v666 = vadd.f32 0.0, %v665
        %v667 = vpop.f32.mrf.mxu0
        %v668 = vpop.f32.mrf.mxu0
        %v669 = vadd.f32 0.0, %v668
        %v670 = vpop.f32.mrf.mxu0
        %671 = vmatprep.mubr.bf16.mxu0 0
        %672 = vmatmul.mubr.bf16.gmra.mxu0 %v468
        %v673 = vpop.f32.mrf.mxu0
        %v674 = vadd.f32 0.0, %v673
        %v675 = vpop.f32.mrf.mxu0
        %v676 = vpop.f32.mrf.mxu0
        %v677 = vadd.f32 0.0, %v676
        %v678 = vpop.f32.mrf.mxu0
        %679 = vmatprep.mubr.bf16.mxu0 0
        %680 = vmatmul.mubr.bf16.gmra.mxu0 %v469
        %v681 = vpop.f32.mrf.mxu0
        %v682 = vadd.f32 0.0, %v681
        %v683 = vpop.f32.mrf.mxu0
        %v684 = vpop.f32.mrf.mxu0
        %v685 = vadd.f32 0.0, %v684
        %v686 = vpop.f32.mrf.mxu0
        %687 = vmatprep.mubr.bf16.mxu0 0
        %688 = vmatmul.mubr.bf16.gmra.mxu0 %v470
        %v689 = vpop.f32.mrf.mxu0
        %v690 = vadd.f32 0.0, %v689
        %v691 = vpop.f32.mrf.mxu0
        %v692 = vpop.f32.mrf.mxu0
        %v693 = vadd.f32 0.0, %v692
        %v694 = vpop.f32.mrf.mxu0
        %695 = vdwg.mxu0
        %v696 = vld [vmem:[%s2] sm:$0x1]
        %v698 = vlaneseq
        %v699 = vshrl.u32 %v698, 7
        %v700 = vsub.s32 0, %v699
        %v701 = vrot.slane %v696, %v700
        %v703 = vmul.f32 %v570, %v701
        %v704 = vmul.f32 %v573, %v701
        %v705 = vmul.f32 %v578, %v701
        %v706 = vmul.f32 %v581, %v701
        %v707 = vmul.f32 %v586, %v701
        %v708 = vmul.f32 %v589, %v701
        %v709 = vmul.f32 %v594, %v701
        %v710 = vmul.f32 %v597, %v701
        %v711 = vmul.f32 %v602, %v701
        %v712 = vmul.f32 %v605, %v701
        %v713 = vmul.f32 %v610, %v701
        %v714 = vmul.f32 %v613, %v701
        %v715 = vmul.f32 %v618, %v701
        %v716 = vmul.f32 %v621, %v701
        %v717 = vmul.f32 %v626, %v701
        %v718 = vmul.f32 %v629, %v701
        %v719 = vmul.f32 %v634, %v701
        %v720 = vmul.f32 %v637, %v701
        %v721 = vmul.f32 %v642, %v701
        %v722 = vmul.f32 %v645, %v701
        %v723 = vmul.f32 %v650, %v701
        %v724 = vmul.f32 %v653, %v701
        %v725 = vmul.f32 %v658, %v701
        %v726 = vmul.f32 %v661, %v701
        %v727 = vmul.f32 %v666, %v701
        %v728 = vmul.f32 %v669, %v701
        %v729 = vmul.f32 %v674, %v701
        %v730 = vmul.f32 %v677, %v701
        %v731 = vmul.f32 %v682, %v701
        %v732 = vmul.f32 %v685, %v701
        %v733 = vmul.f32 %v690, %v701
        %v734 = vmul.f32 %v693, %v701
        %v735 = vld [vmem:[%s3] sm:$0x1]
        %v737 = vlaneseq
        %v738 = vshrl.u32 %v737, 7
        %v739 = vsub.s32 0, %v738
        %v740 = vrot.slane %v735, %v739
        %v742 = vadd.f32 %v703, %v740
        %v743 = vadd.f32 %v704, %v740
        %v744 = vadd.f32 %v705, %v740
        %v745 = vadd.f32 %v706, %v740
        %v746 = vadd.f32 %v707, %v740
        %v747 = vadd.f32 %v708, %v740
        %v748 = vadd.f32 %v709, %v740
        %v749 = vadd.f32 %v710, %v740
        %v750 = vadd.f32 %v711, %v740
        %v751 = vadd.f32 %v712, %v740
        %v752 = vadd.f32 %v713, %v740
        %v753 = vadd.f32 %v714, %v740
        %v754 = vadd.f32 %v715, %v740
        %v755 = vadd.f32 %v716, %v740
        %v756 = vadd.f32 %v717, %v740
        %v757 = vadd.f32 %v718, %v740
        %v758 = vadd.f32 %v719, %v740
        %v759 = vadd.f32 %v720, %v740
        %v760 = vadd.f32 %v721, %v740
        %v761 = vadd.f32 %v722, %v740
        %v762 = vadd.f32 %v723, %v740
        %v763 = vadd.f32 %v724, %v740
        %v764 = vadd.f32 %v725, %v740
        %v765 = vadd.f32 %v726, %v740
        %v766 = vadd.f32 %v727, %v740
        %v767 = vadd.f32 %v728, %v740
        %v768 = vadd.f32 %v729, %v740
        %v769 = vadd.f32 %v730, %v740
        %v770 = vadd.f32 %v731, %v740
        %v771 = vadd.f32 %v732, %v740
        %v772 = vadd.f32 %v733, %v740
        %v773 = vadd.f32 %v734, %v740
        %v774 = vmax.f32 %v742, 0.0
        %v775 = vmax.f32 %v743, 0.0
        %v776 = vmax.f32 %v744, 0.0
        %v777 = vmax.f32 %v745, 0.0
        %v778 = vmax.f32 %v746, 0.0
        %v779 = vmax.f32 %v747, 0.0
        %v780 = vmax.f32 %v748, 0.0
        %v781 = vmax.f32 %v749, 0.0
        %v782 = vmax.f32 %v750, 0.0
        %v783 = vmax.f32 %v751, 0.0
        %v784 = vmax.f32 %v752, 0.0
        %v785 = vmax.f32 %v753, 0.0
        %v786 = vmax.f32 %v754, 0.0
        %v787 = vmax.f32 %v755, 0.0
        %v788 = vmax.f32 %v756, 0.0
        %v789 = vmax.f32 %v757, 0.0
        %v790 = vmax.f32 %v758, 0.0
        %v791 = vmax.f32 %v759, 0.0
        %v792 = vmax.f32 %v760, 0.0
        %v793 = vmax.f32 %v761, 0.0
        %v794 = vmax.f32 %v762, 0.0
        %v795 = vmax.f32 %v763, 0.0
        %v796 = vmax.f32 %v764, 0.0
        %v797 = vmax.f32 %v765, 0.0
        %v798 = vmax.f32 %v766, 0.0
        %v799 = vmax.f32 %v767, 0.0
        %v800 = vmax.f32 %v768, 0.0
        %v801 = vmax.f32 %v769, 0.0
        %v802 = vmax.f32 %v770, 0.0
        %v803 = vmax.f32 %v771, 0.0
        %v804 = vmax.f32 %v772, 0.0
        %v805 = vmax.f32 %v773, 0.0
        %v806 = vlaneseq
        %v807 = vshrl.u32 %v806, 7
        %v808 = vadd.s32 %v807, 8
        %v809 = vadd.s32 %v807, 16
        %v810 = vadd.s32 %v807, 24
        %v811 = vadd.s32 %v807, 32
        %v812 = vadd.s32 %v807, 40
        %v813 = vadd.s32 %v807, 48
        %v814 = vadd.s32 %v807, 56
        %v815 = vadd.s32 %v807, 64
        %v816 = vadd.s32 %v807, 72
        %v817 = vadd.s32 %v807, 80
        %v818 = vadd.s32 %v807, 88
        %v819 = vadd.s32 %v807, 96
        %v820 = vadd.s32 %v807, 104
        %v821 = vadd.s32 %v807, 112
        %v822 = vadd.s32 %v807, 120
        %v823 = vadd.s32 %v807, 128
        %v824 = vadd.s32 %v807, 136
        %v825 = vadd.s32 %v807, 144
        %v826 = vadd.s32 %v807, 152
        %v827 = vadd.s32 %v807, 160
        %v828 = vadd.s32 %v807, 168
        %v829 = vadd.s32 %v807, 176
        %v830 = vadd.s32 %v807, 184
        %v831 = vadd.s32 %v807, 192
        %v832 = vadd.s32 %v807, 200
        %v833 = vadd.s32 %v807, 208
        %v834 = vadd.s32 %v807, 216
        %v835 = vadd.s32 %v807, 224
        %v836 = vadd.s32 %v807, 232
        %v837 = vadd.s32 %v807, 240
        %v838 = vadd.s32 %v807, 248
        %vm839 = vcmp.lt.s32.totalorder %v807, 0
        %v840 = vsub.s32 0, %v807
        %v841 = vsel %vm839, %v840, %v807
        %v842 = vshrl.u32 %v841, 4
        %v843 = vand.u32 %v841, 15
        %v844 = vsub.s32 0, %v843
        %v845 = vsel %vm839, %v844, %v843
        %vm846 = vcmp.lt.s32.totalorder %v808, 0
        %v847 = vsub.s32 0, %v808
        %v848 = vsel %vm846, %v847, %v808
        %v849 = vshrl.u32 %v848, 4
        %v850 = vand.u32 %v848, 15
        %v851 = vsub.s32 0, %v850
        %v852 = vsel %vm846, %v851, %v850
        %vm853 = vcmp.lt.s32.totalorder %v809, 0
        %v854 = vsub.s32 0, %v809
        %v855 = vsel %vm853, %v854, %v809
        %v856 = vshrl.u32 %v855, 4
        %v857 = vand.u32 %v855, 15
        %v858 = vsub.s32 0, %v857
        %v859 = vsel %vm853, %v858, %v857
        %vm860 = vcmp.lt.s32.totalorder %v810, 0
        %v861 = vsub.s32 0, %v810
        %v862 = vsel %vm860, %v861, %v810
        %v863 = vshrl.u32 %v862, 4
        %v864 = vand.u32 %v862, 15
        %v865 = vsub.s32 0, %v864
        %v866 = vsel %vm860, %v865, %v864
        %vm867 = vcmp.lt.s32.totalorder %v811, 0
        %v868 = vsub.s32 0, %v811
        %v869 = vsel %vm867, %v868, %v811
        %v870 = vshrl.u32 %v869, 4
        %v871 = vand.u32 %v869, 15
        %v872 = vsub.s32 0, %v871
        %v873 = vsel %vm867, %v872, %v871
        %vm874 = vcmp.lt.s32.totalorder %v812, 0
        %v875 = vsub.s32 0, %v812
        %v876 = vsel %vm874, %v875, %v812
        %v877 = vshrl.u32 %v876, 4
        %v878 = vand.u32 %v876, 15
        %v879 = vsub.s32 0, %v878
        %v880 = vsel %vm874, %v879, %v878
        %vm881 = vcmp.lt.s32.totalorder %v813, 0
        %v882 = vsub.s32 0, %v813
        %v883 = vsel %vm881, %v882, %v813
        %v884 = vshrl.u32 %v883, 4
        %v885 = vand.u32 %v883, 15
        %v886 = vsub.s32 0, %v885
        %v887 = vsel %vm881, %v886, %v885
        %vm888 = vcmp.lt.s32.totalorder %v814, 0
        %v889 = vsub.s32 0, %v814
        %v890 = vsel %vm888, %v889, %v814
        %v891 = vshrl.u32 %v890, 4
        %v892 = vand.u32 %v890, 15
        %v893 = vsub.s32 0, %v892
        %v894 = vsel %vm888, %v893, %v892
        %vm895 = vcmp.lt.s32.totalorder %v815, 0
        %v896 = vsub.s32 0, %v815
        %v897 = vsel %vm895, %v896, %v815
        %v898 = vshrl.u32 %v897, 4
        %v899 = vand.u32 %v897, 15
        %v900 = vsub.s32 0, %v899
        %v901 = vsel %vm895, %v900, %v899
        %vm902 = vcmp.lt.s32.totalorder %v816, 0
        %v903 = vsub.s32 0, %v816
        %v904 = vsel %vm902, %v903, %v816
        %v905 = vshrl.u32 %v904, 4
        %v906 = vand.u32 %v904, 15
        %v907 = vsub.s32 0, %v906
        %v908 = vsel %vm902, %v907, %v906
        %vm909 = vcmp.lt.s32.totalorder %v817, 0
        %v910 = vsub.s32 0, %v817
        %v911 = vsel %vm909, %v910, %v817
        %v912 = vshrl.u32 %v911, 4
        %v913 = vand.u32 %v911, 15
        %v914 = vsub.s32 0, %v913
        %v915 = vsel %vm909, %v914, %v913
        %vm916 = vcmp.lt.s32.totalorder %v818, 0
        %v917 = vsub.s32 0, %v818
        %v918 = vsel %vm916, %v917, %v818
        %v919 = vshrl.u32 %v918, 4
        %v920 = vand.u32 %v918, 15
        %v921 = vsub.s32 0, %v920
        %v922 = vsel %vm916, %v921, %v920
        %vm923 = vcmp.lt.s32.totalorder %v819, 0
        %v924 = vsub.s32 0, %v819
        %v925 = vsel %vm923, %v924, %v819
        %v926 = vshrl.u32 %v925, 4
        %v927 = vand.u32 %v925, 15
        %v928 = vsub.s32 0, %v927
        %v929 = vsel %vm923, %v928, %v927
        %vm930 = vcmp.lt.s32.totalorder %v820, 0
        %v931 = vsub.s32 0, %v820
        %v932 = vsel %vm930, %v931, %v820
        %v933 = vshrl.u32 %v932, 4
        %v934 = vand.u32 %v932, 15
        %v935 = vsub.s32 0, %v934
        %v936 = vsel %vm930, %v935, %v934
        %vm937 = vcmp.lt.s32.totalorder %v821, 0
        %v938 = vsub.s32 0, %v821
        %v939 = vsel %vm937, %v938, %v821
        %v940 = vshrl.u32 %v939, 4
        %v941 = vand.u32 %v939, 15
        %v942 = vsub.s32 0, %v941
        %v943 = vsel %vm937, %v942, %v941
        %vm944 = vcmp.lt.s32.totalorder %v822, 0
        %v945 = vsub.s32 0, %v822
        %v946 = vsel %vm944, %v945, %v822
        %v947 = vshrl.u32 %v946, 4
        %v948 = vand.u32 %v946, 15
        %v949 = vsub.s32 0, %v948
        %v950 = vsel %vm944, %v949, %v948
        %vm951 = vcmp.lt.s32.totalorder %v823, 0
        %v952 = vsub.s32 0, %v823
        %v953 = vsel %vm951, %v952, %v823
        %v954 = vshrl.u32 %v953, 4
        %v955 = vand.u32 %v953, 15
        %v956 = vsub.s32 0, %v955
        %v957 = vsel %vm951, %v956, %v955
        %vm958 = vcmp.lt.s32.totalorder %v824, 0
        %v959 = vsub.s32 0, %v824
        %v960 = vsel %vm958, %v959, %v824
        %v961 = vshrl.u32 %v960, 4
        %v962 = vand.u32 %v960, 15
        %v963 = vsub.s32 0, %v962
        %v964 = vsel %vm958, %v963, %v962
        %vm965 = vcmp.lt.s32.totalorder %v825, 0
        %v966 = vsub.s32 0, %v825
        %v967 = vsel %vm965, %v966, %v825
        %v968 = vshrl.u32 %v967, 4
        %v969 = vand.u32 %v967, 15
        %v970 = vsub.s32 0, %v969
        %v971 = vsel %vm965, %v970, %v969
        %vm972 = vcmp.lt.s32.totalorder %v826, 0
        %v973 = vsub.s32 0, %v826
        %v974 = vsel %vm972, %v973, %v826
        %v975 = vshrl.u32 %v974, 4
        %v976 = vand.u32 %v974, 15
        %v977 = vsub.s32 0, %v976
        %v978 = vsel %vm972, %v977, %v976
        %vm979 = vcmp.lt.s32.totalorder %v827, 0
        %v980 = vsub.s32 0, %v827
        %v981 = vsel %vm979, %v980, %v827
        %v982 = vshrl.u32 %v981, 4
        %v983 = vand.u32 %v981, 15
        %v984 = vsub.s32 0, %v983
        %v985 = vsel %vm979, %v984, %v983
        %vm986 = vcmp.lt.s32.totalorder %v828, 0
        %v987 = vsub.s32 0, %v828
        %v988 = vsel %vm986, %v987, %v828
        %v989 = vshrl.u32 %v988, 4
        %v990 = vand.u32 %v988, 15
        %v991 = vsub.s32 0, %v990
        %v992 = vsel %vm986, %v991, %v990
        %vm993 = vcmp.lt.s32.totalorder %v829, 0
        %v994 = vsub.s32 0, %v829
        %v995 = vsel %vm993, %v994, %v829
        %v996 = vshrl.u32 %v995, 4
        %v997 = vand.u32 %v995, 15
        %v998 = vsub.s32 0, %v997
        %v999 = vsel %vm993, %v998, %v997
        %vm1000 = vcmp.lt.s32.totalorder %v830, 0
        %v1001 = vsub.s32 0, %v830
        %v1002 = vsel %vm1000, %v1001, %v830
        %v1003 = vshrl.u32 %v1002, 4
        %v1004 = vand.u32 %v1002, 15
        %v1005 = vsub.s32 0, %v1004
        %v1006 = vsel %vm1000, %v1005, %v1004
        %vm1007 = vcmp.lt.s32.totalorder %v831, 0
        %v1008 = vsub.s32 0, %v831
        %v1009 = vsel %vm1007, %v1008, %v831
        %v1010 = vshrl.u32 %v1009, 4
        %v1011 = vand.u32 %v1009, 15
        %v1012 = vsub.s32 0, %v1011
        %v1013 = vsel %vm1007, %v1012, %v1011
        %vm1014 = vcmp.lt.s32.totalorder %v832, 0
        %v1015 = vsub.s32 0, %v832
        %v1016 = vsel %vm1014, %v1015, %v832
        %v1017 = vshrl.u32 %v1016, 4
        %v1018 = vand.u32 %v1016, 15
        %v1019 = vsub.s32 0, %v1018
        %v1020 = vsel %vm1014, %v1019, %v1018
        %vm1021 = vcmp.lt.s32.totalorder %v833, 0
        %v1022 = vsub.s32 0, %v833
        %v1023 = vsel %vm1021, %v1022, %v833
        %v1024 = vshrl.u32 %v1023, 4
        %v1025 = vand.u32 %v1023, 15
        %v1026 = vsub.s32 0, %v1025
        %v1027 = vsel %vm1021, %v1026, %v1025
        %vm1028 = vcmp.lt.s32.totalorder %v834, 0
        %v1029 = vsub.s32 0, %v834
        %v1030 = vsel %vm1028, %v1029, %v834
        %v1031 = vshrl.u32 %v1030, 4
        %v1032 = vand.u32 %v1030, 15
        %v1033 = vsub.s32 0, %v1032
        %v1034 = vsel %vm1028, %v1033, %v1032
        %vm1035 = vcmp.lt.s32.totalorder %v835, 0
        %v1036 = vsub.s32 0, %v835
        %v1037 = vsel %vm1035, %v1036, %v835
        %v1038 = vshrl.u32 %v1037, 4
        %v1039 = vand.u32 %v1037, 15
        %v1040 = vsub.s32 0, %v1039
        %v1041 = vsel %vm1035, %v1040, %v1039
        %vm1042 = vcmp.lt.s32.totalorder %v836, 0
        %v1043 = vsub.s32 0, %v836
        %v1044 = vsel %vm1042, %v1043, %v836
        %v1045 = vshrl.u32 %v1044, 4
        %v1046 = vand.u32 %v1044, 15
        %v1047 = vsub.s32 0, %v1046
        %v1048 = vsel %vm1042, %v1047, %v1046
        %vm1049 = vcmp.lt.s32.totalorder %v837, 0
        %v1050 = vsub.s32 0, %v837
        %v1051 = vsel %vm1049, %v1050, %v837
        %v1052 = vshrl.u32 %v1051, 4
        %v1053 = vand.u32 %v1051, 15
        %v1054 = vsub.s32 0, %v1053
        %v1055 = vsel %vm1049, %v1054, %v1053
        %vm1056 = vcmp.lt.s32.totalorder %v838, 0
        %v1057 = vsub.s32 0, %v838
        %v1058 = vsel %vm1056, %v1057, %v838
        %v1059 = vshrl.u32 %v1058, 4
        %v1060 = vand.u32 %v1058, 15
        %v1061 = vsub.s32 0, %v1060
        %v1062 = vsel %vm1056, %v1061, %v1060
        %vm1063 = vcmp.ne.s32.totalorder %v845, 0
        %vm1064 = vcmp.ne.s32.totalorder %v852, 0
        %vm1065 = vcmp.ne.s32.totalorder %v859, 0
        %vm1066 = vcmp.ne.s32.totalorder %v866, 0
        %vm1067 = vcmp.ne.s32.totalorder %v873, 0
        %vm1068 = vcmp.ne.s32.totalorder %v880, 0
        %vm1069 = vcmp.ne.s32.totalorder %v887, 0
        %vm1070 = vcmp.ne.s32.totalorder %v894, 0
        %vm1071 = vcmp.ne.s32.totalorder %v901, 0
        %vm1072 = vcmp.ne.s32.totalorder %v908, 0
        %vm1073 = vcmp.ne.s32.totalorder %v915, 0
        %vm1074 = vcmp.ne.s32.totalorder %v922, 0
        %vm1075 = vcmp.ne.s32.totalorder %v929, 0
        %vm1076 = vcmp.ne.s32.totalorder %v936, 0
        %vm1077 = vcmp.ne.s32.totalorder %v943, 0
        %vm1078 = vcmp.ne.s32.totalorder %v950, 0
        %vm1079 = vcmp.ne.s32.totalorder %v957, 0
        %vm1080 = vcmp.ne.s32.totalorder %v964, 0
        %vm1081 = vcmp.ne.s32.totalorder %v971, 0
        %vm1082 = vcmp.ne.s32.totalorder %v978, 0
        %vm1083 = vcmp.ne.s32.totalorder %v985, 0
        %vm1084 = vcmp.ne.s32.totalorder %v992, 0
        %vm1085 = vcmp.ne.s32.totalorder %v999, 0
        %vm1086 = vcmp.ne.s32.totalorder %v1006, 0
        %vm1087 = vcmp.ne.s32.totalorder %v1013, 0
        %vm1088 = vcmp.ne.s32.totalorder %v1020, 0
        %vm1089 = vcmp.ne.s32.totalorder %v1027, 0
        %vm1090 = vcmp.ne.s32.totalorder %v1034, 0
        %vm1091 = vcmp.ne.s32.totalorder %v1041, 0
        %vm1092 = vcmp.ne.s32.totalorder %v1048, 0
        %vm1093 = vcmp.ne.s32.totalorder %v1055, 0
        %vm1094 = vcmp.ne.s32.totalorder %v1062, 0
        %vm1095 = vcmp.lt.s32.totalorder %v845, 0
        %vm1096 = vcmp.lt.s32.totalorder %v852, 0
        %vm1097 = vcmp.lt.s32.totalorder %v859, 0
        %vm1098 = vcmp.lt.s32.totalorder %v866, 0
        %vm1099 = vcmp.lt.s32.totalorder %v873, 0
        %vm1100 = vcmp.lt.s32.totalorder %v880, 0
        %vm1101 = vcmp.lt.s32.totalorder %v887, 0
        %vm1102 = vcmp.lt.s32.totalorder %v894, 0
        %vm1103 = vcmp.lt.s32.totalorder %v901, 0
        %vm1104 = vcmp.lt.s32.totalorder %v908, 0
        %vm1105 = vcmp.lt.s32.totalorder %v915, 0
        %vm1106 = vcmp.lt.s32.totalorder %v922, 0
        %vm1107 = vcmp.lt.s32.totalorder %v929, 0
        %vm1108 = vcmp.lt.s32.totalorder %v936, 0
        %vm1109 = vcmp.lt.s32.totalorder %v943, 0
        %vm1110 = vcmp.lt.s32.totalorder %v950, 0
        %vm1111 = vcmp.lt.s32.totalorder %v957, 0
        %vm1112 = vcmp.lt.s32.totalorder %v964, 0
        %vm1113 = vcmp.lt.s32.totalorder %v971, 0
        %vm1114 = vcmp.lt.s32.totalorder %v978, 0
        %vm1115 = vcmp.lt.s32.totalorder %v985, 0
        %vm1116 = vcmp.lt.s32.totalorder %v992, 0
        %vm1117 = vcmp.lt.s32.totalorder %v999, 0
        %vm1118 = vcmp.lt.s32.totalorder %v1006, 0
        %vm1119 = vcmp.lt.s32.totalorder %v1013, 0
        %vm1120 = vcmp.lt.s32.totalorder %v1020, 0
        %vm1121 = vcmp.lt.s32.totalorder %v1027, 0
        %vm1122 = vcmp.lt.s32.totalorder %v1034, 0
        %vm1123 = vcmp.lt.s32.totalorder %v1041, 0
        %vm1124 = vcmp.lt.s32.totalorder %v1048, 0
        %vm1125 = vcmp.lt.s32.totalorder %v1055, 0
        %vm1126 = vcmp.lt.s32.totalorder %v1062, 0
        %vm1127 = vmand %vm1095, %vm1063
        %vm1128 = vmand %vm1096, %vm1064
        %vm1129 = vmand %vm1097, %vm1065
        %vm1130 = vmand %vm1098, %vm1066
        %vm1131 = vmand %vm1099, %vm1067
        %vm1132 = vmand %vm1100, %vm1068
        %vm1133 = vmand %vm1101, %vm1069
        %vm1134 = vmand %vm1102, %vm1070
        %vm1135 = vmand %vm1103, %vm1071
        %vm1136 = vmand %vm1104, %vm1072
        %vm1137 = vmand %vm1105, %vm1073
        %vm1138 = vmand %vm1106, %vm1074
        %vm1139 = vmand %vm1107, %vm1075
        %vm1140 = vmand %vm1108, %vm1076
        %vm1141 = vmand %vm1109, %vm1077
        %vm1142 = vmand %vm1110, %vm1078
        %vm1143 = vmand %vm1111, %vm1079
        %vm1144 = vmand %vm1112, %vm1080
        %vm1145 = vmand %vm1113, %vm1081
        %vm1146 = vmand %vm1114, %vm1082
        %vm1147 = vmand %vm1115, %vm1083
        %vm1148 = vmand %vm1116, %vm1084
        %vm1149 = vmand %vm1117, %vm1085
        %vm1150 = vmand %vm1118, %vm1086
        %vm1151 = vmand %vm1119, %vm1087
        %vm1152 = vmand %vm1120, %vm1088
        %vm1153 = vmand %vm1121, %vm1089
        %vm1154 = vmand %vm1122, %vm1090
        %vm1155 = vmand %vm1123, %vm1091
        %vm1156 = vmand %vm1124, %vm1092
        %vm1157 = vmand %vm1125, %vm1093
        %vm1158 = vmand %vm1126, %vm1094
        %v1159 = vadd.s32 %v845, 16
        %v1160 = vadd.s32 %v852, 16
        %v1161 = vadd.s32 %v859, 16
        %v1162 = vadd.s32 %v866, 16
        %v1163 = vadd.s32 %v873, 16
        %v1164 = vadd.s32 %v880, 16
        %v1165 = vadd.s32 %v887, 16
        %v1166 = vadd.s32 %v894, 16
        %v1167 = vadd.s32 %v901, 16
        %v1168 = vadd.s32 %v908, 16
        %v1169 = vadd.s32 %v915, 16
        %v1170 = vadd.s32 %v922, 16
        %v1171 = vadd.s32 %v929, 16
        %v1172 = vadd.s32 %v936, 16
        %v1173 = vadd.s32 %v943, 16
        %v1174 = vadd.s32 %v950, 16
        %v1175 = vadd.s32 %v957, 16
        %v1176 = vadd.s32 %v964, 16
        %v1177 = vadd.s32 %v971, 16
        %v1178 = vadd.s32 %v978, 16
        %v1179 = vadd.s32 %v985, 16
        %v1180 = vadd.s32 %v992, 16
        %v1181 = vadd.s32 %v999, 16
        %v1182 = vadd.s32 %v1006, 16
        %v1183 = vadd.s32 %v1013, 16
        %v1184 = vadd.s32 %v1020, 16
        %v1185 = vadd.s32 %v1027, 16
        %v1186 = vadd.s32 %v1034, 16
        %v1187 = vadd.s32 %v1041, 16
        %v1188 = vadd.s32 %v1048, 16
        %v1189 = vadd.s32 %v1055, 16
        %v1190 = vadd.s32 %v1062, 16
        %v1191 = vsel %vm1127, %v1159, %v845
        %v1192 = vsel %vm1128, %v1160, %v852
        %v1193 = vsel %vm1129, %v1161, %v859
        %v1194 = vsel %vm1130, %v1162, %v866
        %v1195 = vsel %vm1131, %v1163, %v873
        %v1196 = vsel %vm1132, %v1164, %v880
        %v1197 = vsel %vm1133, %v1165, %v887
        %v1198 = vsel %vm1134, %v1166, %v894
        %v1199 = vsel %vm1135, %v1167, %v901
        %v1200 = vsel %vm1136, %v1168, %v908
        %v1201 = vsel %vm1137, %v1169, %v915
        %v1202 = vsel %vm1138, %v1170, %v922
        %v1203 = vsel %vm1139, %v1171, %v929
        %v1204 = vsel %vm1140, %v1172, %v936
        %v1205 = vsel %vm1141, %v1173, %v943
        %v1206 = vsel %vm1142, %v1174, %v950
        %v1207 = vsel %vm1143, %v1175, %v957
        %v1208 = vsel %vm1144, %v1176, %v964
        %v1209 = vsel %vm1145, %v1177, %v971
        %v1210 = vsel %vm1146, %v1178, %v978
        %v1211 = vsel %vm1147, %v1179, %v985
        %v1212 = vsel %vm1148, %v1180, %v992
        %v1213 = vsel %vm1149, %v1181, %v999
        %v1214 = vsel %vm1150, %v1182, %v1006
        %v1215 = vsel %vm1151, %v1183, %v1013
        %v1216 = vsel %vm1152, %v1184, %v1020
        %v1217 = vsel %vm1153, %v1185, %v1027
        %v1218 = vsel %vm1154, %v1186, %v1034
        %v1219 = vsel %vm1155, %v1187, %v1041
        %v1220 = vsel %vm1156, %v1188, %v1048
        %v1221 = vsel %vm1157, %v1189, %v1055
        %v1222 = vsel %vm1158, %v1190, %v1062
        %vm1223 = vcmp.lt.s32.totalorder %v807, 0
        %v1224 = vsub.s32 0, %v807
        %v1225 = vsel %vm1223, %v1224, %v807
        %v1226 = vshrl.u32 %v1225, 8
        %v1227 = vand.u32 %v1225, 255
        %v1228 = vsub.s32 0, %v1227
        %v1229 = vsel %vm1223, %v1228, %v1227
        %vm1230 = vcmp.lt.s32.totalorder %v808, 0
        %v1231 = vsub.s32 0, %v808
        %v1232 = vsel %vm1230, %v1231, %v808
        %v1233 = vshrl.u32 %v1232, 8
        %v1234 = vand.u32 %v1232, 255
        %v1235 = vsub.s32 0, %v1234
        %v1236 = vsel %vm1230, %v1235, %v1234
        %vm1237 = vcmp.lt.s32.totalorder %v809, 0
        %v1238 = vsub.s32 0, %v809
        %v1239 = vsel %vm1237, %v1238, %v809
        %v1240 = vshrl.u32 %v1239, 8
        %v1241 = vand.u32 %v1239, 255
        %v1242 = vsub.s32 0, %v1241
        %v1243 = vsel %vm1237, %v1242, %v1241
        %vm1244 = vcmp.lt.s32.totalorder %v810, 0
        %v1245 = vsub.s32 0, %v810
        %v1246 = vsel %vm1244, %v1245, %v810
        %v1247 = vshrl.u32 %v1246, 8
        %v1248 = vand.u32 %v1246, 255
        %v1249 = vsub.s32 0, %v1248
        %v1250 = vsel %vm1244, %v1249, %v1248
        %vm1251 = vcmp.lt.s32.totalorder %v811, 0
        %v1252 = vsub.s32 0, %v811
        %v1253 = vsel %vm1251, %v1252, %v811
        %v1254 = vshrl.u32 %v1253, 8
        %v1255 = vand.u32 %v1253, 255
        %v1256 = vsub.s32 0, %v1255
        %v1257 = vsel %vm1251, %v1256, %v1255
        %vm1258 = vcmp.lt.s32.totalorder %v812, 0
        %v1259 = vsub.s32 0, %v812
        %v1260 = vsel %vm1258, %v1259, %v812
        %v1261 = vshrl.u32 %v1260, 8
        %v1262 = vand.u32 %v1260, 255
        %v1263 = vsub.s32 0, %v1262
        %v1264 = vsel %vm1258, %v1263, %v1262
        %vm1265 = vcmp.lt.s32.totalorder %v813, 0
        %v1266 = vsub.s32 0, %v813
        %v1267 = vsel %vm1265, %v1266, %v813
        %v1268 = vshrl.u32 %v1267, 8
        %v1269 = vand.u32 %v1267, 255
        %v1270 = vsub.s32 0, %v1269
        %v1271 = vsel %vm1265, %v1270, %v1269
        %vm1272 = vcmp.lt.s32.totalorder %v814, 0
        %v1273 = vsub.s32 0, %v814
        %v1274 = vsel %vm1272, %v1273, %v814
        %v1275 = vshrl.u32 %v1274, 8
        %v1276 = vand.u32 %v1274, 255
        %v1277 = vsub.s32 0, %v1276
        %v1278 = vsel %vm1272, %v1277, %v1276
        %vm1279 = vcmp.lt.s32.totalorder %v815, 0
        %v1280 = vsub.s32 0, %v815
        %v1281 = vsel %vm1279, %v1280, %v815
        %v1282 = vshrl.u32 %v1281, 8
        %v1283 = vand.u32 %v1281, 255
        %v1284 = vsub.s32 0, %v1283
        %v1285 = vsel %vm1279, %v1284, %v1283
        %vm1286 = vcmp.lt.s32.totalorder %v816, 0
        %v1287 = vsub.s32 0, %v816
        %v1288 = vsel %vm1286, %v1287, %v816
        %v1289 = vshrl.u32 %v1288, 8
        %v1290 = vand.u32 %v1288, 255
        %v1291 = vsub.s32 0, %v1290
        %v1292 = vsel %vm1286, %v1291, %v1290
        %vm1293 = vcmp.lt.s32.totalorder %v817, 0
        %v1294 = vsub.s32 0, %v817
        %v1295 = vsel %vm1293, %v1294, %v817
        %v1296 = vshrl.u32 %v1295, 8
        %v1297 = vand.u32 %v1295, 255
        %v1298 = vsub.s32 0, %v1297
        %v1299 = vsel %vm1293, %v1298, %v1297
        %vm1300 = vcmp.lt.s32.totalorder %v818, 0
        %v1301 = vsub.s32 0, %v818
        %v1302 = vsel %vm1300, %v1301, %v818
        %v1303 = vshrl.u32 %v1302, 8
        %v1304 = vand.u32 %v1302, 255
        %v1305 = vsub.s32 0, %v1304
        %v1306 = vsel %vm1300, %v1305, %v1304
        %vm1307 = vcmp.lt.s32.totalorder %v819, 0
        %v1308 = vsub.s32 0, %v819
        %v1309 = vsel %vm1307, %v1308, %v819
        %v1310 = vshrl.u32 %v1309, 8
        %v1311 = vand.u32 %v1309, 255
        %v1312 = vsub.s32 0, %v1311
        %v1313 = vsel %vm1307, %v1312, %v1311
        %vm1314 = vcmp.lt.s32.totalorder %v820, 0
        %v1315 = vsub.s32 0, %v820
        %v1316 = vsel %vm1314, %v1315, %v820
        %v1317 = vshrl.u32 %v1316, 8
        %v1318 = vand.u32 %v1316, 255
        %v1319 = vsub.s32 0, %v1318
        %v1320 = vsel %vm1314, %v1319, %v1318
        %vm1321 = vcmp.lt.s32.totalorder %v821, 0
        %v1322 = vsub.s32 0, %v821
        %v1323 = vsel %vm1321, %v1322, %v821
        %v1324 = vshrl.u32 %v1323, 8
        %v1325 = vand.u32 %v1323, 255
        %v1326 = vsub.s32 0, %v1325
        %v1327 = vsel %vm1321, %v1326, %v1325
        %vm1328 = vcmp.lt.s32.totalorder %v822, 0
        %v1329 = vsub.s32 0, %v822
        %v1330 = vsel %vm1328, %v1329, %v822
        %v1331 = vshrl.u32 %v1330, 8
        %v1332 = vand.u32 %v1330, 255
        %v1333 = vsub.s32 0, %v1332
        %v1334 = vsel %vm1328, %v1333, %v1332
        %vm1335 = vcmp.lt.s32.totalorder %v823, 0
        %v1336 = vsub.s32 0, %v823
        %v1337 = vsel %vm1335, %v1336, %v823
        %v1338 = vshrl.u32 %v1337, 8
        %v1339 = vand.u32 %v1337, 255
        %v1340 = vsub.s32 0, %v1339
        %v1341 = vsel %vm1335, %v1340, %v1339
        %vm1342 = vcmp.lt.s32.totalorder %v824, 0
        %v1343 = vsub.s32 0, %v824
        %v1344 = vsel %vm1342, %v1343, %v824
        %v1345 = vshrl.u32 %v1344, 8
        %v1346 = vand.u32 %v1344, 255
        %v1347 = vsub.s32 0, %v1346
        %v1348 = vsel %vm1342, %v1347, %v1346
        %vm1349 = vcmp.lt.s32.totalorder %v825, 0
        %v1350 = vsub.s32 0, %v825
        %v1351 = vsel %vm1349, %v1350, %v825
        %v1352 = vshrl.u32 %v1351, 8
        %v1353 = vand.u32 %v1351, 255
        %v1354 = vsub.s32 0, %v1353
        %v1355 = vsel %vm1349, %v1354, %v1353
        %vm1356 = vcmp.lt.s32.totalorder %v826, 0
        %v1357 = vsub.s32 0, %v826
        %v1358 = vsel %vm1356, %v1357, %v826
        %v1359 = vshrl.u32 %v1358, 8
        %v1360 = vand.u32 %v1358, 255
        %v1361 = vsub.s32 0, %v1360
        %v1362 = vsel %vm1356, %v1361, %v1360
        %vm1363 = vcmp.lt.s32.totalorder %v827, 0
        %v1364 = vsub.s32 0, %v827
        %v1365 = vsel %vm1363, %v1364, %v827
        %v1366 = vshrl.u32 %v1365, 8
        %v1367 = vand.u32 %v1365, 255
        %v1368 = vsub.s32 0, %v1367
        %v1369 = vsel %vm1363, %v1368, %v1367
        %vm1370 = vcmp.lt.s32.totalorder %v828, 0
        %v1371 = vsub.s32 0, %v828
        %v1372 = vsel %vm1370, %v1371, %v828
        %v1373 = vshrl.u32 %v1372, 8
        %v1374 = vand.u32 %v1372, 255
        %v1375 = vsub.s32 0, %v1374
        %v1376 = vsel %vm1370, %v1375, %v1374
        %vm1377 = vcmp.lt.s32.totalorder %v829, 0
        %v1378 = vsub.s32 0, %v829
        %v1379 = vsel %vm1377, %v1378, %v829
        %v1380 = vshrl.u32 %v1379, 8
        %v1381 = vand.u32 %v1379, 255
        %v1382 = vsub.s32 0, %v1381
        %v1383 = vsel %vm1377, %v1382, %v1381
        %vm1384 = vcmp.lt.s32.totalorder %v830, 0
        %v1385 = vsub.s32 0, %v830
        %v1386 = vsel %vm1384, %v1385, %v830
        %v1387 = vshrl.u32 %v1386, 8
        %v1388 = vand.u32 %v1386, 255
        %v1389 = vsub.s32 0, %v1388
        %v1390 = vsel %vm1384, %v1389, %v1388
        %vm1391 = vcmp.lt.s32.totalorder %v831, 0
        %v1392 = vsub.s32 0, %v831
        %v1393 = vsel %vm1391, %v1392, %v831
        %v1394 = vshrl.u32 %v1393, 8
        %v1395 = vand.u32 %v1393, 255
        %v1396 = vsub.s32 0, %v1395
        %v1397 = vsel %vm1391, %v1396, %v1395
        %vm1398 = vcmp.lt.s32.totalorder %v832, 0
        %v1399 = vsub.s32 0, %v832
        %v1400 = vsel %vm1398, %v1399, %v832
        %v1401 = vshrl.u32 %v1400, 8
        %v1402 = vand.u32 %v1400, 255
        %v1403 = vsub.s32 0, %v1402
        %v1404 = vsel %vm1398, %v1403, %v1402
        %vm1405 = vcmp.lt.s32.totalorder %v833, 0
        %v1406 = vsub.s32 0, %v833
        %v1407 = vsel %vm1405, %v1406, %v833
        %v1408 = vshrl.u32 %v1407, 8
        %v1409 = vand.u32 %v1407, 255
        %v1410 = vsub.s32 0, %v1409
        %v1411 = vsel %vm1405, %v1410, %v1409
        %vm1412 = vcmp.lt.s32.totalorder %v834, 0
        %v1413 = vsub.s32 0, %v834
        %v1414 = vsel %vm1412, %v1413, %v834
        %v1415 = vshrl.u32 %v1414, 8
        %v1416 = vand.u32 %v1414, 255
        %v1417 = vsub.s32 0, %v1416
        %v1418 = vsel %vm1412, %v1417, %v1416
        %vm1419 = vcmp.lt.s32.totalorder %v835, 0
        %v1420 = vsub.s32 0, %v835
        %v1421 = vsel %vm1419, %v1420, %v835
        %v1422 = vshrl.u32 %v1421, 8
        %v1423 = vand.u32 %v1421, 255
        %v1424 = vsub.s32 0, %v1423
        %v1425 = vsel %vm1419, %v1424, %v1423
        %vm1426 = vcmp.lt.s32.totalorder %v836, 0
        %v1427 = vsub.s32 0, %v836
        %v1428 = vsel %vm1426, %v1427, %v836
        %v1429 = vshrl.u32 %v1428, 8
        %v1430 = vand.u32 %v1428, 255
        %v1431 = vsub.s32 0, %v1430
        %v1432 = vsel %vm1426, %v1431, %v1430
        %vm1433 = vcmp.lt.s32.totalorder %v837, 0
        %v1434 = vsub.s32 0, %v837
        %v1435 = vsel %vm1433, %v1434, %v837
        %v1436 = vshrl.u32 %v1435, 8
        %v1437 = vand.u32 %v1435, 255
        %v1438 = vsub.s32 0, %v1437
        %v1439 = vsel %vm1433, %v1438, %v1437
        %vm1440 = vcmp.lt.s32.totalorder %v838, 0
        %v1441 = vsub.s32 0, %v838
        %v1442 = vsel %vm1440, %v1441, %v838
        %v1443 = vshrl.u32 %v1442, 8
        %v1444 = vand.u32 %v1442, 255
        %v1445 = vsub.s32 0, %v1444
        %v1446 = vsel %vm1440, %v1445, %v1444
        %vm1447 = vcmp.ne.s32.totalorder %v1229, 0
        %vm1448 = vcmp.ne.s32.totalorder %v1236, 0
        %vm1449 = vcmp.ne.s32.totalorder %v1243, 0
        %vm1450 = vcmp.ne.s32.totalorder %v1250, 0
        %vm1451 = vcmp.ne.s32.totalorder %v1257, 0
        %vm1452 = vcmp.ne.s32.totalorder %v1264, 0
        %vm1453 = vcmp.ne.s32.totalorder %v1271, 0
        %vm1454 = vcmp.ne.s32.totalorder %v1278, 0
        %vm1455 = vcmp.ne.s32.totalorder %v1285, 0
        %vm1456 = vcmp.ne.s32.totalorder %v1292, 0
        %vm1457 = vcmp.ne.s32.totalorder %v1299, 0
        %vm1458 = vcmp.ne.s32.totalorder %v1306, 0
        %vm1459 = vcmp.ne.s32.totalorder %v1313, 0
        %vm1460 = vcmp.ne.s32.totalorder %v1320, 0
        %vm1461 = vcmp.ne.s32.totalorder %v1327, 0
        %vm1462 = vcmp.ne.s32.totalorder %v1334, 0
        %vm1463 = vcmp.ne.s32.totalorder %v1341, 0
        %vm1464 = vcmp.ne.s32.totalorder %v1348, 0
        %vm1465 = vcmp.ne.s32.totalorder %v1355, 0
        %vm1466 = vcmp.ne.s32.totalorder %v1362, 0
        %vm1467 = vcmp.ne.s32.totalorder %v1369, 0
        %vm1468 = vcmp.ne.s32.totalorder %v1376, 0
        %vm1469 = vcmp.ne.s32.totalorder %v1383, 0
        %vm1470 = vcmp.ne.s32.totalorder %v1390, 0
        %vm1471 = vcmp.ne.s32.totalorder %v1397, 0
        %vm1472 = vcmp.ne.s32.totalorder %v1404, 0
        %vm1473 = vcmp.ne.s32.totalorder %v1411, 0
        %vm1474 = vcmp.ne.s32.totalorder %v1418, 0
        %vm1475 = vcmp.ne.s32.totalorder %v1425, 0
        %vm1476 = vcmp.ne.s32.totalorder %v1432, 0
        %vm1477 = vcmp.ne.s32.totalorder %v1439, 0
        %vm1478 = vcmp.ne.s32.totalorder %v1446, 0
        %vm1479 = vcmp.lt.s32.totalorder %v1229, 0
        %vm1480 = vcmp.lt.s32.totalorder %v1236, 0
        %vm1481 = vcmp.lt.s32.totalorder %v1243, 0
        %vm1482 = vcmp.lt.s32.totalorder %v1250, 0
        %vm1483 = vcmp.lt.s32.totalorder %v1257, 0
        %vm1484 = vcmp.lt.s32.totalorder %v1264, 0
        %vm1485 = vcmp.lt.s32.totalorder %v1271, 0
        %vm1486 = vcmp.lt.s32.totalorder %v1278, 0
        %vm1487 = vcmp.lt.s32.totalorder %v1285, 0
        %vm1488 = vcmp.lt.s32.totalorder %v1292, 0
        %vm1489 = vcmp.lt.s32.totalorder %v1299, 0
        %vm1490 = vcmp.lt.s32.totalorder %v1306, 0
        %vm1491 = vcmp.lt.s32.totalorder %v1313, 0
        %vm1492 = vcmp.lt.s32.totalorder %v1320, 0
        %vm1493 = vcmp.lt.s32.totalorder %v1327, 0
        %vm1494 = vcmp.lt.s32.totalorder %v1334, 0
        %vm1495 = vcmp.lt.s32.totalorder %v1341, 0
        %vm1496 = vcmp.lt.s32.totalorder %v1348, 0
        %vm1497 = vcmp.lt.s32.totalorder %v1355, 0
        %vm1498 = vcmp.lt.s32.totalorder %v1362, 0
        %vm1499 = vcmp.lt.s32.totalorder %v1369, 0
        %vm1500 = vcmp.lt.s32.totalorder %v1376, 0
        %vm1501 = vcmp.lt.s32.totalorder %v1383, 0
        %vm1502 = vcmp.lt.s32.totalorder %v1390, 0
        %vm1503 = vcmp.lt.s32.totalorder %v1397, 0
        %vm1504 = vcmp.lt.s32.totalorder %v1404, 0
        %vm1505 = vcmp.lt.s32.totalorder %v1411, 0
        %vm1506 = vcmp.lt.s32.totalorder %v1418, 0
        %vm1507 = vcmp.lt.s32.totalorder %v1425, 0
        %vm1508 = vcmp.lt.s32.totalorder %v1432, 0
        %vm1509 = vcmp.lt.s32.totalorder %v1439, 0
        %vm1510 = vcmp.lt.s32.totalorder %v1446, 0
        %vm1511 = vmand %vm1479, %vm1447
        %vm1512 = vmand %vm1480, %vm1448
        %vm1513 = vmand %vm1481, %vm1449
        %vm1514 = vmand %vm1482, %vm1450
        %vm1515 = vmand %vm1483, %vm1451
        %vm1516 = vmand %vm1484, %vm1452
        %vm1517 = vmand %vm1485, %vm1453
        %vm1518 = vmand %vm1486, %vm1454
        %vm1519 = vmand %vm1487, %vm1455
        %vm1520 = vmand %vm1488, %vm1456
        %vm1521 = vmand %vm1489, %vm1457
        %vm1522 = vmand %vm1490, %vm1458
        %vm1523 = vmand %vm1491, %vm1459
        %vm1524 = vmand %vm1492, %vm1460
        %vm1525 = vmand %vm1493, %vm1461
        %vm1526 = vmand %vm1494, %vm1462
        %vm1527 = vmand %vm1495, %vm1463
        %vm1528 = vmand %vm1496, %vm1464
        %vm1529 = vmand %vm1497, %vm1465
        %vm1530 = vmand %vm1498, %vm1466
        %vm1531 = vmand %vm1499, %vm1467
        %vm1532 = vmand %vm1500, %vm1468
        %vm1533 = vmand %vm1501, %vm1469
        %vm1534 = vmand %vm1502, %vm1470
        %vm1535 = vmand %vm1503, %vm1471
        %vm1536 = vmand %vm1504, %vm1472
        %vm1537 = vmand %vm1505, %vm1473
        %vm1538 = vmand %vm1506, %vm1474
        %vm1539 = vmand %vm1507, %vm1475
        %vm1540 = vmand %vm1508, %vm1476
        %vm1541 = vmand %vm1509, %vm1477
        %vm1542 = vmand %vm1510, %vm1478
        %v1543 = vadd.s32 %v1229, 256
        %v1544 = vadd.s32 %v1236, 256
        %v1545 = vadd.s32 %v1243, 256
        %v1546 = vadd.s32 %v1250, 256
        %v1547 = vadd.s32 %v1257, 256
        %v1548 = vadd.s32 %v1264, 256
        %v1549 = vadd.s32 %v1271, 256
        %v1550 = vadd.s32 %v1278, 256
        %v1551 = vadd.s32 %v1285, 256
        %v1552 = vadd.s32 %v1292, 256
        %v1553 = vadd.s32 %v1299, 256
        %v1554 = vadd.s32 %v1306, 256
        %v1555 = vadd.s32 %v1313, 256
        %v1556 = vadd.s32 %v1320, 256
        %v1557 = vadd.s32 %v1327, 256
        %v1558 = vadd.s32 %v1334, 256
        %v1559 = vadd.s32 %v1341, 256
        %v1560 = vadd.s32 %v1348, 256
        %v1561 = vadd.s32 %v1355, 256
        %v1562 = vadd.s32 %v1362, 256
        %v1563 = vadd.s32 %v1369, 256
        %v1564 = vadd.s32 %v1376, 256
        %v1565 = vadd.s32 %v1383, 256
        %v1566 = vadd.s32 %v1390, 256
        %v1567 = vadd.s32 %v1397, 256
        %v1568 = vadd.s32 %v1404, 256
        %v1569 = vadd.s32 %v1411, 256
        %v1570 = vadd.s32 %v1418, 256
        %v1571 = vadd.s32 %v1425, 256
        %v1572 = vadd.s32 %v1432, 256
        %v1573 = vadd.s32 %v1439, 256
        %v1574 = vadd.s32 %v1446, 256
        %v1575 = vsel %vm1511, %v1543, %v1229
        %v1576 = vsel %vm1512, %v1544, %v1236
        %v1577 = vsel %vm1513, %v1545, %v1243
        %v1578 = vsel %vm1514, %v1546, %v1250
        %v1579 = vsel %vm1515, %v1547, %v1257
        %v1580 = vsel %vm1516, %v1548, %v1264
        %v1581 = vsel %vm1517, %v1549, %v1271
        %v1582 = vsel %vm1518, %v1550, %v1278
        %v1583 = vsel %vm1519, %v1551, %v1285
        %v1584 = vsel %vm1520, %v1552, %v1292
        %v1585 = vsel %vm1521, %v1553, %v1299
        %v1586 = vsel %vm1522, %v1554, %v1306
        %v1587 = vsel %vm1523, %v1555, %v1313
        %v1588 = vsel %vm1524, %v1556, %v1320
        %v1589 = vsel %vm1525, %v1557, %v1327
        %v1590 = vsel %vm1526, %v1558, %v1334
        %v1591 = vsel %vm1527, %v1559, %v1341
        %v1592 = vsel %vm1528, %v1560, %v1348
        %v1593 = vsel %vm1529, %v1561, %v1355
        %v1594 = vsel %vm1530, %v1562, %v1362
        %v1595 = vsel %vm1531, %v1563, %v1369
        %v1596 = vsel %vm1532, %v1564, %v1376
        %v1597 = vsel %vm1533, %v1565, %v1383
        %v1598 = vsel %vm1534, %v1566, %v1390
        %v1599 = vsel %vm1535, %v1567, %v1397
        %v1600 = vsel %vm1536, %v1568, %v1404
        %v1601 = vsel %vm1537, %v1569, %v1411
        %v1602 = vsel %vm1538, %v1570, %v1418
        %v1603 = vsel %vm1539, %v1571, %v1425
        %v1604 = vsel %vm1540, %v1572, %v1432
        %v1605 = vsel %vm1541, %v1573, %v1439
        %v1606 = vsel %vm1542, %v1574, %v1446
        %vm1607 = vcmp.eq.s32.totalorder %v1191, 0
        %vm1608 = vcmp.eq.s32.totalorder %v1192, 0
        %vm1609 = vcmp.eq.s32.totalorder %v1193, 0
        %vm1610 = vcmp.eq.s32.totalorder %v1194, 0
        %vm1611 = vcmp.eq.s32.totalorder %v1195, 0
        %vm1612 = vcmp.eq.s32.totalorder %v1196, 0
        %vm1613 = vcmp.eq.s32.totalorder %v1197, 0
        %vm1614 = vcmp.eq.s32.totalorder %v1198, 0
        %vm1615 = vcmp.eq.s32.totalorder %v1199, 0
        %vm1616 = vcmp.eq.s32.totalorder %v1200, 0
        %vm1617 = vcmp.eq.s32.totalorder %v1201, 0
        %vm1618 = vcmp.eq.s32.totalorder %v1202, 0
        %vm1619 = vcmp.eq.s32.totalorder %v1203, 0
        %vm1620 = vcmp.eq.s32.totalorder %v1204, 0
        %vm1621 = vcmp.eq.s32.totalorder %v1205, 0
        %vm1622 = vcmp.eq.s32.totalorder %v1206, 0
        %vm1623 = vcmp.eq.s32.totalorder %v1207, 0
        %vm1624 = vcmp.eq.s32.totalorder %v1208, 0
        %vm1625 = vcmp.eq.s32.totalorder %v1209, 0
        %vm1626 = vcmp.eq.s32.totalorder %v1210, 0
        %vm1627 = vcmp.eq.s32.totalorder %v1211, 0
        %vm1628 = vcmp.eq.s32.totalorder %v1212, 0
        %vm1629 = vcmp.eq.s32.totalorder %v1213, 0
        %vm1630 = vcmp.eq.s32.totalorder %v1214, 0
        %vm1631 = vcmp.eq.s32.totalorder %v1215, 0
        %vm1632 = vcmp.eq.s32.totalorder %v1216, 0
        %vm1633 = vcmp.eq.s32.totalorder %v1217, 0
        %vm1634 = vcmp.eq.s32.totalorder %v1218, 0
        %vm1635 = vcmp.eq.s32.totalorder %v1219, 0
        %vm1636 = vcmp.eq.s32.totalorder %v1220, 0
        %vm1637 = vcmp.eq.s32.totalorder %v1221, 0
        %vm1638 = vcmp.eq.s32.totalorder %v1222, 0
        %v1639 = vrot.slane %v774, 7
        %v1640 = vrot.slane %v775, 7
        %v1641 = vrot.slane %v776, 7
        %v1642 = vrot.slane %v777, 7
        %v1643 = vrot.slane %v778, 7
        %v1644 = vrot.slane %v779, 7
        %v1645 = vrot.slane %v780, 7
        %v1646 = vrot.slane %v781, 7
        %v1647 = vrot.slane %v782, 7
        %v1648 = vrot.slane %v783, 7
        %v1649 = vrot.slane %v784, 7
        %v1650 = vrot.slane %v785, 7
        %v1651 = vrot.slane %v786, 7
        %v1652 = vrot.slane %v787, 7
        %v1653 = vrot.slane %v788, 7
        %v1654 = vrot.slane %v789, 7
        %v1655 = vrot.slane %v790, 7
        %v1656 = vrot.slane %v791, 7
        %v1657 = vrot.slane %v792, 7
        %v1658 = vrot.slane %v793, 7
        %v1659 = vrot.slane %v794, 7
        %v1660 = vrot.slane %v795, 7
        %v1661 = vrot.slane %v796, 7
        %v1662 = vrot.slane %v797, 7
        %v1663 = vrot.slane %v798, 7
        %v1664 = vrot.slane %v799, 7
        %v1665 = vrot.slane %v800, 7
        %v1666 = vrot.slane %v801, 7
        %v1667 = vrot.slane %v802, 7
        %v1668 = vrot.slane %v803, 7
        %v1669 = vrot.slane %v804, 7
        %v1670 = vrot.slane %v805, 7
        %vm1671 = vcmp.lt.s32.totalorder %v807, 1
        %v1672 = vsel %vm1671, %v1669, %v1670
        %v1673 = vsel %vm1671, %v1668, %v1669
        %v1674 = vsel %vm1671, %v1667, %v1668
        %v1675 = vsel %vm1671, %v1666, %v1667
        %v1676 = vsel %vm1671, %v1665, %v1666
        %v1677 = vsel %vm1671, %v1664, %v1665
        %v1678 = vsel %vm1671, %v1663, %v1664
        %v1679 = vsel %vm1671, %v1662, %v1663
        %v1680 = vsel %vm1671, %v1661, %v1662
        %v1681 = vsel %vm1671, %v1660, %v1661
        %v1682 = vsel %vm1671, %v1659, %v1660
        %v1683 = vsel %vm1671, %v1658, %v1659
        %v1684 = vsel %vm1671, %v1657, %v1658
        %v1685 = vsel %vm1671, %v1656, %v1657
        %v1686 = vsel %vm1671, %v1655, %v1656
        %v1687 = vsel %vm1671, %v1654, %v1655
        %v1688 = vsel %vm1671, %v1653, %v1654
        %v1689 = vsel %vm1671, %v1652, %v1653
        %v1690 = vsel %vm1671, %v1651, %v1652
        %v1691 = vsel %vm1671, %v1650, %v1651
        %v1692 = vsel %vm1671, %v1649, %v1650
        %v1693 = vsel %vm1671, %v1648, %v1649
        %v1694 = vsel %vm1671, %v1647, %v1648
        %v1695 = vsel %vm1671, %v1646, %v1647
        %v1696 = vsel %vm1671, %v1645, %v1646
        %v1697 = vsel %vm1671, %v1644, %v1645
        %v1698 = vsel %vm1671, %v1643, %v1644
        %v1699 = vsel %vm1671, %v1642, %v1643
        %v1700 = vsel %vm1671, %v1641, %v1642
        %v1701 = vsel %vm1671, %v1640, %v1641
        %v1702 = vsel %vm1671, %v1639, %v1640
        %v1703 = vsel %vm1671, %v1670, %v1639
        %v1704 = vsel %vm1607, 1, 0
        %v1705 = vsel %vm1608, 1, 0
        %v1706 = vsel %vm1609, 1, 0
        %v1707 = vsel %vm1610, 1, 0
        %v1708 = vsel %vm1611, 1, 0
        %v1709 = vsel %vm1612, 1, 0
        %v1710 = vsel %vm1613, 1, 0
        %v1711 = vsel %vm1614, 1, 0
        %v1712 = vsel %vm1615, 1, 0
        %v1713 = vsel %vm1616, 1, 0
        %v1714 = vsel %vm1617, 1, 0
        %v1715 = vsel %vm1618, 1, 0
        %v1716 = vsel %vm1619, 1, 0
        %v1717 = vsel %vm1620, 1, 0
        %v1718 = vsel %vm1621, 1, 0
        %v1719 = vsel %vm1622, 1, 0
        %v1720 = vsel %vm1623, 1, 0
        %v1721 = vsel %vm1624, 1, 0
        %v1722 = vsel %vm1625, 1, 0
        %v1723 = vsel %vm1626, 1, 0
        %v1724 = vsel %vm1627, 1, 0
        %v1725 = vsel %vm1628, 1, 0
        %v1726 = vsel %vm1629, 1, 0
        %v1727 = vsel %vm1630, 1, 0
        %v1728 = vsel %vm1631, 1, 0
        %v1729 = vsel %vm1632, 1, 0
        %v1730 = vsel %vm1633, 1, 0
        %v1731 = vsel %vm1634, 1, 0
        %v1732 = vsel %vm1635, 1, 0
        %v1733 = vsel %vm1636, 1, 0
        %v1734 = vsel %vm1637, 1, 0
        %v1735 = vsel %vm1638, 1, 0
        %vm1736 = vcmp.eq.s32.totalorder %v1704, 1
        %vm1737 = vcmp.eq.s32.totalorder %v1705, 1
        %vm1738 = vcmp.eq.s32.totalorder %v1706, 1
        %vm1739 = vcmp.eq.s32.totalorder %v1707, 1
        %vm1740 = vcmp.eq.s32.totalorder %v1708, 1
        %vm1741 = vcmp.eq.s32.totalorder %v1709, 1
        %vm1742 = vcmp.eq.s32.totalorder %v1710, 1
        %vm1743 = vcmp.eq.s32.totalorder %v1711, 1
        %vm1744 = vcmp.eq.s32.totalorder %v1712, 1
        %vm1745 = vcmp.eq.s32.totalorder %v1713, 1
        %vm1746 = vcmp.eq.s32.totalorder %v1714, 1
        %vm1747 = vcmp.eq.s32.totalorder %v1715, 1
        %vm1748 = vcmp.eq.s32.totalorder %v1716, 1
        %vm1749 = vcmp.eq.s32.totalorder %v1717, 1
        %vm1750 = vcmp.eq.s32.totalorder %v1718, 1
        %vm1751 = vcmp.eq.s32.totalorder %v1719, 1
        %vm1752 = vcmp.eq.s32.totalorder %v1720, 1
        %vm1753 = vcmp.eq.s32.totalorder %v1721, 1
        %vm1754 = vcmp.eq.s32.totalorder %v1722, 1
        %vm1755 = vcmp.eq.s32.totalorder %v1723, 1
        %vm1756 = vcmp.eq.s32.totalorder %v1724, 1
        %vm1757 = vcmp.eq.s32.totalorder %v1725, 1
        %vm1758 = vcmp.eq.s32.totalorder %v1726, 1
        %vm1759 = vcmp.eq.s32.totalorder %v1727, 1
        %vm1760 = vcmp.eq.s32.totalorder %v1728, 1
        %vm1761 = vcmp.eq.s32.totalorder %v1729, 1
        %vm1762 = vcmp.eq.s32.totalorder %v1730, 1
        %vm1763 = vcmp.eq.s32.totalorder %v1731, 1
        %vm1764 = vcmp.eq.s32.totalorder %v1732, 1
        %vm1765 = vcmp.eq.s32.totalorder %v1733, 1
        %vm1766 = vcmp.eq.s32.totalorder %v1734, 1
        %vm1767 = vcmp.eq.s32.totalorder %v1735, 1
        %v1768 = vsel %vm1736, 0.0, %v1703
        %v1769 = vsel %vm1737, 0.0, %v1702
        %v1770 = vsel %vm1738, 0.0, %v1701
        %v1771 = vsel %vm1739, 0.0, %v1700
        %v1772 = vsel %vm1740, 0.0, %v1699
        %v1773 = vsel %vm1741, 0.0, %v1698
        %v1774 = vsel %vm1742, 0.0, %v1697
        %v1775 = vsel %vm1743, 0.0, %v1696
        %v1776 = vsel %vm1744, 0.0, %v1695
        %v1777 = vsel %vm1745, 0.0, %v1694
        %v1778 = vsel %vm1746, 0.0, %v1693
        %v1779 = vsel %vm1747, 0.0, %v1692
        %v1780 = vsel %vm1748, 0.0, %v1691
        %v1781 = vsel %vm1749, 0.0, %v1690
        %v1782 = vsel %vm1750, 0.0, %v1689
        %v1783 = vsel %vm1751, 0.0, %v1688
        %v1784 = vsel %vm1752, 0.0, %v1687
        %v1785 = vsel %vm1753, 0.0, %v1686
        %v1786 = vsel %vm1754, 0.0, %v1685
        %v1787 = vsel %vm1755, 0.0, %v1684
        %v1788 = vsel %vm1756, 0.0, %v1683
        %v1789 = vsel %vm1757, 0.0, %v1682
        %v1790 = vsel %vm1758, 0.0, %v1681
        %v1791 = vsel %vm1759, 0.0, %v1680
        %v1792 = vsel %vm1760, 0.0, %v1679
        %v1793 = vsel %vm1761, 0.0, %v1678
        %v1794 = vsel %vm1762, 0.0, %v1677
        %v1795 = vsel %vm1763, 0.0, %v1676
        %v1796 = vsel %vm1764, 0.0, %v1675
        %v1797 = vsel %vm1765, 0.0, %v1674
        %v1798 = vsel %vm1766, 0.0, %v1673
        %v1799 = vsel %vm1767, 0.0, %v1672
        %vm1800 = vcmp.eq.s32.totalorder %v1191, 15
        %vm1801 = vcmp.eq.s32.totalorder %v1192, 15
        %vm1802 = vcmp.eq.s32.totalorder %v1193, 15
        %vm1803 = vcmp.eq.s32.totalorder %v1194, 15
        %vm1804 = vcmp.eq.s32.totalorder %v1195, 15
        %vm1805 = vcmp.eq.s32.totalorder %v1196, 15
        %vm1806 = vcmp.eq.s32.totalorder %v1197, 15
        %vm1807 = vcmp.eq.s32.totalorder %v1198, 15
        %vm1808 = vcmp.eq.s32.totalorder %v1199, 15
        %vm1809 = vcmp.eq.s32.totalorder %v1200, 15
        %vm1810 = vcmp.eq.s32.totalorder %v1201, 15
        %vm1811 = vcmp.eq.s32.totalorder %v1202, 15
        %vm1812 = vcmp.eq.s32.totalorder %v1203, 15
        %vm1813 = vcmp.eq.s32.totalorder %v1204, 15
        %vm1814 = vcmp.eq.s32.totalorder %v1205, 15
        %vm1815 = vcmp.eq.s32.totalorder %v1206, 15
        %vm1816 = vcmp.eq.s32.totalorder %v1207, 15
        %vm1817 = vcmp.eq.s32.totalorder %v1208, 15
        %vm1818 = vcmp.eq.s32.totalorder %v1209, 15
        %vm1819 = vcmp.eq.s32.totalorder %v1210, 15
        %vm1820 = vcmp.eq.s32.totalorder %v1211, 15
        %vm1821 = vcmp.eq.s32.totalorder %v1212, 15
        %vm1822 = vcmp.eq.s32.totalorder %v1213, 15
        %vm1823 = vcmp.eq.s32.totalorder %v1214, 15
        %vm1824 = vcmp.eq.s32.totalorder %v1215, 15
        %vm1825 = vcmp.eq.s32.totalorder %v1216, 15
        %vm1826 = vcmp.eq.s32.totalorder %v1217, 15
        %vm1827 = vcmp.eq.s32.totalorder %v1218, 15
        %vm1828 = vcmp.eq.s32.totalorder %v1219, 15
        %vm1829 = vcmp.eq.s32.totalorder %v1220, 15
        %vm1830 = vcmp.eq.s32.totalorder %v1221, 15
        %vm1831 = vcmp.eq.s32.totalorder %v1222, 15
        %v1832 = vrot.slane %v774, 1
        %v1833 = vrot.slane %v775, 1
        %v1834 = vrot.slane %v776, 1
        %v1835 = vrot.slane %v777, 1
        %v1836 = vrot.slane %v778, 1
        %v1837 = vrot.slane %v779, 1
        %v1838 = vrot.slane %v780, 1
        %v1839 = vrot.slane %v781, 1
        %v1840 = vrot.slane %v782, 1
        %v1841 = vrot.slane %v783, 1
        %v1842 = vrot.slane %v784, 1
        %v1843 = vrot.slane %v785, 1
        %v1844 = vrot.slane %v786, 1
        %v1845 = vrot.slane %v787, 1
        %v1846 = vrot.slane %v788, 1
        %v1847 = vrot.slane %v789, 1
        %v1848 = vrot.slane %v790, 1
        %v1849 = vrot.slane %v791, 1
        %v1850 = vrot.slane %v792, 1
        %v1851 = vrot.slane %v793, 1
        %v1852 = vrot.slane %v794, 1
        %v1853 = vrot.slane %v795, 1
        %v1854 = vrot.slane %v796, 1
        %v1855 = vrot.slane %v797, 1
        %v1856 = vrot.slane %v798, 1
        %v1857 = vrot.slane %v799, 1
        %v1858 = vrot.slane %v800, 1
        %v1859 = vrot.slane %v801, 1
        %v1860 = vrot.slane %v802, 1
        %v1861 = vrot.slane %v803, 1
        %v1862 = vrot.slane %v804, 1
        %v1863 = vrot.slane %v805, 1
        %vm1864 = vcmp.lt.s32.totalorder %v807, 7
        %v1865 = vsel %vm1864, %v1862, %v1863
        %v1866 = vsel %vm1864, %v1861, %v1862
        %v1867 = vsel %vm1864, %v1860, %v1861
        %v1868 = vsel %vm1864, %v1859, %v1860
        %v1869 = vsel %vm1864, %v1858, %v1859
        %v1870 = vsel %vm1864, %v1857, %v1858
        %v1871 = vsel %vm1864, %v1856, %v1857
        %v1872 = vsel %vm1864, %v1855, %v1856
        %v1873 = vsel %vm1864, %v1854, %v1855
        %v1874 = vsel %vm1864, %v1853, %v1854
        %v1875 = vsel %vm1864, %v1852, %v1853
        %v1876 = vsel %vm1864, %v1851, %v1852
        %v1877 = vsel %vm1864, %v1850, %v1851
        %v1878 = vsel %vm1864, %v1849, %v1850
        %v1879 = vsel %vm1864, %v1848, %v1849
        %v1880 = vsel %vm1864, %v1847, %v1848
        %v1881 = vsel %vm1864, %v1846, %v1847
        %v1882 = vsel %vm1864, %v1845, %v1846
        %v1883 = vsel %vm1864, %v1844, %v1845
        %v1884 = vsel %vm1864, %v1843, %v1844
        %v1885 = vsel %vm1864, %v1842, %v1843
        %v1886 = vsel %vm1864, %v1841, %v1842
        %v1887 = vsel %vm1864, %v1840, %v1841
        %v1888 = vsel %vm1864, %v1839, %v1840
        %v1889 = vsel %vm1864, %v1838, %v1839
        %v1890 = vsel %vm1864, %v1837, %v1838
        %v1891 = vsel %vm1864, %v1836, %v1837
        %v1892 = vsel %vm1864, %v1835, %v1836
        %v1893 = vsel %vm1864, %v1834, %v1835
        %v1894 = vsel %vm1864, %v1833, %v1834
        %v1895 = vsel %vm1864, %v1832, %v1833
        %v1896 = vsel %vm1864, %v1863, %v1832
        %v1897 = vsel %vm1800, 1, 0
        %v1898 = vsel %vm1801, 1, 0
        %v1899 = vsel %vm1802, 1, 0
        %v1900 = vsel %vm1803, 1, 0
        %v1901 = vsel %vm1804, 1, 0
        %v1902 = vsel %vm1805, 1, 0
        %v1903 = vsel %vm1806, 1, 0
        %v1904 = vsel %vm1807, 1, 0
        %v1905 = vsel %vm1808, 1, 0
        %v1906 = vsel %vm1809, 1, 0
        %v1907 = vsel %vm1810, 1, 0
        %v1908 = vsel %vm1811, 1, 0
        %v1909 = vsel %vm1812, 1, 0
        %v1910 = vsel %vm1813, 1, 0
        %v1911 = vsel %vm1814, 1, 0
        %v1912 = vsel %vm1815, 1, 0
        %v1913 = vsel %vm1816, 1, 0
        %v1914 = vsel %vm1817, 1, 0
        %v1915 = vsel %vm1818, 1, 0
        %v1916 = vsel %vm1819, 1, 0
        %v1917 = vsel %vm1820, 1, 0
        %v1918 = vsel %vm1821, 1, 0
        %v1919 = vsel %vm1822, 1, 0
        %v1920 = vsel %vm1823, 1, 0
        %v1921 = vsel %vm1824, 1, 0
        %v1922 = vsel %vm1825, 1, 0
        %v1923 = vsel %vm1826, 1, 0
        %v1924 = vsel %vm1827, 1, 0
        %v1925 = vsel %vm1828, 1, 0
        %v1926 = vsel %vm1829, 1, 0
        %v1927 = vsel %vm1830, 1, 0
        %v1928 = vsel %vm1831, 1, 0
        %vm1929 = vcmp.eq.s32.totalorder %v1897, 1
        %vm1930 = vcmp.eq.s32.totalorder %v1898, 1
        %vm1931 = vcmp.eq.s32.totalorder %v1899, 1
        %vm1932 = vcmp.eq.s32.totalorder %v1900, 1
        %vm1933 = vcmp.eq.s32.totalorder %v1901, 1
        %vm1934 = vcmp.eq.s32.totalorder %v1902, 1
        %vm1935 = vcmp.eq.s32.totalorder %v1903, 1
        %vm1936 = vcmp.eq.s32.totalorder %v1904, 1
        %vm1937 = vcmp.eq.s32.totalorder %v1905, 1
        %vm1938 = vcmp.eq.s32.totalorder %v1906, 1
        %vm1939 = vcmp.eq.s32.totalorder %v1907, 1
        %vm1940 = vcmp.eq.s32.totalorder %v1908, 1
        %vm1941 = vcmp.eq.s32.totalorder %v1909, 1
        %vm1942 = vcmp.eq.s32.totalorder %v1910, 1
        %vm1943 = vcmp.eq.s32.totalorder %v1911, 1
        %vm1944 = vcmp.eq.s32.totalorder %v1912, 1
        %vm1945 = vcmp.eq.s32.totalorder %v1913, 1
        %vm1946 = vcmp.eq.s32.totalorder %v1914, 1
        %vm1947 = vcmp.eq.s32.totalorder %v1915, 1
        %vm1948 = vcmp.eq.s32.totalorder %v1916, 1
        %vm1949 = vcmp.eq.s32.totalorder %v1917, 1
        %vm1950 = vcmp.eq.s32.totalorder %v1918, 1
        %vm1951 = vcmp.eq.s32.totalorder %v1919, 1
        %vm1952 = vcmp.eq.s32.totalorder %v1920, 1
        %vm1953 = vcmp.eq.s32.totalorder %v1921, 1
        %vm1954 = vcmp.eq.s32.totalorder %v1922, 1
        %vm1955 = vcmp.eq.s32.totalorder %v1923, 1
        %vm1956 = vcmp.eq.s32.totalorder %v1924, 1
        %vm1957 = vcmp.eq.s32.totalorder %v1925, 1
        %vm1958 = vcmp.eq.s32.totalorder %v1926, 1
        %vm1959 = vcmp.eq.s32.totalorder %v1927, 1
        %vm1960 = vcmp.eq.s32.totalorder %v1928, 1
        %v1961 = vsel %vm1929, 0.0, %v1895
        %v1962 = vsel %vm1930, 0.0, %v1894
        %v1963 = vsel %vm1931, 0.0, %v1893
        %v1964 = vsel %vm1932, 0.0, %v1892
        %v1965 = vsel %vm1933, 0.0, %v1891
        %v1966 = vsel %vm1934, 0.0, %v1890
        %v1967 = vsel %vm1935, 0.0, %v1889
        %v1968 = vsel %vm1936, 0.0, %v1888
        %v1969 = vsel %vm1937, 0.0, %v1887
        %v1970 = vsel %vm1938, 0.0, %v1886
        %v1971 = vsel %vm1939, 0.0, %v1885
        %v1972 = vsel %vm1940, 0.0, %v1884
        %v1973 = vsel %vm1941, 0.0, %v1883
        %v1974 = vsel %vm1942, 0.0, %v1882
        %v1975 = vsel %vm1943, 0.0, %v1881
        %v1976 = vsel %vm1944, 0.0, %v1880
        %v1977 = vsel %vm1945, 0.0, %v1879
        %v1978 = vsel %vm1946, 0.0, %v1878
        %v1979 = vsel %vm1947, 0.0, %v1877
        %v1980 = vsel %vm1948, 0.0, %v1876
        %v1981 = vsel %vm1949, 0.0, %v1875
        %v1982 = vsel %vm1950, 0.0, %v1874
        %v1983 = vsel %vm1951, 0.0, %v1873
        %v1984 = vsel %vm1952, 0.0, %v1872
        %v1985 = vsel %vm1953, 0.0, %v1871
        %v1986 = vsel %vm1954, 0.0, %v1870
        %v1987 = vsel %vm1955, 0.0, %v1869
        %v1988 = vsel %vm1956, 0.0, %v1868
        %v1989 = vsel %vm1957, 0.0, %v1867
        %v1990 = vsel %vm1958, 0.0, %v1866
        %v1991 = vsel %vm1959, 0.0, %v1865
        %v1992 = vsel %vm1960, 0.0, %v1896
        %v1993 = vpack.c.bf16 %v1769, %v1768
        %v1994 = vpack.c.bf16 %v775, %v774
        %v1995 = vpack.c.bf16 %v1962, %v1961
        %v1996 = vpack.c.bf16 %v1771, %v1770
        %v1997 = vpack.c.bf16 %v777, %v776
        %v1998 = vpack.c.bf16 %v1964, %v1963
        %v1999 = vpack.c.bf16 %v1773, %v1772
        %v2000 = vpack.c.bf16 %v779, %v778
        %v2001 = vpack.c.bf16 %v1966, %v1965
        %v2002 = vpack.c.bf16 %v1775, %v1774
        %v2003 = vpack.c.bf16 %v781, %v780
        %v2004 = vpack.c.bf16 %v1968, %v1967
        %v2005 = vpack.c.bf16 %v1777, %v1776
        %v2006 = vpack.c.bf16 %v783, %v782
        %v2007 = vpack.c.bf16 %v1970, %v1969
        %v2008 = vpack.c.bf16 %v1779, %v1778
        %v2009 = vpack.c.bf16 %v785, %v784
        %v2010 = vpack.c.bf16 %v1972, %v1971
        %v2011 = vpack.c.bf16 %v1781, %v1780
        %v2012 = vpack.c.bf16 %v787, %v786
        %v2013 = vpack.c.bf16 %v1974, %v1973
        %v2014 = vpack.c.bf16 %v1783, %v1782
        %v2015 = vpack.c.bf16 %v789, %v788
        %v2016 = vpack.c.bf16 %v1976, %v1975
        %v2017 = vpack.c.bf16 %v1785, %v1784
        %v2018 = vpack.c.bf16 %v791, %v790
        %v2019 = vpack.c.bf16 %v1978, %v1977
        %v2020 = vpack.c.bf16 %v1787, %v1786
        %v2021 = vpack.c.bf16 %v793, %v792
        %v2022 = vpack.c.bf16 %v1980, %v1979
        %v2023 = vpack.c.bf16 %v1789, %v1788
        %v2024 = vpack.c.bf16 %v795, %v794
        %v2025 = vpack.c.bf16 %v1982, %v1981
        %v2026 = vpack.c.bf16 %v1791, %v1790
        %v2027 = vpack.c.bf16 %v797, %v796
        %v2028 = vpack.c.bf16 %v1984, %v1983
        %v2029 = vpack.c.bf16 %v1793, %v1792
        %v2030 = vpack.c.bf16 %v799, %v798
        %v2031 = vpack.c.bf16 %v1986, %v1985
        %v2032 = vpack.c.bf16 %v1795, %v1794
        %v2033 = vpack.c.bf16 %v801, %v800
        %v2034 = vpack.c.bf16 %v1988, %v1987
        %v2035 = vpack.c.bf16 %v1797, %v1796
        %v2036 = vpack.c.bf16 %v803, %v802
        %v2037 = vpack.c.bf16 %v1990, %v1989
        %v2038 = vpack.c.bf16 %v1799, %v1798
        %v2039 = vpack.c.bf16 %v805, %v804
        %v2040 = vpack.c.bf16 %v1992, %v1991
        %s2041 = scalar_lea.vmem [#allocation7], 192
        %v2042 = vld [vmem:[%s2041] sm:$0xf]
        %v2043 = vld [vmem:[%s2041 + $0x4] sm:$0xf]
        %v2044 = vld [vmem:[%s2041 + $0x8] sm:$0xf]
        %v2045 = vld [vmem:[%s2041 + $0xc] sm:$0xf]
        %v2046 = vld [vmem:[%s2041 + $0x10] sm:$0xf]
        %v2047 = vld [vmem:[%s2041 + $0x14] sm:$0xf]
        %v2048 = vld [vmem:[%s2041 + $0x18] sm:$0xf]
        %v2049 = vld [vmem:[%s2041 + $0x1c] sm:$0xf]
        %v2050 = vld [vmem:[%s2041 + $0x20] sm:$0xf]
        %v2051 = vld [vmem:[%s2041 + $0x24] sm:$0xf]
        %v2052 = vld [vmem:[%s2041 + $0x28] sm:$0xf]
        %v2053 = vld [vmem:[%s2041 + $0x2c] sm:$0xf]
        %v2054 = vld [vmem:[%s2041 + $0x30] sm:$0xf]
        %v2055 = vld [vmem:[%s2041 + $0x34] sm:$0xf]
        %v2056 = vld [vmem:[%s2041 + $0x38] sm:$0xf]
        %v2057 = vld [vmem:[%s2041 + $0x3c] sm:$0xf]
        %v2058 = vld [vmem:[%s2041 + $0x40] sm:$0xf]
        %v2059 = vld [vmem:[%s2041 + $0x44] sm:$0xf]
        %v2060 = vld [vmem:[%s2041 + $0x48] sm:$0xf]
        %v2061 = vld [vmem:[%s2041 + $0x4c] sm:$0xf]
        %v2062 = vld [vmem:[%s2041 + $0x50] sm:$0xf]
        %v2063 = vld [vmem:[%s2041 + $0x54] sm:$0xf]
        %v2064 = vld [vmem:[%s2041 + $0x58] sm:$0xf]
        %v2065 = vld [vmem:[%s2041 + $0x5c] sm:$0xf]
        %v2066 = vld [vmem:[%s2041 + $0x60] sm:$0xf]
        %v2067 = vld [vmem:[%s2041 + $0x64] sm:$0xf]
        %v2068 = vld [vmem:[%s2041 + $0x68] sm:$0xf]
        %v2069 = vld [vmem:[%s2041 + $0x6c] sm:$0xf]
        %v2070 = vld [vmem:[%s2041 + $0x70] sm:$0xf]
        %v2071 = vld [vmem:[%s2041 + $0x74] sm:$0xf]
        %v2072 = vld [vmem:[%s2041 + $0x78] sm:$0xf]
        %v2073 = vld [vmem:[%s2041 + $0x7c] sm:$0xf]
        %v2074 = vld [vmem:[%s2041 + $0x80] sm:$0xf]
        %v2075 = vld [vmem:[%s2041 + $0x84] sm:$0xf]
        %v2076 = vld [vmem:[%s2041 + $0x88] sm:$0xf]
        %v2077 = vld [vmem:[%s2041 + $0x8c] sm:$0xf]
        %v2078 = vld [vmem:[%s2041 + $0x90] sm:$0xf]
        %v2079 = vld [vmem:[%s2041 + $0x94] sm:$0xf]
        %v2080 = vld [vmem:[%s2041 + $0x98] sm:$0xf]
        %v2081 = vld [vmem:[%s2041 + $0x9c] sm:$0xf]
        %v2082 = vld [vmem:[%s2041 + $0xa0] sm:$0xf]
        %v2083 = vld [vmem:[%s2041 + $0xa4] sm:$0xf]
        %v2084 = vld [vmem:[%s2041 + $0xa8] sm:$0xf]
        %v2085 = vld [vmem:[%s2041 + $0xac] sm:$0xf]
        %v2086 = vld [vmem:[%s2041 + $0xb0] sm:$0xf]
        %v2087 = vld [vmem:[%s2041 + $0xb4] sm:$0xf]
        %v2088 = vld [vmem:[%s2041 + $0xb8] sm:$0xf]
        %v2089 = vld [vmem:[%s2041 + $0xbc] sm:$0xf]
        %vm2090 = vcmp.lt.s32.totalorder %v1575, 16
        %vm2091 = vcmp.lt.s32.totalorder %v1576, 16
        %vm2092 = vcmp.lt.s32.totalorder %v1577, 16
        %vm2093 = vcmp.lt.s32.totalorder %v1578, 16
        %vm2094 = vcmp.lt.s32.totalorder %v1579, 16
        %vm2095 = vcmp.lt.s32.totalorder %v1580, 16
        %vm2096 = vcmp.lt.s32.totalorder %v1581, 16
        %vm2097 = vcmp.lt.s32.totalorder %v1582, 16
        %vm2098 = vcmp.lt.s32.totalorder %v1583, 16
        %vm2099 = vcmp.lt.s32.totalorder %v1584, 16
        %vm2100 = vcmp.lt.s32.totalorder %v1585, 16
        %vm2101 = vcmp.lt.s32.totalorder %v1586, 16
        %vm2102 = vcmp.lt.s32.totalorder %v1587, 16
        %vm2103 = vcmp.lt.s32.totalorder %v1588, 16
        %vm2104 = vcmp.lt.s32.totalorder %v1589, 16
        %vm2105 = vcmp.lt.s32.totalorder %v1590, 16
        %vm2106 = vcmp.lt.s32.totalorder %v1591, 16
        %vm2107 = vcmp.lt.s32.totalorder %v1592, 16
        %vm2108 = vcmp.lt.s32.totalorder %v1593, 16
        %vm2109 = vcmp.lt.s32.totalorder %v1594, 16
        %vm2110 = vcmp.lt.s32.totalorder %v1595, 16
        %vm2111 = vcmp.lt.s32.totalorder %v1596, 16
        %vm2112 = vcmp.lt.s32.totalorder %v1597, 16
        %vm2113 = vcmp.lt.s32.totalorder %v1598, 16
        %vm2114 = vcmp.lt.s32.totalorder %v1599, 16
        %vm2115 = vcmp.lt.s32.totalorder %v1600, 16
        %vm2116 = vcmp.lt.s32.totalorder %v1601, 16
        %vm2117 = vcmp.lt.s32.totalorder %v1602, 16
        %vm2118 = vcmp.lt.s32.totalorder %v1603, 16
        %vm2119 = vcmp.lt.s32.totalorder %v1604, 16
        %vm2120 = vcmp.lt.s32.totalorder %v1605, 16
        %vm2121 = vcmp.lt.s32.totalorder %v1606, 16
        %v2122 = vsel %vm2090, 1, 0
        %v2123 = vsel %vm2091, 1, 0
        %v2124 = vsel %vm2092, 1, 0
        %v2125 = vsel %vm2093, 1, 0
        %v2126 = vsel %vm2094, 1, 0
        %v2127 = vsel %vm2095, 1, 0
        %v2128 = vsel %vm2096, 1, 0
        %v2129 = vsel %vm2097, 1, 0
        %v2130 = vsel %vm2098, 1, 0
        %v2131 = vsel %vm2099, 1, 0
        %v2132 = vsel %vm2100, 1, 0
        %v2133 = vsel %vm2101, 1, 0
        %v2134 = vsel %vm2102, 1, 0
        %v2135 = vsel %vm2103, 1, 0
        %v2136 = vsel %vm2104, 1, 0
        %v2137 = vsel %vm2105, 1, 0
        %v2138 = vsel %vm2106, 1, 0
        %v2139 = vsel %vm2107, 1, 0
        %v2140 = vsel %vm2108, 1, 0
        %v2141 = vsel %vm2109, 1, 0
        %v2142 = vsel %vm2110, 1, 0
        %v2143 = vsel %vm2111, 1, 0
        %v2144 = vsel %vm2112, 1, 0
        %v2145 = vsel %vm2113, 1, 0
        %v2146 = vsel %vm2114, 1, 0
        %v2147 = vsel %vm2115, 1, 0
        %v2148 = vsel %vm2116, 1, 0
        %v2149 = vsel %vm2117, 1, 0
        %v2150 = vsel %vm2118, 1, 0
        %v2151 = vsel %vm2119, 1, 0
        %v2152 = vsel %vm2120, 1, 0
        %v2153 = vsel %vm2121, 1, 0
        %vm2154 = vcmp.eq.s32.totalorder %v2122, 1
        %vm2155 = vcmp.eq.s32.totalorder %v2123, 1
        %vm2156 = vcmp.eq.s32.totalorder %v2124, 1
        %vm2157 = vcmp.eq.s32.totalorder %v2125, 1
        %vm2158 = vcmp.eq.s32.totalorder %v2126, 1
        %vm2159 = vcmp.eq.s32.totalorder %v2127, 1
        %vm2160 = vcmp.eq.s32.totalorder %v2128, 1
        %vm2161 = vcmp.eq.s32.totalorder %v2129, 1
        %vm2162 = vcmp.eq.s32.totalorder %v2130, 1
        %vm2163 = vcmp.eq.s32.totalorder %v2131, 1
        %vm2164 = vcmp.eq.s32.totalorder %v2132, 1
        %vm2165 = vcmp.eq.s32.totalorder %v2133, 1
        %vm2166 = vcmp.eq.s32.totalorder %v2134, 1
        %vm2167 = vcmp.eq.s32.totalorder %v2135, 1
        %vm2168 = vcmp.eq.s32.totalorder %v2136, 1
        %vm2169 = vcmp.eq.s32.totalorder %v2137, 1
        %vm2170 = vcmp.eq.s32.totalorder %v2138, 1
        %vm2171 = vcmp.eq.s32.totalorder %v2139, 1
        %vm2172 = vcmp.eq.s32.totalorder %v2140, 1
        %vm2173 = vcmp.eq.s32.totalorder %v2141, 1
        %vm2174 = vcmp.eq.s32.totalorder %v2142, 1
        %vm2175 = vcmp.eq.s32.totalorder %v2143, 1
        %vm2176 = vcmp.eq.s32.totalorder %v2144, 1
        %vm2177 = vcmp.eq.s32.totalorder %v2145, 1
        %vm2178 = vcmp.eq.s32.totalorder %v2146, 1
        %vm2179 = vcmp.eq.s32.totalorder %v2147, 1
        %vm2180 = vcmp.eq.s32.totalorder %v2148, 1
        %vm2181 = vcmp.eq.s32.totalorder %v2149, 1
        %vm2182 = vcmp.eq.s32.totalorder %v2150, 1
        %vm2183 = vcmp.eq.s32.totalorder %v2151, 1
        %vm2184 = vcmp.eq.s32.totalorder %v2152, 1
        %vm2185 = vcmp.eq.s32.totalorder %v2153, 1
        %v2186 = vsel %vm2154, 0.0, %v1798
        %v2187 = vsel %vm2154, 0.0, %v804
        %v2188 = vsel %vm2154, 0.0, %v1991
        %v2189 = vsel %vm2155, 0.0, %v1799
        %v2190 = vsel %vm2155, 0.0, %v805
        %v2191 = vsel %vm2155, 0.0, %v1992
        %v2192 = vsel %vm2156, 0.0, %v1768
        %v2193 = vsel %vm2156, 0.0, %v774
        %v2194 = vsel %vm2156, 0.0, %v1961
        %v2195 = vsel %vm2157, 0.0, %v1769
        %v2196 = vsel %vm2157, 0.0, %v775
        %v2197 = vsel %vm2157, 0.0, %v1962
        %v2198 = vsel %vm2158, 0.0, %v1770
        %v2199 = vsel %vm2158, 0.0, %v776
        %v2200 = vsel %vm2158, 0.0, %v1963
        %v2201 = vsel %vm2159, 0.0, %v1771
        %v2202 = vsel %vm2159, 0.0, %v777
        %v2203 = vsel %vm2159, 0.0, %v1964
        %v2204 = vsel %vm2160, 0.0, %v1772
        %v2205 = vsel %vm2160, 0.0, %v778
        %v2206 = vsel %vm2160, 0.0, %v1965
        %v2207 = vsel %vm2161, 0.0, %v1773
        %v2208 = vsel %vm2161, 0.0, %v779
        %v2209 = vsel %vm2161, 0.0, %v1966
        %v2210 = vsel %vm2162, 0.0, %v1774
        %v2211 = vsel %vm2162, 0.0, %v780
        %v2212 = vsel %vm2162, 0.0, %v1967
        %v2213 = vsel %vm2163, 0.0, %v1775
        %v2214 = vsel %vm2163, 0.0, %v781
        %v2215 = vsel %vm2163, 0.0, %v1968
        %v2216 = vsel %vm2164, 0.0, %v1776
        %v2217 = vsel %vm2164, 0.0, %v782
        %v2218 = vsel %vm2164, 0.0, %v1969
        %v2219 = vsel %vm2165, 0.0, %v1777
        %v2220 = vsel %vm2165, 0.0, %v783
        %v2221 = vsel %vm2165, 0.0, %v1970
        %v2222 = vsel %vm2166, 0.0, %v1778
        %v2223 = vsel %vm2166, 0.0, %v784
        %v2224 = vsel %vm2166, 0.0, %v1971
        %v2225 = vsel %vm2167, 0.0, %v1779
        %v2226 = vsel %vm2167, 0.0, %v785
        %v2227 = vsel %vm2167, 0.0, %v1972
        %v2228 = vsel %vm2168, 0.0, %v1780
        %v2229 = vsel %vm2168, 0.0, %v786
        %v2230 = vsel %vm2168, 0.0, %v1973
        %v2231 = vsel %vm2169, 0.0, %v1781
        %v2232 = vsel %vm2169, 0.0, %v787
        %v2233 = vsel %vm2169, 0.0, %v1974
        %v2234 = vsel %vm2170, 0.0, %v1782
        %v2235 = vsel %vm2170, 0.0, %v788
        %v2236 = vsel %vm2170, 0.0, %v1975
        %v2237 = vsel %vm2171, 0.0, %v1783
        %v2238 = vsel %vm2171, 0.0, %v789
        %v2239 = vsel %vm2171, 0.0, %v1976
        %v2240 = vsel %vm2172, 0.0, %v1784
        %v2241 = vsel %vm2172, 0.0, %v790
        %v2242 = vsel %vm2172, 0.0, %v1977
        %v2243 = vsel %vm2173, 0.0, %v1785
        %v2244 = vsel %vm2173, 0.0, %v791
        %v2245 = vsel %vm2173, 0.0, %v1978
        %v2246 = vsel %vm2174, 0.0, %v1786
        %v2247 = vsel %vm2174, 0.0, %v792
        %v2248 = vsel %vm2174, 0.0, %v1979
        %v2249 = vsel %vm2175, 0.0, %v1787
        %v2250 = vsel %vm2175, 0.0, %v793
        %v2251 = vsel %vm2175, 0.0, %v1980
        %v2252 = vsel %vm2176, 0.0, %v1788
        %v2253 = vsel %vm2176, 0.0, %v794
        %v2254 = vsel %vm2176, 0.0, %v1981
        %v2255 = vsel %vm2177, 0.0, %v1789
        %v2256 = vsel %vm2177, 0.0, %v795
        %v2257 = vsel %vm2177, 0.0, %v1982
        %v2258 = vsel %vm2178, 0.0, %v1790
        %v2259 = vsel %vm2178, 0.0, %v796
        %v2260 = vsel %vm2178, 0.0, %v1983
        %v2261 = vsel %vm2179, 0.0, %v1791
        %v2262 = vsel %vm2179, 0.0, %v797
        %v2263 = vsel %vm2179, 0.0, %v1984
        %v2264 = vsel %vm2180, 0.0, %v1792
        %v2265 = vsel %vm2180, 0.0, %v798
        %v2266 = vsel %vm2180, 0.0, %v1985
        %v2267 = vsel %vm2181, 0.0, %v1793
        %v2268 = vsel %vm2181, 0.0, %v799
        %v2269 = vsel %vm2181, 0.0, %v1986
        %v2270 = vsel %vm2182, 0.0, %v1794
        %v2271 = vsel %vm2182, 0.0, %v800
        %v2272 = vsel %vm2182, 0.0, %v1987
        %v2273 = vsel %vm2183, 0.0, %v1795
        %v2274 = vsel %vm2183, 0.0, %v801
        %v2275 = vsel %vm2183, 0.0, %v1988
        %v2276 = vsel %vm2184, 0.0, %v1796
        %v2277 = vsel %vm2184, 0.0, %v802
        %v2278 = vsel %vm2184, 0.0, %v1989
        %v2279 = vsel %vm2185, 0.0, %v1797
        %v2280 = vsel %vm2185, 0.0, %v803
        %v2281 = vsel %vm2185, 0.0, %v1990
        %v2282 = vpack.c.bf16 %v2189, %v2186
        %v2283 = vpack.c.bf16 %v2190, %v2187
        %v2284 = vpack.c.bf16 %v2191, %v2188
        %v2285 = vpack.c.bf16 %v2195, %v2192
        %v2286 = vpack.c.bf16 %v2196, %v2193
        %v2287 = vpack.c.bf16 %v2197, %v2194
        %v2288 = vpack.c.bf16 %v2201, %v2198
        %v2289 = vpack.c.bf16 %v2202, %v2199
        %v2290 = vpack.c.bf16 %v2203, %v2200
        %v2291 = vpack.c.bf16 %v2207, %v2204
        %v2292 = vpack.c.bf16 %v2208, %v2205
        %v2293 = vpack.c.bf16 %v2209, %v2206
        %v2294 = vpack.c.bf16 %v2213, %v2210
        %v2295 = vpack.c.bf16 %v2214, %v2211
        %v2296 = vpack.c.bf16 %v2215, %v2212
        %v2297 = vpack.c.bf16 %v2219, %v2216
        %v2298 = vpack.c.bf16 %v2220, %v2217
        %v2299 = vpack.c.bf16 %v2221, %v2218
        %v2300 = vpack.c.bf16 %v2225, %v2222
        %v2301 = vpack.c.bf16 %v2226, %v2223
        %v2302 = vpack.c.bf16 %v2227, %v2224
        %v2303 = vpack.c.bf16 %v2231, %v2228
        %v2304 = vpack.c.bf16 %v2232, %v2229
        %v2305 = vpack.c.bf16 %v2233, %v2230
        %v2306 = vpack.c.bf16 %v2237, %v2234
        %v2307 = vpack.c.bf16 %v2238, %v2235
        %v2308 = vpack.c.bf16 %v2239, %v2236
        %v2309 = vpack.c.bf16 %v2243, %v2240
        %v2310 = vpack.c.bf16 %v2244, %v2241
        %v2311 = vpack.c.bf16 %v2245, %v2242
        %v2312 = vpack.c.bf16 %v2249, %v2246
        %v2313 = vpack.c.bf16 %v2250, %v2247
        %v2314 = vpack.c.bf16 %v2251, %v2248
        %v2315 = vpack.c.bf16 %v2255, %v2252
        %v2316 = vpack.c.bf16 %v2256, %v2253
        %v2317 = vpack.c.bf16 %v2257, %v2254
        %v2318 = vpack.c.bf16 %v2261, %v2258
        %v2319 = vpack.c.bf16 %v2262, %v2259
        %v2320 = vpack.c.bf16 %v2263, %v2260
        %v2321 = vpack.c.bf16 %v2267, %v2264
        %v2322 = vpack.c.bf16 %v2268, %v2265
        %v2323 = vpack.c.bf16 %v2269, %v2266
        %v2324 = vpack.c.bf16 %v2273, %v2270
        %v2325 = vpack.c.bf16 %v2274, %v2271
        %v2326 = vpack.c.bf16 %v2275, %v2272
        %v2327 = vpack.c.bf16 %v2279, %v2276
        %v2328 = vpack.c.bf16 %v2280, %v2277
        %v2329 = vpack.c.bf16 %v2281, %v2278
        %v2330 = vld [vmem:[#allocation7] sm:$0xf]
        %v2331 = vld [vmem:[#allocation7 + $0x4] sm:$0xf]
        %v2332 = vld [vmem:[#allocation7 + $0x8] sm:$0xf]
        %v2333 = vld [vmem:[#allocation7 + $0xc] sm:$0xf]
        %v2334 = vld [vmem:[#allocation7 + $0x10] sm:$0xf]
        %v2335 = vld [vmem:[#allocation7 + $0x14] sm:$0xf]
        %v2336 = vld [vmem:[#allocation7 + $0x18] sm:$0xf]
        %v2337 = vld [vmem:[#allocation7 + $0x1c] sm:$0xf]
        %v2338 = vld [vmem:[#allocation7 + $0x20] sm:$0xf]
        %v2339 = vld [vmem:[#allocation7 + $0x24] sm:$0xf]
        %v2340 = vld [vmem:[#allocation7 + $0x28] sm:$0xf]
        %v2341 = vld [vmem:[#allocation7 + $0x2c] sm:$0xf]
        %v2342 = vld [vmem:[#allocation7 + $0x30] sm:$0xf]
        %v2343 = vld [vmem:[#allocation7 + $0x34] sm:$0xf]
        %v2344 = vld [vmem:[#allocation7 + $0x38] sm:$0xf]
        %v2345 = vld [vmem:[#allocation7 + $0x3c] sm:$0xf]
        %v2346 = vld [vmem:[#allocation7 + $0x40] sm:$0xf]
        %v2347 = vld [vmem:[#allocation7 + $0x44] sm:$0xf]
        %v2348 = vld [vmem:[#allocation7 + $0x48] sm:$0xf]
        %v2349 = vld [vmem:[#allocation7 + $0x4c] sm:$0xf]
        %v2350 = vld [vmem:[#allocation7 + $0x50] sm:$0xf]
        %v2351 = vld [vmem:[#allocation7 + $0x54] sm:$0xf]
        %v2352 = vld [vmem:[#allocation7 + $0x58] sm:$0xf]
        %v2353 = vld [vmem:[#allocation7 + $0x5c] sm:$0xf]
        %v2354 = vld [vmem:[#allocation7 + $0x60] sm:$0xf]
        %v2355 = vld [vmem:[#allocation7 + $0x64] sm:$0xf]
        %v2356 = vld [vmem:[#allocation7 + $0x68] sm:$0xf]
        %v2357 = vld [vmem:[#allocation7 + $0x6c] sm:$0xf]
        %v2358 = vld [vmem:[#allocation7 + $0x70] sm:$0xf]
        %v2359 = vld [vmem:[#allocation7 + $0x74] sm:$0xf]
        %v2360 = vld [vmem:[#allocation7 + $0x78] sm:$0xf]
        %v2361 = vld [vmem:[#allocation7 + $0x7c] sm:$0xf]
        %v2362 = vld [vmem:[#allocation7 + $0x80] sm:$0xf]
        %v2363 = vld [vmem:[#allocation7 + $0x84] sm:$0xf]
        %v2364 = vld [vmem:[#allocation7 + $0x88] sm:$0xf]
        %v2365 = vld [vmem:[#allocation7 + $0x8c] sm:$0xf]
        %v2366 = vld [vmem:[#allocation7 + $0x90] sm:$0xf]
        %v2367 = vld [vmem:[#allocation7 + $0x94] sm:$0xf]
        %v2368 = vld [vmem:[#allocation7 + $0x98] sm:$0xf]
        %v2369 = vld [vmem:[#allocation7 + $0x9c] sm:$0xf]
        %v2370 = vld [vmem:[#allocation7 + $0xa0] sm:$0xf]
        %v2371 = vld [vmem:[#allocation7 + $0xa4] sm:$0xf]
        %v2372 = vld [vmem:[#allocation7 + $0xa8] sm:$0xf]
        %v2373 = vld [vmem:[#allocation7 + $0xac] sm:$0xf]
        %v2374 = vld [vmem:[#allocation7 + $0xb0] sm:$0xf]
        %v2375 = vld [vmem:[#allocation7 + $0xb4] sm:$0xf]
        %v2376 = vld [vmem:[#allocation7 + $0xb8] sm:$0xf]
        %v2377 = vld [vmem:[#allocation7 + $0xbc] sm:$0xf]
        %v2426 = vunpack.c.l.b16 %v2330
        %v2427 = vunpack.c.l.b16 %v2331
        %v2428 = vunpack.c.l.b16 %v2332
        %v2429 = vunpack.c.l.b16 %v2333
        %v2430 = vunpack.c.l.b16 %v2334
        %v2431 = vunpack.c.l.b16 %v2335
        %v2432 = vunpack.c.l.b16 %v2336
        %v2433 = vunpack.c.l.b16 %v2337
        %v2434 = vunpack.c.l.b16 %v2338
        %v2435 = vunpack.c.l.b16 %v2339
        %v2436 = vunpack.c.l.b16 %v2340
        %v2437 = vunpack.c.l.b16 %v2341
        %v2438 = vunpack.c.l.b16 %v2342
        %v2439 = vunpack.c.l.b16 %v2343
        %v2440 = vunpack.c.l.b16 %v2344
        %v2441 = vunpack.c.l.b16 %v2345
        %v2442 = vunpack.c.l.b16 %v2346
        %v2443 = vunpack.c.l.b16 %v2347
        %v2444 = vunpack.c.l.b16 %v2348
        %v2445 = vunpack.c.l.b16 %v2349
        %v2446 = vunpack.c.l.b16 %v2350
        %v2447 = vunpack.c.l.b16 %v2351
        %v2448 = vunpack.c.l.b16 %v2352
        %v2449 = vunpack.c.l.b16 %v2353
        %v2450 = vunpack.c.l.b16 %v2354
        %v2451 = vunpack.c.l.b16 %v2355
        %v2452 = vunpack.c.l.b16 %v2356
        %v2453 = vunpack.c.l.b16 %v2357
        %v2454 = vunpack.c.l.b16 %v2358
        %v2455 = vunpack.c.l.b16 %v2359
        %v2456 = vunpack.c.l.b16 %v2360
        %v2457 = vunpack.c.l.b16 %v2361
        %v2458 = vunpack.c.l.b16 %v2362
        %v2459 = vunpack.c.l.b16 %v2363
        %v2460 = vunpack.c.l.b16 %v2364
        %v2461 = vunpack.c.l.b16 %v2365
        %v2462 = vunpack.c.l.b16 %v2366
        %v2463 = vunpack.c.l.b16 %v2367
        %v2464 = vunpack.c.l.b16 %v2368
        %v2465 = vunpack.c.l.b16 %v2369
        %v2466 = vunpack.c.l.b16 %v2370
        %v2467 = vunpack.c.l.b16 %v2371
        %v2468 = vunpack.c.l.b16 %v2372
        %v2469 = vunpack.c.l.b16 %v2373
        %v2470 = vunpack.c.l.b16 %v2374
        %v2471 = vunpack.c.l.b16 %v2375
        %v2472 = vunpack.c.l.b16 %v2376
        %v2473 = vunpack.c.l.b16 %v2377
        %v2474 = vpack.c.b16 %v2427, %v2426
        %v2475 = vpack.c.b16 %v2429, %v2428
        %v2476 = vpack.c.b16 %v2431, %v2430
        %v2477 = vpack.c.b16 %v2433, %v2432
        %v2478 = vpack.c.b16 %v2435, %v2434
        %v2479 = vpack.c.b16 %v2437, %v2436
        %v2480 = vpack.c.b16 %v2439, %v2438
        %v2481 = vpack.c.b16 %v2441, %v2440
        %v2482 = vpack.c.b16 %v2443, %v2442
        %v2483 = vpack.c.b16 %v2445, %v2444
        %v2484 = vpack.c.b16 %v2447, %v2446
        %v2485 = vpack.c.b16 %v2449, %v2448
        %v2486 = vpack.c.b16 %v2451, %v2450
        %v2487 = vpack.c.b16 %v2453, %v2452
        %v2488 = vpack.c.b16 %v2455, %v2454
        %v2489 = vpack.c.b16 %v2457, %v2456
        %v2490 = vpack.c.b16 %v2459, %v2458
        %v2491 = vpack.c.b16 %v2461, %v2460
        %v2492 = vpack.c.b16 %v2463, %v2462
        %v2493 = vpack.c.b16 %v2465, %v2464
        %v2494 = vpack.c.b16 %v2467, %v2466
        %v2495 = vpack.c.b16 %v2469, %v2468
        %v2496 = vpack.c.b16 %v2471, %v2470
        %v2497 = vpack.c.b16 %v2473, %v2472
        %2522 = vmatprep.subr.bf16.mxu0 0
        %2523 = vmatpush1.bf16.msra.mxu0 %v2481
        %2524 = vmatprep.subr.bf16.mxu0 0
        %2525 = vmatpush1.bf16.msra.mxu0 %v2480
        %2526 = vmatprep.subr.bf16.mxu0 0
        %2527 = vmatpush1.bf16.msra.mxu0 %v2479
        %2528 = vmatprep.subr.bf16.mxu0 0
        %2529 = vmatpush1.bf16.msra.mxu0 %v2478
        %2530 = vmatprep.subr.bf16.mxu0 0
        %2531 = vmatpush1.bf16.msra.mxu0 %v2477
        %2532 = vmatprep.subr.bf16.mxu0 0
        %2533 = vmatpush1.bf16.msra.mxu0 %v2476
        %2534 = vmatprep.subr.bf16.mxu0 0
        %2535 = vmatpush1.bf16.msra.mxu0 %v2475
        %2536 = vmatprep.subr.bf16.mxu0 0
        %2537 = vmatpush1.bf16.msra.mxu0 %v2474
        %2538 = vmatprep.subr.bf16.mxu0 0
        %2539 = vmatpush2.bf16.msra.mxu0 %v2489
        %2540 = vmatprep.subr.bf16.mxu0 0
        %2541 = vmatpush2.bf16.msra.mxu0 %v2488
        %2542 = vmatprep.subr.bf16.mxu0 0
        %2543 = vmatpush2.bf16.msra.mxu0 %v2487
        %2544 = vmatprep.subr.bf16.mxu0 0
        %2545 = vmatpush2.bf16.msra.mxu0 %v2486
        %2546 = vmatprep.subr.bf16.mxu0 0
        %2547 = vmatpush2.bf16.msra.mxu0 %v2485
        %2548 = vmatprep.subr.bf16.mxu0 0
        %2549 = vmatpush2.bf16.msra.mxu0 %v2484
        %2550 = vmatprep.subr.bf16.mxu0 0
        %2551 = vmatpush2.bf16.msra.mxu0 %v2483
        %2552 = vmatprep.subr.bf16.mxu0 0
        %2553 = vmatpush2.bf16.msra.mxu0 %v2482
        %2554 = vmatprep.mubr.bf16.mxu0 %v2283
        %2555 = vmatmul.mubr.bf16.gmra.mxu0 %v2282
        %v2556 = vpop.f32.mrf.mxu0
        %v2557 = vadd.f32 0.0, %v2556
        %v2558 = vpop.f32.mrf.mxu0
        %v2559 = vpop.f32.mrf.mxu0
        %v2560 = vadd.f32 0.0, %v2559
        %v2561 = vpop.f32.mrf.mxu0
        %2562 = vmatprep.mubr.bf16.mxu0 %v2286
        %2563 = vmatmul.mubr.bf16.gmra.mxu0 %v2285
        %v2564 = vpop.f32.mrf.mxu0
        %v2565 = vadd.f32 0.0, %v2564
        %v2566 = vpop.f32.mrf.mxu0
        %v2567 = vpop.f32.mrf.mxu0
        %v2568 = vadd.f32 0.0, %v2567
        %v2569 = vpop.f32.mrf.mxu0
        %2570 = vmatprep.mubr.bf16.mxu0 %v2289
        %2571 = vmatmul.mubr.bf16.gmra.mxu0 %v2288
        %v2572 = vpop.f32.mrf.mxu0
        %v2573 = vadd.f32 0.0, %v2572
        %v2574 = vpop.f32.mrf.mxu0
        %v2575 = vpop.f32.mrf.mxu0
        %v2576 = vadd.f32 0.0, %v2575
        %v2577 = vpop.f32.mrf.mxu0
        %2578 = vmatprep.mubr.bf16.mxu0 %v2292
        %2579 = vmatmul.mubr.bf16.gmra.mxu0 %v2291
        %v2580 = vpop.f32.mrf.mxu0
        %v2581 = vadd.f32 0.0, %v2580
        %v2582 = vpop.f32.mrf.mxu0
        %v2583 = vpop.f32.mrf.mxu0
        %v2584 = vadd.f32 0.0, %v2583
        %v2585 = vpop.f32.mrf.mxu0
        %2586 = vmatprep.mubr.bf16.mxu0 %v2295
        %2587 = vmatmul.mubr.bf16.gmra.mxu0 %v2294
        %v2588 = vpop.f32.mrf.mxu0
        %v2589 = vadd.f32 0.0, %v2588
        %v2590 = vpop.f32.mrf.mxu0
        %v2591 = vpop.f32.mrf.mxu0
        %v2592 = vadd.f32 0.0, %v2591
        %v2593 = vpop.f32.mrf.mxu0
        %2594 = vmatprep.mubr.bf16.mxu0 %v2298
        %2595 = vmatmul.mubr.bf16.gmra.mxu0 %v2297
        %v2596 = vpop.f32.mrf.mxu0
        %v2597 = vadd.f32 0.0, %v2596
        %v2598 = vpop.f32.mrf.mxu0
        %v2599 = vpop.f32.mrf.mxu0
        %v2600 = vadd.f32 0.0, %v2599
        %v2601 = vpop.f32.mrf.mxu0
        %2602 = vmatprep.mubr.bf16.mxu0 %v2301
        %2603 = vmatmul.mubr.bf16.gmra.mxu0 %v2300
        %v2604 = vpop.f32.mrf.mxu0
        %v2605 = vadd.f32 0.0, %v2604
        %v2606 = vpop.f32.mrf.mxu0
        %v2607 = vpop.f32.mrf.mxu0
        %v2608 = vadd.f32 0.0, %v2607
        %v2609 = vpop.f32.mrf.mxu0
        %2610 = vmatprep.mubr.bf16.mxu0 %v2304
        %2611 = vmatmul.mubr.bf16.gmra.mxu0 %v2303
        %v2612 = vpop.f32.mrf.mxu0
        %v2613 = vadd.f32 0.0, %v2612
        %v2614 = vpop.f32.mrf.mxu0
        %v2615 = vpop.f32.mrf.mxu0
        %v2616 = vadd.f32 0.0, %v2615
        %v2617 = vpop.f32.mrf.mxu0
        %2618 = vmatprep.mubr.bf16.mxu0 %v2307
        %2619 = vmatmul.mubr.bf16.gmra.mxu0 %v2306
        %v2620 = vpop.f32.mrf.mxu0
        %v2621 = vadd.f32 0.0, %v2620
        %v2622 = vpop.f32.mrf.mxu0
        %v2623 = vpop.f32.mrf.mxu0
        %v2624 = vadd.f32 0.0, %v2623
        %v2625 = vpop.f32.mrf.mxu0
        %2626 = vmatprep.mubr.bf16.mxu0 %v2310
        %2627 = vmatmul.mubr.bf16.gmra.mxu0 %v2309
        %v2628 = vpop.f32.mrf.mxu0
        %v2629 = vadd.f32 0.0, %v2628
        %v2630 = vpop.f32.mrf.mxu0
        %v2631 = vpop.f32.mrf.mxu0
        %v2632 = vadd.f32 0.0, %v2631
        %v2633 = vpop.f32.mrf.mxu0
        %2634 = vmatprep.mubr.bf16.mxu0 %v2313
        %2635 = vmatmul.mubr.bf16.gmra.mxu0 %v2312
        %v2636 = vpop.f32.mrf.mxu0
        %v2637 = vadd.f32 0.0, %v2636
        %v2638 = vpop.f32.mrf.mxu0
        %v2639 = vpop.f32.mrf.mxu0
        %v2640 = vadd.f32 0.0, %v2639
        %v2641 = vpop.f32.mrf.mxu0
        %2642 = vmatprep.mubr.bf16.mxu0 %v2316
        %2643 = vmatmul.mubr.bf16.gmra.mxu0 %v2315
        %v2644 = vpop.f32.mrf.mxu0
        %v2645 = vadd.f32 0.0, %v2644
        %v2646 = vpop.f32.mrf.mxu0
        %v2647 = vpop.f32.mrf.mxu0
        %v2648 = vadd.f32 0.0, %v2647
        %v2649 = vpop.f32.mrf.mxu0
        %2650 = vmatprep.mubr.bf16.mxu0 %v2319
        %2651 = vmatmul.mubr.bf16.gmra.mxu0 %v2318
        %v2652 = vpop.f32.mrf.mxu0
        %v2653 = vadd.f32 0.0, %v2652
        %v2654 = vpop.f32.mrf.mxu0
        %v2655 = vpop.f32.mrf.mxu0
        %v2656 = vadd.f32 0.0, %v2655
        %v2657 = vpop.f32.mrf.mxu0
        %2658 = vmatprep.mubr.bf16.mxu0 %v2322
        %2659 = vmatmul.mubr.bf16.gmra.mxu0 %v2321
        %v2660 = vpop.f32.mrf.mxu0
        %v2661 = vadd.f32 0.0, %v2660
        %v2662 = vpop.f32.mrf.mxu0
        %v2663 = vpop.f32.mrf.mxu0
        %v2664 = vadd.f32 0.0, %v2663
        %v2665 = vpop.f32.mrf.mxu0
        %2666 = vmatprep.mubr.bf16.mxu0 %v2325
        %2667 = vmatmul.mubr.bf16.gmra.mxu0 %v2324
        %v2668 = vpop.f32.mrf.mxu0
        %v2669 = vadd.f32 0.0, %v2668
        %v2670 = vpop.f32.mrf.mxu0
        %v2671 = vpop.f32.mrf.mxu0
        %v2672 = vadd.f32 0.0, %v2671
        %v2673 = vpop.f32.mrf.mxu0
        %2674 = vmatprep.mubr.bf16.mxu0 %v2328
        %2675 = vmatmul.mubr.bf16.gmra.mxu0 %v2327
        %v2676 = vpop.f32.mrf.mxu0
        %v2677 = vadd.f32 0.0, %v2676
        %v2678 = vpop.f32.mrf.mxu0
        %v2679 = vpop.f32.mrf.mxu0
        %v2680 = vadd.f32 0.0, %v2679
        %v2681 = vpop.f32.mrf.mxu0
        %2682 = vdwg.mxu0
        %2683 = vmatprep.subr.bf16.mxu0 0
        %2684 = vmatpush1.bf16.msra.mxu0 %v2497
        %2685 = vmatprep.subr.bf16.mxu0 0
        %2686 = vmatpush1.bf16.msra.mxu0 %v2496
        %2687 = vmatprep.subr.bf16.mxu0 0
        %2688 = vmatpush1.bf16.msra.mxu0 %v2495
        %2689 = vmatprep.subr.bf16.mxu0 0
        %2690 = vmatpush1.bf16.msra.mxu0 %v2494
        %2691 = vmatprep.subr.bf16.mxu0 0
        %2692 = vmatpush1.bf16.msra.mxu0 %v2493
        %2693 = vmatprep.subr.bf16.mxu0 0
        %2694 = vmatpush1.bf16.msra.mxu0 %v2492
        %2695 = vmatprep.subr.bf16.mxu0 0
        %2696 = vmatpush1.bf16.msra.mxu0 %v2491
        %2697 = vmatprep.subr.bf16.mxu0 0
        %2698 = vmatpush1.bf16.msra.mxu0 %v2490
        %2699 = vmatprep.subr.bf16.mxu0 0
        %2700 = vmatpush2.bf16.msra.mxu0 0
        %2701 = vmatprep.subr.bf16.mxu0 0
        %2702 = vmatpush2.bf16.msra.mxu0 0
        %2703 = vmatprep.subr.bf16.mxu0 0
        %2704 = vmatpush2.bf16.msra.mxu0 0
        %2705 = vmatprep.subr.bf16.mxu0 0
        %2706 = vmatpush2.bf16.msra.mxu0 0
        %2707 = vmatprep.subr.bf16.mxu0 0
        %2708 = vmatpush2.bf16.msra.mxu0 0
        %2709 = vmatprep.subr.bf16.mxu0 0
        %2710 = vmatpush2.bf16.msra.mxu0 0
        %2711 = vmatprep.subr.bf16.mxu0 0
        %2712 = vmatpush2.bf16.msra.mxu0 0
        %2713 = vmatprep.subr.bf16.mxu0 0
        %2714 = vmatpush2.bf16.msra.mxu0 0
        %2715 = vmatprep.mubr.bf16.mxu0 0
        %2716 = vmatmul.mubr.bf16.gmra.mxu0 %v2284
        %v2717 = vpop.f32.mrf.mxu0
        %v2718 = vadd.f32 %v2557, %v2717
        %v2719 = vpop.f32.mrf.mxu0
        %v2720 = vpop.f32.mrf.mxu0
        %v2721 = vadd.f32 %v2560, %v2720
        %v2722 = vpop.f32.mrf.mxu0
        %2723 = vmatprep.mubr.bf16.mxu0 0
        %2724 = vmatmul.mubr.bf16.gmra.mxu0 %v2287
        %v2725 = vpop.f32.mrf.mxu0
        %v2726 = vadd.f32 %v2565, %v2725
        %v2727 = vpop.f32.mrf.mxu0
        %v2728 = vpop.f32.mrf.mxu0
        %v2729 = vadd.f32 %v2568, %v2728
        %v2730 = vpop.f32.mrf.mxu0
        %2731 = vmatprep.mubr.bf16.mxu0 0
        %2732 = vmatmul.mubr.bf16.gmra.mxu0 %v2290
        %v2733 = vpop.f32.mrf.mxu0
        %v2734 = vadd.f32 %v2573, %v2733
        %v2735 = vpop.f32.mrf.mxu0
        %v2736 = vpop.f32.mrf.mxu0
        %v2737 = vadd.f32 %v2576, %v2736
        %v2738 = vpop.f32.mrf.mxu0
        %2739 = vmatprep.mubr.bf16.mxu0 0
        %2740 = vmatmul.mubr.bf16.gmra.mxu0 %v2293
        %v2741 = vpop.f32.mrf.mxu0
        %v2742 = vadd.f32 %v2581, %v2741
        %v2743 = vpop.f32.mrf.mxu0
        %v2744 = vpop.f32.mrf.mxu0
        %v2745 = vadd.f32 %v2584, %v2744
        %v2746 = vpop.f32.mrf.mxu0
        %2747 = vmatprep.mubr.bf16.mxu0 0
        %2748 = vmatmul.mubr.bf16.gmra.mxu0 %v2296
        %v2749 = vpop.f32.mrf.mxu0
        %v2750 = vadd.f32 %v2589, %v2749
        %v2751 = vpop.f32.mrf.mxu0
        %v2752 = vpop.f32.mrf.mxu0
        %v2753 = vadd.f32 %v2592, %v2752
        %v2754 = vpop.f32.mrf.mxu0
        %2755 = vmatprep.mubr.bf16.mxu0 0
        %2756 = vmatmul.mubr.bf16.gmra.mxu0 %v2299
        %v2757 = vpop.f32.mrf.mxu0
        %v2758 = vadd.f32 %v2597, %v2757
        %v2759 = vpop.f32.mrf.mxu0
        %v2760 = vpop.f32.mrf.mxu0
        %v2761 = vadd.f32 %v2600, %v2760
        %v2762 = vpop.f32.mrf.mxu0
        %2763 = vmatprep.mubr.bf16.mxu0 0
        %2764 = vmatmul.mubr.bf16.gmra.mxu0 %v2302
        %v2765 = vpop.f32.mrf.mxu0
        %v2766 = vadd.f32 %v2605, %v2765
        %v2767 = vpop.f32.mrf.mxu0
        %v2768 = vpop.f32.mrf.mxu0
        %v2769 = vadd.f32 %v2608, %v2768
        %v2770 = vpop.f32.mrf.mxu0
        %2771 = vmatprep.mubr.bf16.mxu0 0
        %2772 = vmatmul.mubr.bf16.gmra.mxu0 %v2305
        %v2773 = vpop.f32.mrf.mxu0
        %v2774 = vadd.f32 %v2613, %v2773
        %v2775 = vpop.f32.mrf.mxu0
        %v2776 = vpop.f32.mrf.mxu0
        %v2777 = vadd.f32 %v2616, %v2776
        %v2778 = vpop.f32.mrf.mxu0
        %2779 = vmatprep.mubr.bf16.mxu0 0
        %2780 = vmatmul.mubr.bf16.gmra.mxu0 %v2308
        %v2781 = vpop.f32.mrf.mxu0
        %v2782 = vadd.f32 %v2621, %v2781
        %v2783 = vpop.f32.mrf.mxu0
        %v2784 = vpop.f32.mrf.mxu0
        %v2785 = vadd.f32 %v2624, %v2784
        %v2786 = vpop.f32.mrf.mxu0
        %2787 = vmatprep.mubr.bf16.mxu0 0
        %2788 = vmatmul.mubr.bf16.gmra.mxu0 %v2311
        %v2789 = vpop.f32.mrf.mxu0
        %v2790 = vadd.f32 %v2629, %v2789
        %v2791 = vpop.f32.mrf.mxu0
        %v2792 = vpop.f32.mrf.mxu0
        %v2793 = vadd.f32 %v2632, %v2792
        %v2794 = vpop.f32.mrf.mxu0
        %2795 = vmatprep.mubr.bf16.mxu0 0
        %2796 = vmatmul.mubr.bf16.gmra.mxu0 %v2314
        %v2797 = vpop.f32.mrf.mxu0
        %v2798 = vadd.f32 %v2637, %v2797
        %v2799 = vpop.f32.mrf.mxu0
        %v2800 = vpop.f32.mrf.mxu0
        %v2801 = vadd.f32 %v2640, %v2800
        %v2802 = vpop.f32.mrf.mxu0
        %2803 = vmatprep.mubr.bf16.mxu0 0
        %2804 = vmatmul.mubr.bf16.gmra.mxu0 %v2317
        %v2805 = vpop.f32.mrf.mxu0
        %v2806 = vadd.f32 %v2645, %v2805
        %v2807 = vpop.f32.mrf.mxu0
        %v2808 = vpop.f32.mrf.mxu0
        %v2809 = vadd.f32 %v2648, %v2808
        %v2810 = vpop.f32.mrf.mxu0
        %2811 = vmatprep.mubr.bf16.mxu0 0
        %2812 = vmatmul.mubr.bf16.gmra.mxu0 %v2320
        %v2813 = vpop.f32.mrf.mxu0
        %v2814 = vadd.f32 %v2653, %v2813
        %v2815 = vpop.f32.mrf.mxu0
        %v2816 = vpop.f32.mrf.mxu0
        %v2817 = vadd.f32 %v2656, %v2816
        %v2818 = vpop.f32.mrf.mxu0
        %2819 = vmatprep.mubr.bf16.mxu0 0
        %2820 = vmatmul.mubr.bf16.gmra.mxu0 %v2323
        %v2821 = vpop.f32.mrf.mxu0
        %v2822 = vadd.f32 %v2661, %v2821
        %v2823 = vpop.f32.mrf.mxu0
        %v2824 = vpop.f32.mrf.mxu0
        %v2825 = vadd.f32 %v2664, %v2824
        %v2826 = vpop.f32.mrf.mxu0
        %2827 = vmatprep.mubr.bf16.mxu0 0
        %2828 = vmatmul.mubr.bf16.gmra.mxu0 %v2326
        %v2829 = vpop.f32.mrf.mxu0
        %v2830 = vadd.f32 %v2669, %v2829
        %v2831 = vpop.f32.mrf.mxu0
        %v2832 = vpop.f32.mrf.mxu0
        %v2833 = vadd.f32 %v2672, %v2832
        %v2834 = vpop.f32.mrf.mxu0
        %2835 = vmatprep.mubr.bf16.mxu0 0
        %2836 = vmatmul.mubr.bf16.gmra.mxu0 %v2329
        %v2837 = vpop.f32.mrf.mxu0
        %v2838 = vadd.f32 %v2677, %v2837
        %v2839 = vpop.f32.mrf.mxu0
        %v2840 = vpop.f32.mrf.mxu0
        %v2841 = vadd.f32 %v2680, %v2840
        %v2842 = vpop.f32.mrf.mxu0
        %2843 = vdwg.mxu0
        %v2892 = vunpack.c.l.b16 %v2042
        %v2893 = vunpack.c.l.b16 %v2043
        %v2894 = vunpack.c.l.b16 %v2044
        %v2895 = vunpack.c.l.b16 %v2045
        %v2896 = vunpack.c.l.b16 %v2046
        %v2897 = vunpack.c.l.b16 %v2047
        %v2898 = vunpack.c.l.b16 %v2048
        %v2899 = vunpack.c.l.b16 %v2049
        %v2900 = vunpack.c.l.b16 %v2050
        %v2901 = vunpack.c.l.b16 %v2051
        %v2902 = vunpack.c.l.b16 %v2052
        %v2903 = vunpack.c.l.b16 %v2053
        %v2904 = vunpack.c.l.b16 %v2054
        %v2905 = vunpack.c.l.b16 %v2055
        %v2906 = vunpack.c.l.b16 %v2056
        %v2907 = vunpack.c.l.b16 %v2057
        %v2908 = vunpack.c.l.b16 %v2058
        %v2909 = vunpack.c.l.b16 %v2059
        %v2910 = vunpack.c.l.b16 %v2060
        %v2911 = vunpack.c.l.b16 %v2061
        %v2912 = vunpack.c.l.b16 %v2062
        %v2913 = vunpack.c.l.b16 %v2063
        %v2914 = vunpack.c.l.b16 %v2064
        %v2915 = vunpack.c.l.b16 %v2065
        %v2916 = vunpack.c.l.b16 %v2066
        %v2917 = vunpack.c.l.b16 %v2067
        %v2918 = vunpack.c.l.b16 %v2068
        %v2919 = vunpack.c.l.b16 %v2069
        %v2920 = vunpack.c.l.b16 %v2070
        %v2921 = vunpack.c.l.b16 %v2071
        %v2922 = vunpack.c.l.b16 %v2072
        %v2923 = vunpack.c.l.b16 %v2073
        %v2924 = vunpack.c.l.b16 %v2074
        %v2925 = vunpack.c.l.b16 %v2075
        %v2926 = vunpack.c.l.b16 %v2076
        %v2927 = vunpack.c.l.b16 %v2077
        %v2928 = vunpack.c.l.b16 %v2078
        %v2929 = vunpack.c.l.b16 %v2079
        %v2930 = vunpack.c.l.b16 %v2080
        %v2931 = vunpack.c.l.b16 %v2081
        %v2932 = vunpack.c.l.b16 %v2082
        %v2933 = vunpack.c.l.b16 %v2083
        %v2934 = vunpack.c.l.b16 %v2084
        %v2935 = vunpack.c.l.b16 %v2085
        %v2936 = vunpack.c.l.b16 %v2086
        %v2937 = vunpack.c.l.b16 %v2087
        %v2938 = vunpack.c.l.b16 %v2088
        %v2939 = vunpack.c.l.b16 %v2089
        %v2940 = vpack.c.b16 %v2893, %v2892
        %v2941 = vpack.c.b16 %v2895, %v2894
        %v2942 = vpack.c.b16 %v2897, %v2896
        %v2943 = vpack.c.b16 %v2899, %v2898
        %v2944 = vpack.c.b16 %v2901, %v2900
        %v2945 = vpack.c.b16 %v2903, %v2902
        %v2946 = vpack.c.b16 %v2905, %v2904
        %v2947 = vpack.c.b16 %v2907, %v2906
        %v2948 = vpack.c.b16 %v2909, %v2908
        %v2949 = vpack.c.b16 %v2911, %v2910
        %v2950 = vpack.c.b16 %v2913, %v2912
        %v2951 = vpack.c.b16 %v2915, %v2914
        %v2952 = vpack.c.b16 %v2917, %v2916
        %v2953 = vpack.c.b16 %v2919, %v2918
        %v2954 = vpack.c.b16 %v2921, %v2920
        %v2955 = vpack.c.b16 %v2923, %v2922
        %v2956 = vpack.c.b16 %v2925, %v2924
        %v2957 = vpack.c.b16 %v2927, %v2926
        %v2958 = vpack.c.b16 %v2929, %v2928
        %v2959 = vpack.c.b16 %v2931, %v2930
        %v2960 = vpack.c.b16 %v2933, %v2932
        %v2961 = vpack.c.b16 %v2935, %v2934
        %v2962 = vpack.c.b16 %v2937, %v2936
        %v2963 = vpack.c.b16 %v2939, %v2938
        %2988 = vmatprep.subr.bf16.mxu0 0
        %2989 = vmatpush1.bf16.msra.mxu0 %v2947
        %2990 = vmatprep.subr.bf16.mxu0 0
        %2991 = vmatpush1.bf16.msra.mxu0 %v2946
        %2992 = vmatprep.subr.bf16.mxu0 0
        %2993 = vmatpush1.bf16.msra.mxu0 %v2945
        %2994 = vmatprep.subr.bf16.mxu0 0
        %2995 = vmatpush1.bf16.msra.mxu0 %v2944
        %2996 = vmatprep.subr.bf16.mxu0 0
        %2997 = vmatpush1.bf16.msra.mxu0 %v2943
        %2998 = vmatprep.subr.bf16.mxu0 0
        %2999 = vmatpush1.bf16.msra.mxu0 %v2942
        %3000 = vmatprep.subr.bf16.mxu0 0
        %3001 = vmatpush1.bf16.msra.mxu0 %v2941
        %3002 = vmatprep.subr.bf16.mxu0 0
        %3003 = vmatpush1.bf16.msra.mxu0 %v2940
        %3004 = vmatprep.subr.bf16.mxu0 0
        %3005 = vmatpush2.bf16.msra.mxu0 %v2955
        %3006 = vmatprep.subr.bf16.mxu0 0
        %3007 = vmatpush2.bf16.msra.mxu0 %v2954
        %3008 = vmatprep.subr.bf16.mxu0 0
        %3009 = vmatpush2.bf16.msra.mxu0 %v2953
        %3010 = vmatprep.subr.bf16.mxu0 0
        %3011 = vmatpush2.bf16.msra.mxu0 %v2952
        %3012 = vmatprep.subr.bf16.mxu0 0
        %3013 = vmatpush2.bf16.msra.mxu0 %v2951
        %3014 = vmatprep.subr.bf16.mxu0 0
        %3015 = vmatpush2.bf16.msra.mxu0 %v2950
        %3016 = vmatprep.subr.bf16.mxu0 0
        %3017 = vmatpush2.bf16.msra.mxu0 %v2949
        %3018 = vmatprep.subr.bf16.mxu0 0
        %3019 = vmatpush2.bf16.msra.mxu0 %v2948
        %3020 = vmatprep.mubr.bf16.mxu0 %v1994
        %3021 = vmatmul.mubr.bf16.gmra.mxu0 %v1993
        %v3022 = vpop.f32.mrf.mxu0
        %v3023 = vadd.f32 %v2718, %v3022
        %v3024 = vpop.f32.mrf.mxu0
        %v3025 = vpop.f32.mrf.mxu0
        %v3026 = vadd.f32 %v2721, %v3025
        %v3027 = vpop.f32.mrf.mxu0
        %3028 = vmatprep.mubr.bf16.mxu0 %v1997
        %3029 = vmatmul.mubr.bf16.gmra.mxu0 %v1996
        %v3030 = vpop.f32.mrf.mxu0
        %v3031 = vadd.f32 %v2726, %v3030
        %v3032 = vpop.f32.mrf.mxu0
        %v3033 = vpop.f32.mrf.mxu0
        %v3034 = vadd.f32 %v2729, %v3033
        %v3035 = vpop.f32.mrf.mxu0
        %3036 = vmatprep.mubr.bf16.mxu0 %v2000
        %3037 = vmatmul.mubr.bf16.gmra.mxu0 %v1999
        %v3038 = vpop.f32.mrf.mxu0
        %v3039 = vadd.f32 %v2734, %v3038
        %v3040 = vpop.f32.mrf.mxu0
        %v3041 = vpop.f32.mrf.mxu0
        %v3042 = vadd.f32 %v2737, %v3041
        %v3043 = vpop.f32.mrf.mxu0
        %3044 = vmatprep.mubr.bf16.mxu0 %v2003
        %3045 = vmatmul.mubr.bf16.gmra.mxu0 %v2002
        %v3046 = vpop.f32.mrf.mxu0
        %v3047 = vadd.f32 %v2742, %v3046
        %v3048 = vpop.f32.mrf.mxu0
        %v3049 = vpop.f32.mrf.mxu0
        %v3050 = vadd.f32 %v2745, %v3049
        %v3051 = vpop.f32.mrf.mxu0
        %3052 = vmatprep.mubr.bf16.mxu0 %v2006
        %3053 = vmatmul.mubr.bf16.gmra.mxu0 %v2005
        %v3054 = vpop.f32.mrf.mxu0
        %v3055 = vadd.f32 %v2750, %v3054
        %v3056 = vpop.f32.mrf.mxu0
        %v3057 = vpop.f32.mrf.mxu0
        %v3058 = vadd.f32 %v2753, %v3057
        %v3059 = vpop.f32.mrf.mxu0
        %3060 = vmatprep.mubr.bf16.mxu0 %v2009
        %3061 = vmatmul.mubr.bf16.gmra.mxu0 %v2008
        %v3062 = vpop.f32.mrf.mxu0
        %v3063 = vadd.f32 %v2758, %v3062
        %v3064 = vpop.f32.mrf.mxu0
        %v3065 = vpop.f32.mrf.mxu0
        %v3066 = vadd.f32 %v2761, %v3065
        %v3067 = vpop.f32.mrf.mxu0
        %3068 = vmatprep.mubr.bf16.mxu0 %v2012
        %3069 = vmatmul.mubr.bf16.gmra.mxu0 %v2011
        %v3070 = vpop.f32.mrf.mxu0
        %v3071 = vadd.f32 %v2766, %v3070
        %v3072 = vpop.f32.mrf.mxu0
        %v3073 = vpop.f32.mrf.mxu0
        %v3074 = vadd.f32 %v2769, %v3073
        %v3075 = vpop.f32.mrf.mxu0
        %3076 = vmatprep.mubr.bf16.mxu0 %v2015
        %3077 = vmatmul.mubr.bf16.gmra.mxu0 %v2014
        %v3078 = vpop.f32.mrf.mxu0
        %v3079 = vadd.f32 %v2774, %v3078
        %v3080 = vpop.f32.mrf.mxu0
        %v3081 = vpop.f32.mrf.mxu0
        %v3082 = vadd.f32 %v2777, %v3081
        %v3083 = vpop.f32.mrf.mxu0
        %3084 = vmatprep.mubr.bf16.mxu0 %v2018
        %3085 = vmatmul.mubr.bf16.gmra.mxu0 %v2017
        %v3086 = vpop.f32.mrf.mxu0
        %v3087 = vadd.f32 %v2782, %v3086
        %v3088 = vpop.f32.mrf.mxu0
        %v3089 = vpop.f32.mrf.mxu0
        %v3090 = vadd.f32 %v2785, %v3089
        %v3091 = vpop.f32.mrf.mxu0
        %3092 = vmatprep.mubr.bf16.mxu0 %v2021
        %3093 = vmatmul.mubr.bf16.gmra.mxu0 %v2020
        %v3094 = vpop.f32.mrf.mxu0
        %v3095 = vadd.f32 %v2790, %v3094
        %v3096 = vpop.f32.mrf.mxu0
        %v3097 = vpop.f32.mrf.mxu0
        %v3098 = vadd.f32 %v2793, %v3097
        %v3099 = vpop.f32.mrf.mxu0
        %3100 = vmatprep.mubr.bf16.mxu0 %v2024
        %3101 = vmatmul.mubr.bf16.gmra.mxu0 %v2023
        %v3102 = vpop.f32.mrf.mxu0
        %v3103 = vadd.f32 %v2798, %v3102
        %v3104 = vpop.f32.mrf.mxu0
        %v3105 = vpop.f32.mrf.mxu0
        %v3106 = vadd.f32 %v2801, %v3105
        %v3107 = vpop.f32.mrf.mxu0
        %3108 = vmatprep.mubr.bf16.mxu0 %v2027
        %3109 = vmatmul.mubr.bf16.gmra.mxu0 %v2026
        %v3110 = vpop.f32.mrf.mxu0
        %v3111 = vadd.f32 %v2806, %v3110
        %v3112 = vpop.f32.mrf.mxu0
        %v3113 = vpop.f32.mrf.mxu0
        %v3114 = vadd.f32 %v2809, %v3113
        %v3115 = vpop.f32.mrf.mxu0
        %3116 = vmatprep.mubr.bf16.mxu0 %v2030
        %3117 = vmatmul.mubr.bf16.gmra.mxu0 %v2029
        %v3118 = vpop.f32.mrf.mxu0
        %v3119 = vadd.f32 %v2814, %v3118
        %v3120 = vpop.f32.mrf.mxu0
        %v3121 = vpop.f32.mrf.mxu0
        %v3122 = vadd.f32 %v2817, %v3121
        %v3123 = vpop.f32.mrf.mxu0
        %3124 = vmatprep.mubr.bf16.mxu0 %v2033
        %3125 = vmatmul.mubr.bf16.gmra.mxu0 %v2032
        %v3126 = vpop.f32.mrf.mxu0
        %v3127 = vadd.f32 %v2822, %v3126
        %v3128 = vpop.f32.mrf.mxu0
        %v3129 = vpop.f32.mrf.mxu0
        %v3130 = vadd.f32 %v2825, %v3129
        %v3131 = vpop.f32.mrf.mxu0
        %3132 = vmatprep.mubr.bf16.mxu0 %v2036
        %3133 = vmatmul.mubr.bf16.gmra.mxu0 %v2035
        %v3134 = vpop.f32.mrf.mxu0
        %v3135 = vadd.f32 %v2830, %v3134
        %v3136 = vpop.f32.mrf.mxu0
        %v3137 = vpop.f32.mrf.mxu0
        %v3138 = vadd.f32 %v2833, %v3137
        %v3139 = vpop.f32.mrf.mxu0
        %3140 = vmatprep.mubr.bf16.mxu0 %v2039
        %3141 = vmatmul.mubr.bf16.gmra.mxu0 %v2038
        %v3142 = vpop.f32.mrf.mxu0
        %v3143 = vadd.f32 %v2838, %v3142
        %v3144 = vpop.f32.mrf.mxu0
        %v3145 = vpop.f32.mrf.mxu0
        %v3146 = vadd.f32 %v2841, %v3145
        %v3147 = vpop.f32.mrf.mxu0
        %3148 = vdwg.mxu0
        %3149 = vmatprep.subr.bf16.mxu0 0
        %3150 = vmatpush1.bf16.msra.mxu0 %v2963
        %3151 = vmatprep.subr.bf16.mxu0 0
        %3152 = vmatpush1.bf16.msra.mxu0 %v2962
        %3153 = vmatprep.subr.bf16.mxu0 0
        %3154 = vmatpush1.bf16.msra.mxu0 %v2961
        %3155 = vmatprep.subr.bf16.mxu0 0
        %3156 = vmatpush1.bf16.msra.mxu0 %v2960
        %3157 = vmatprep.subr.bf16.mxu0 0
        %3158 = vmatpush1.bf16.msra.mxu0 %v2959
        %3159 = vmatprep.subr.bf16.mxu0 0
        %3160 = vmatpush1.bf16.msra.mxu0 %v2958
        %3161 = vmatprep.subr.bf16.mxu0 0
        %3162 = vmatpush1.bf16.msra.mxu0 %v2957
        %3163 = vmatprep.subr.bf16.mxu0 0
        %3164 = vmatpush1.bf16.msra.mxu0 %v2956
        %3165 = vmatprep.subr.bf16.mxu0 0
        %3166 = vmatpush2.bf16.msra.mxu0 0
        %3167 = vmatprep.subr.bf16.mxu0 0
        %3168 = vmatpush2.bf16.msra.mxu0 0
        %3169 = vmatprep.subr.bf16.mxu0 0
        %3170 = vmatpush2.bf16.msra.mxu0 0
        %3171 = vmatprep.subr.bf16.mxu0 0
        %3172 = vmatpush2.bf16.msra.mxu0 0
        %3173 = vmatprep.subr.bf16.mxu0 0
        %3174 = vmatpush2.bf16.msra.mxu0 0
        %3175 = vmatprep.subr.bf16.mxu0 0
        %3176 = vmatpush2.bf16.msra.mxu0 0
        %3177 = vmatprep.subr.bf16.mxu0 0
        %3178 = vmatpush2.bf16.msra.mxu0 0
        %3179 = vmatprep.subr.bf16.mxu0 0
        %3180 = vmatpush2.bf16.msra.mxu0 0
        %3181 = vmatprep.mubr.bf16.mxu0 0
        %3182 = vmatmul.mubr.bf16.gmra.mxu0 %v1995
        %v3183 = vpop.f32.mrf.mxu0
        %v3184 = vadd.f32 %v3023, %v3183
        %v3185 = vpop.f32.mrf.mxu0
        %v3186 = vpop.f32.mrf.mxu0
        %v3187 = vadd.f32 %v3026, %v3186
        %v3188 = vpop.f32.mrf.mxu0
        %3189 = vmatprep.mubr.bf16.mxu0 0
        %3190 = vmatmul.mubr.bf16.gmra.mxu0 %v1998
        %v3191 = vpop.f32.mrf.mxu0
        %v3192 = vadd.f32 %v3031, %v3191
        %v3193 = vpop.f32.mrf.mxu0
        %v3194 = vpop.f32.mrf.mxu0
        %v3195 = vadd.f32 %v3034, %v3194
        %v3196 = vpop.f32.mrf.mxu0
        %3197 = vmatprep.mubr.bf16.mxu0 0
        %3198 = vmatmul.mubr.bf16.gmra.mxu0 %v2001
        %v3199 = vpop.f32.mrf.mxu0
        %v3200 = vadd.f32 %v3039, %v3199
        %v3201 = vpop.f32.mrf.mxu0
        %v3202 = vpop.f32.mrf.mxu0
        %v3203 = vadd.f32 %v3042, %v3202
        %v3204 = vpop.f32.mrf.mxu0
        %3205 = vmatprep.mubr.bf16.mxu0 0
        %3206 = vmatmul.mubr.bf16.gmra.mxu0 %v2004
        %v3207 = vpop.f32.mrf.mxu0
        %v3208 = vadd.f32 %v3047, %v3207
        %v3209 = vpop.f32.mrf.mxu0
        %v3210 = vpop.f32.mrf.mxu0
        %v3211 = vadd.f32 %v3050, %v3210
        %v3212 = vpop.f32.mrf.mxu0
        %3213 = vmatprep.mubr.bf16.mxu0 0
        %3214 = vmatmul.mubr.bf16.gmra.mxu0 %v2007
        %v3215 = vpop.f32.mrf.mxu0
        %v3216 = vadd.f32 %v3055, %v3215
        %v3217 = vpop.f32.mrf.mxu0
        %v3218 = vpop.f32.mrf.mxu0
        %v3219 = vadd.f32 %v3058, %v3218
        %v3220 = vpop.f32.mrf.mxu0
        %3221 = vmatprep.mubr.bf16.mxu0 0
        %3222 = vmatmul.mubr.bf16.gmra.mxu0 %v2010
        %v3223 = vpop.f32.mrf.mxu0
        %v3224 = vadd.f32 %v3063, %v3223
        %v3225 = vpop.f32.mrf.mxu0
        %v3226 = vpop.f32.mrf.mxu0
        %v3227 = vadd.f32 %v3066, %v3226
        %v3228 = vpop.f32.mrf.mxu0
        %3229 = vmatprep.mubr.bf16.mxu0 0
        %3230 = vmatmul.mubr.bf16.gmra.mxu0 %v2013
        %v3231 = vpop.f32.mrf.mxu0
        %v3232 = vadd.f32 %v3071, %v3231
        %v3233 = vpop.f32.mrf.mxu0
        %v3234 = vpop.f32.mrf.mxu0
        %v3235 = vadd.f32 %v3074, %v3234
        %v3236 = vpop.f32.mrf.mxu0
        %3237 = vmatprep.mubr.bf16.mxu0 0
        %3238 = vmatmul.mubr.bf16.gmra.mxu0 %v2016
        %v3239 = vpop.f32.mrf.mxu0
        %v3240 = vadd.f32 %v3079, %v3239
        %v3241 = vpop.f32.mrf.mxu0
        %v3242 = vpop.f32.mrf.mxu0
        %v3243 = vadd.f32 %v3082, %v3242
        %v3244 = vpop.f32.mrf.mxu0
        %3245 = vmatprep.mubr.bf16.mxu0 0
        %3246 = vmatmul.mubr.bf16.gmra.mxu0 %v2019
        %v3247 = vpop.f32.mrf.mxu0
        %v3248 = vadd.f32 %v3087, %v3247
        %v3249 = vpop.f32.mrf.mxu0
        %v3250 = vpop.f32.mrf.mxu0
        %v3251 = vadd.f32 %v3090, %v3250
        %v3252 = vpop.f32.mrf.mxu0
        %3253 = vmatprep.mubr.bf16.mxu0 0
        %3254 = vmatmul.mubr.bf16.gmra.mxu0 %v2022
        %v3255 = vpop.f32.mrf.mxu0
        %v3256 = vadd.f32 %v3095, %v3255
        %v3257 = vpop.f32.mrf.mxu0
        %v3258 = vpop.f32.mrf.mxu0
        %v3259 = vadd.f32 %v3098, %v3258
        %v3260 = vpop.f32.mrf.mxu0
        %3261 = vmatprep.mubr.bf16.mxu0 0
        %3262 = vmatmul.mubr.bf16.gmra.mxu0 %v2025
        %v3263 = vpop.f32.mrf.mxu0
        %v3264 = vadd.f32 %v3103, %v3263
        %v3265 = vpop.f32.mrf.mxu0
        %v3266 = vpop.f32.mrf.mxu0
        %v3267 = vadd.f32 %v3106, %v3266
        %v3268 = vpop.f32.mrf.mxu0
        %3269 = vmatprep.mubr.bf16.mxu0 0
        %3270 = vmatmul.mubr.bf16.gmra.mxu0 %v2028
        %v3271 = vpop.f32.mrf.mxu0
        %v3272 = vadd.f32 %v3111, %v3271
        %v3273 = vpop.f32.mrf.mxu0
        %v3274 = vpop.f32.mrf.mxu0
        %v3275 = vadd.f32 %v3114, %v3274
        %v3276 = vpop.f32.mrf.mxu0
        %3277 = vmatprep.mubr.bf16.mxu0 0
        %3278 = vmatmul.mubr.bf16.gmra.mxu0 %v2031
        %v3279 = vpop.f32.mrf.mxu0
        %v3280 = vadd.f32 %v3119, %v3279
        %v3281 = vpop.f32.mrf.mxu0
        %v3282 = vpop.f32.mrf.mxu0
        %v3283 = vadd.f32 %v3122, %v3282
        %v3284 = vpop.f32.mrf.mxu0
        %3285 = vmatprep.mubr.bf16.mxu0 0
        %3286 = vmatmul.mubr.bf16.gmra.mxu0 %v2034
        %v3287 = vpop.f32.mrf.mxu0
        %v3288 = vadd.f32 %v3127, %v3287
        %v3289 = vpop.f32.mrf.mxu0
        %v3290 = vpop.f32.mrf.mxu0
        %v3291 = vadd.f32 %v3130, %v3290
        %v3292 = vpop.f32.mrf.mxu0
        %3293 = vmatprep.mubr.bf16.mxu0 0
        %3294 = vmatmul.mubr.bf16.gmra.mxu0 %v2037
        %v3295 = vpop.f32.mrf.mxu0
        %v3296 = vadd.f32 %v3135, %v3295
        %v3297 = vpop.f32.mrf.mxu0
        %v3298 = vpop.f32.mrf.mxu0
        %v3299 = vadd.f32 %v3138, %v3298
        %v3300 = vpop.f32.mrf.mxu0
        %3301 = vmatprep.mubr.bf16.mxu0 0
        %3302 = vmatmul.mubr.bf16.gmra.mxu0 %v2040
        %v3303 = vpop.f32.mrf.mxu0
        %v3304 = vadd.f32 %v3143, %v3303
        %v3305 = vpop.f32.mrf.mxu0
        %v3306 = vpop.f32.mrf.mxu0
        %v3307 = vadd.f32 %v3146, %v3306
        %v3308 = vpop.f32.mrf.mxu0
        %3309 = vdwg.mxu0
        %vm3310 = vcmp.ge.s32.totalorder %v1575, 240
        %vm3311 = vcmp.ge.s32.totalorder %v1576, 240
        %vm3312 = vcmp.ge.s32.totalorder %v1577, 240
        %vm3313 = vcmp.ge.s32.totalorder %v1578, 240
        %vm3314 = vcmp.ge.s32.totalorder %v1579, 240
        %vm3315 = vcmp.ge.s32.totalorder %v1580, 240
        %vm3316 = vcmp.ge.s32.totalorder %v1581, 240
        %vm3317 = vcmp.ge.s32.totalorder %v1582, 240
        %vm3318 = vcmp.ge.s32.totalorder %v1583, 240
        %vm3319 = vcmp.ge.s32.totalorder %v1584, 240
        %vm3320 = vcmp.ge.s32.totalorder %v1585, 240
        %vm3321 = vcmp.ge.s32.totalorder %v1586, 240
        %vm3322 = vcmp.ge.s32.totalorder %v1587, 240
        %vm3323 = vcmp.ge.s32.totalorder %v1588, 240
        %vm3324 = vcmp.ge.s32.totalorder %v1589, 240
        %vm3325 = vcmp.ge.s32.totalorder %v1590, 240
        %vm3326 = vcmp.ge.s32.totalorder %v1591, 240
        %vm3327 = vcmp.ge.s32.totalorder %v1592, 240
        %vm3328 = vcmp.ge.s32.totalorder %v1593, 240
        %vm3329 = vcmp.ge.s32.totalorder %v1594, 240
        %vm3330 = vcmp.ge.s32.totalorder %v1595, 240
        %vm3331 = vcmp.ge.s32.totalorder %v1596, 240
        %vm3332 = vcmp.ge.s32.totalorder %v1597, 240
        %vm3333 = vcmp.ge.s32.totalorder %v1598, 240
        %vm3334 = vcmp.ge.s32.totalorder %v1599, 240
        %vm3335 = vcmp.ge.s32.totalorder %v1600, 240
        %vm3336 = vcmp.ge.s32.totalorder %v1601, 240
        %vm3337 = vcmp.ge.s32.totalorder %v1602, 240
        %vm3338 = vcmp.ge.s32.totalorder %v1603, 240
        %vm3339 = vcmp.ge.s32.totalorder %v1604, 240
        %vm3340 = vcmp.ge.s32.totalorder %v1605, 240
        %vm3341 = vcmp.ge.s32.totalorder %v1606, 240
        %v3342 = vsel %vm3310, 1, 0
        %v3343 = vsel %vm3311, 1, 0
        %v3344 = vsel %vm3312, 1, 0
        %v3345 = vsel %vm3313, 1, 0
        %v3346 = vsel %vm3314, 1, 0
        %v3347 = vsel %vm3315, 1, 0
        %v3348 = vsel %vm3316, 1, 0
        %v3349 = vsel %vm3317, 1, 0
        %v3350 = vsel %vm3318, 1, 0
        %v3351 = vsel %vm3319, 1, 0
        %v3352 = vsel %vm3320, 1, 0
        %v3353 = vsel %vm3321, 1, 0
        %v3354 = vsel %vm3322, 1, 0
        %v3355 = vsel %vm3323, 1, 0
        %v3356 = vsel %vm3324, 1, 0
        %v3357 = vsel %vm3325, 1, 0
        %v3358 = vsel %vm3326, 1, 0
        %v3359 = vsel %vm3327, 1, 0
        %v3360 = vsel %vm3328, 1, 0
        %v3361 = vsel %vm3329, 1, 0
        %v3362 = vsel %vm3330, 1, 0
        %v3363 = vsel %vm3331, 1, 0
        %v3364 = vsel %vm3332, 1, 0
        %v3365 = vsel %vm3333, 1, 0
        %v3366 = vsel %vm3334, 1, 0
        %v3367 = vsel %vm3335, 1, 0
        %v3368 = vsel %vm3336, 1, 0
        %v3369 = vsel %vm3337, 1, 0
        %v3370 = vsel %vm3338, 1, 0
        %v3371 = vsel %vm3339, 1, 0
        %v3372 = vsel %vm3340, 1, 0
        %v3373 = vsel %vm3341, 1, 0
        %vm3374 = vcmp.eq.s32.totalorder %v3342, 1
        %vm3375 = vcmp.eq.s32.totalorder %v3343, 1
        %vm3376 = vcmp.eq.s32.totalorder %v3344, 1
        %vm3377 = vcmp.eq.s32.totalorder %v3345, 1
        %vm3378 = vcmp.eq.s32.totalorder %v3346, 1
        %vm3379 = vcmp.eq.s32.totalorder %v3347, 1
        %vm3380 = vcmp.eq.s32.totalorder %v3348, 1
        %vm3381 = vcmp.eq.s32.totalorder %v3349, 1
        %vm3382 = vcmp.eq.s32.totalorder %v3350, 1
        %vm3383 = vcmp.eq.s32.totalorder %v3351, 1
        %vm3384 = vcmp.eq.s32.totalorder %v3352, 1
        %vm3385 = vcmp.eq.s32.totalorder %v3353, 1
        %vm3386 = vcmp.eq.s32.totalorder %v3354, 1
        %vm3387 = vcmp.eq.s32.totalorder %v3355, 1
        %vm3388 = vcmp.eq.s32.totalorder %v3356, 1
        %vm3389 = vcmp.eq.s32.totalorder %v3357, 1
        %vm3390 = vcmp.eq.s32.totalorder %v3358, 1
        %vm3391 = vcmp.eq.s32.totalorder %v3359, 1
        %vm3392 = vcmp.eq.s32.totalorder %v3360, 1
        %vm3393 = vcmp.eq.s32.totalorder %v3361, 1
        %vm3394 = vcmp.eq.s32.totalorder %v3362, 1
        %vm3395 = vcmp.eq.s32.totalorder %v3363, 1
        %vm3396 = vcmp.eq.s32.totalorder %v3364, 1
        %vm3397 = vcmp.eq.s32.totalorder %v3365, 1
        %vm3398 = vcmp.eq.s32.totalorder %v3366, 1
        %vm3399 = vcmp.eq.s32.totalorder %v3367, 1
        %vm3400 = vcmp.eq.s32.totalorder %v3368, 1
        %vm3401 = vcmp.eq.s32.totalorder %v3369, 1
        %vm3402 = vcmp.eq.s32.totalorder %v3370, 1
        %vm3403 = vcmp.eq.s32.totalorder %v3371, 1
        %vm3404 = vcmp.eq.s32.totalorder %v3372, 1
        %vm3405 = vcmp.eq.s32.totalorder %v3373, 1
        %v3406 = vsel %vm3374, 0.0, %v1770
        %v3407 = vsel %vm3374, 0.0, %v776
        %v3408 = vsel %vm3374, 0.0, %v1963
        %v3409 = vsel %vm3375, 0.0, %v1771
        %v3410 = vsel %vm3375, 0.0, %v777
        %v3411 = vsel %vm3375, 0.0, %v1964
        %v3412 = vsel %vm3376, 0.0, %v1772
        %v3413 = vsel %vm3376, 0.0, %v778
        %v3414 = vsel %vm3376, 0.0, %v1965
        %v3415 = vsel %vm3377, 0.0, %v1773
        %v3416 = vsel %vm3377, 0.0, %v779
        %v3417 = vsel %vm3377, 0.0, %v1966
        %v3418 = vsel %vm3378, 0.0, %v1774
        %v3419 = vsel %vm3378, 0.0, %v780
        %v3420 = vsel %vm3378, 0.0, %v1967
        %v3421 = vsel %vm3379, 0.0, %v1775
        %v3422 = vsel %vm3379, 0.0, %v781
        %v3423 = vsel %vm3379, 0.0, %v1968
        %v3424 = vsel %vm3380, 0.0, %v1776
        %v3425 = vsel %vm3380, 0.0, %v782
        %v3426 = vsel %vm3380, 0.0, %v1969
        %v3427 = vsel %vm3381, 0.0, %v1777
        %v3428 = vsel %vm3381, 0.0, %v783
        %v3429 = vsel %vm3381, 0.0, %v1970
        %v3430 = vsel %vm3382, 0.0, %v1778
        %v3431 = vsel %vm3382, 0.0, %v784
        %v3432 = vsel %vm3382, 0.0, %v1971
        %v3433 = vsel %vm3383, 0.0, %v1779
        %v3434 = vsel %vm3383, 0.0, %v785
        %v3435 = vsel %vm3383, 0.0, %v1972
        %v3436 = vsel %vm3384, 0.0, %v1780
        %v3437 = vsel %vm3384, 0.0, %v786
        %v3438 = vsel %vm3384, 0.0, %v1973
        %v3439 = vsel %vm3385, 0.0, %v1781
        %v3440 = vsel %vm3385, 0.0, %v787
        %v3441 = vsel %vm3385, 0.0, %v1974
        %v3442 = vsel %vm3386, 0.0, %v1782
        %v3443 = vsel %vm3386, 0.0, %v788
        %v3444 = vsel %vm3386, 0.0, %v1975
        %v3445 = vsel %vm3387, 0.0, %v1783
        %v3446 = vsel %vm3387, 0.0, %v789
        %v3447 = vsel %vm3387, 0.0, %v1976
        %v3448 = vsel %vm3388, 0.0, %v1784
        %v3449 = vsel %vm3388, 0.0, %v790
        %v3450 = vsel %vm3388, 0.0, %v1977
        %v3451 = vsel %vm3389, 0.0, %v1785
        %v3452 = vsel %vm3389, 0.0, %v791
        %v3453 = vsel %vm3389, 0.0, %v1978
        %v3454 = vsel %vm3390, 0.0, %v1786
        %v3455 = vsel %vm3390, 0.0, %v792
        %v3456 = vsel %vm3390, 0.0, %v1979
        %v3457 = vsel %vm3391, 0.0, %v1787
        %v3458 = vsel %vm3391, 0.0, %v793
        %v3459 = vsel %vm3391, 0.0, %v1980
        %v3460 = vsel %vm3392, 0.0, %v1788
        %v3461 = vsel %vm3392, 0.0, %v794
        %v3462 = vsel %vm3392, 0.0, %v1981
        %v3463 = vsel %vm3393, 0.0, %v1789
        %v3464 = vsel %vm3393, 0.0, %v795
        %v3465 = vsel %vm3393, 0.0, %v1982
        %v3466 = vsel %vm3394, 0.0, %v1790
        %v3467 = vsel %vm3394, 0.0, %v796
        %v3468 = vsel %vm3394, 0.0, %v1983
        %v3469 = vsel %vm3395, 0.0, %v1791
        %v3470 = vsel %vm3395, 0.0, %v797
        %v3471 = vsel %vm3395, 0.0, %v1984
        %v3472 = vsel %vm3396, 0.0, %v1792
        %v3473 = vsel %vm3396, 0.0, %v798
        %v3474 = vsel %vm3396, 0.0, %v1985
        %v3475 = vsel %vm3397, 0.0, %v1793
        %v3476 = vsel %vm3397, 0.0, %v799
        %v3477 = vsel %vm3397, 0.0, %v1986
        %v3478 = vsel %vm3398, 0.0, %v1794
        %v3479 = vsel %vm3398, 0.0, %v800
        %v3480 = vsel %vm3398, 0.0, %v1987
        %v3481 = vsel %vm3399, 0.0, %v1795
        %v3482 = vsel %vm3399, 0.0, %v801
        %v3483 = vsel %vm3399, 0.0, %v1988
        %v3484 = vsel %vm3400, 0.0, %v1796
        %v3485 = vsel %vm3400, 0.0, %v802
        %v3486 = vsel %vm3400, 0.0, %v1989
        %v3487 = vsel %vm3401, 0.0, %v1797
        %v3488 = vsel %vm3401, 0.0, %v803
        %v3489 = vsel %vm3401, 0.0, %v1990
        %v3490 = vsel %vm3402, 0.0, %v1798
        %v3491 = vsel %vm3402, 0.0, %v804
        %v3492 = vsel %vm3402, 0.0, %v1991
        %v3493 = vsel %vm3403, 0.0, %v1799
        %v3494 = vsel %vm3403, 0.0, %v805
        %v3495 = vsel %vm3403, 0.0, %v1992
        %v3496 = vsel %vm3404, 0.0, %v1768
        %v3497 = vsel %vm3404, 0.0, %v774
        %v3498 = vsel %vm3404, 0.0, %v1961
        %v3499 = vsel %vm3405, 0.0, %v1769
        %v3500 = vsel %vm3405, 0.0, %v775
        %v3501 = vsel %vm3405, 0.0, %v1962
        %v3502 = vpack.c.bf16 %v3409, %v3406
        %v3503 = vpack.c.bf16 %v3410, %v3407
        %v3504 = vpack.c.bf16 %v3411, %v3408
        %v3505 = vpack.c.bf16 %v3415, %v3412
        %v3506 = vpack.c.bf16 %v3416, %v3413
        %v3507 = vpack.c.bf16 %v3417, %v3414
        %v3508 = vpack.c.bf16 %v3421, %v3418
        %v3509 = vpack.c.bf16 %v3422, %v3419
        %v3510 = vpack.c.bf16 %v3423, %v3420
        %v3511 = vpack.c.bf16 %v3427, %v3424
        %v3512 = vpack.c.bf16 %v3428, %v3425
        %v3513 = vpack.c.bf16 %v3429, %v3426
        %v3514 = vpack.c.bf16 %v3433, %v3430
        %v3515 = vpack.c.bf16 %v3434, %v3431
        %v3516 = vpack.c.bf16 %v3435, %v3432
        %v3517 = vpack.c.bf16 %v3439, %v3436
        %v3518 = vpack.c.bf16 %v3440, %v3437
        %v3519 = vpack.c.bf16 %v3441, %v3438
        %v3520 = vpack.c.bf16 %v3445, %v3442
        %v3521 = vpack.c.bf16 %v3446, %v3443
        %v3522 = vpack.c.bf16 %v3447, %v3444
        %v3523 = vpack.c.bf16 %v3451, %v3448
        %v3524 = vpack.c.bf16 %v3452, %v3449
        %v3525 = vpack.c.bf16 %v3453, %v3450
        %v3526 = vpack.c.bf16 %v3457, %v3454
        %v3527 = vpack.c.bf16 %v3458, %v3455
        %v3528 = vpack.c.bf16 %v3459, %v3456
        %v3529 = vpack.c.bf16 %v3463, %v3460
        %v3530 = vpack.c.bf16 %v3464, %v3461
        %v3531 = vpack.c.bf16 %v3465, %v3462
        %v3532 = vpack.c.bf16 %v3469, %v3466
        %v3533 = vpack.c.bf16 %v3470, %v3467
        %v3534 = vpack.c.bf16 %v3471, %v3468
        %v3535 = vpack.c.bf16 %v3475, %v3472
        %v3536 = vpack.c.bf16 %v3476, %v3473
        %v3537 = vpack.c.bf16 %v3477, %v3474
        %v3538 = vpack.c.bf16 %v3481, %v3478
        %v3539 = vpack.c.bf16 %v3482, %v3479
        %v3540 = vpack.c.bf16 %v3483, %v3480
        %v3541 = vpack.c.bf16 %v3487, %v3484
        %v3542 = vpack.c.bf16 %v3488, %v3485
        %v3543 = vpack.c.bf16 %v3489, %v3486
        %v3544 = vpack.c.bf16 %v3493, %v3490
        %v3545 = vpack.c.bf16 %v3494, %v3491
        %v3546 = vpack.c.bf16 %v3495, %v3492
        %v3547 = vpack.c.bf16 %v3499, %v3496
        %v3548 = vpack.c.bf16 %v3500, %v3497
        %v3549 = vpack.c.bf16 %v3501, %v3498
        %s3550 = scalar_lea.vmem [#allocation7], 384
        %v3551 = vld [vmem:[%s3550] sm:$0xf]
        %v3552 = vld [vmem:[%s3550 + $0x4] sm:$0xf]
        %v3553 = vld [vmem:[%s3550 + $0x8] sm:$0xf]
        %v3554 = vld [vmem:[%s3550 + $0xc] sm:$0xf]
        %v3555 = vld [vmem:[%s3550 + $0x10] sm:$0xf]
        %v3556 = vld [vmem:[%s3550 + $0x14] sm:$0xf]
        %v3557 = vld [vmem:[%s3550 + $0x18] sm:$0xf]
        %v3558 = vld [vmem:[%s3550 + $0x1c] sm:$0xf]
        %v3559 = vld [vmem:[%s3550 + $0x20] sm:$0xf]
        %v3560 = vld [vmem:[%s3550 + $0x24] sm:$0xf]
        %v3561 = vld [vmem:[%s3550 + $0x28] sm:$0xf]
        %v3562 = vld [vmem:[%s3550 + $0x2c] sm:$0xf]
        %v3563 = vld [vmem:[%s3550 + $0x30] sm:$0xf]
        %v3564 = vld [vmem:[%s3550 + $0x34] sm:$0xf]
        %v3565 = vld [vmem:[%s3550 + $0x38] sm:$0xf]
        %v3566 = vld [vmem:[%s3550 + $0x3c] sm:$0xf]
        %v3567 = vld [vmem:[%s3550 + $0x40] sm:$0xf]
        %v3568 = vld [vmem:[%s3550 + $0x44] sm:$0xf]
        %v3569 = vld [vmem:[%s3550 + $0x48] sm:$0xf]
        %v3570 = vld [vmem:[%s3550 + $0x4c] sm:$0xf]
        %v3571 = vld [vmem:[%s3550 + $0x50] sm:$0xf]
        %v3572 = vld [vmem:[%s3550 + $0x54] sm:$0xf]
        %v3573 = vld [vmem:[%s3550 + $0x58] sm:$0xf]
        %v3574 = vld [vmem:[%s3550 + $0x5c] sm:$0xf]
        %v3575 = vld [vmem:[%s3550 + $0x60] sm:$0xf]
        %v3576 = vld [vmem:[%s3550 + $0x64] sm:$0xf]
        %v3577 = vld [vmem:[%s3550 + $0x68] sm:$0xf]
        %v3578 = vld [vmem:[%s3550 + $0x6c] sm:$0xf]
        %v3579 = vld [vmem:[%s3550 + $0x70] sm:$0xf]
        %v3580 = vld [vmem:[%s3550 + $0x74] sm:$0xf]
        %v3581 = vld [vmem:[%s3550 + $0x78] sm:$0xf]
        %v3582 = vld [vmem:[%s3550 + $0x7c] sm:$0xf]
        %v3583 = vld [vmem:[%s3550 + $0x80] sm:$0xf]
        %v3584 = vld [vmem:[%s3550 + $0x84] sm:$0xf]
        %v3585 = vld [vmem:[%s3550 + $0x88] sm:$0xf]
        %v3586 = vld [vmem:[%s3550 + $0x8c] sm:$0xf]
        %v3587 = vld [vmem:[%s3550 + $0x90] sm:$0xf]
        %v3588 = vld [vmem:[%s3550 + $0x94] sm:$0xf]
        %v3589 = vld [vmem:[%s3550 + $0x98] sm:$0xf]
        %v3590 = vld [vmem:[%s3550 + $0x9c] sm:$0xf]
        %v3591 = vld [vmem:[%s3550 + $0xa0] sm:$0xf]
        %v3592 = vld [vmem:[%s3550 + $0xa4] sm:$0xf]
        %v3593 = vld [vmem:[%s3550 + $0xa8] sm:$0xf]
        %v3594 = vld [vmem:[%s3550 + $0xac] sm:$0xf]
        %v3595 = vld [vmem:[%s3550 + $0xb0] sm:$0xf]
        %v3596 = vld [vmem:[%s3550 + $0xb4] sm:$0xf]
        %v3597 = vld [vmem:[%s3550 + $0xb8] sm:$0xf]
        %v3598 = vld [vmem:[%s3550 + $0xbc] sm:$0xf]
        %v3647 = vunpack.c.l.b16 %v3551
        %v3648 = vunpack.c.l.b16 %v3552
        %v3649 = vunpack.c.l.b16 %v3553
        %v3650 = vunpack.c.l.b16 %v3554
        %v3651 = vunpack.c.l.b16 %v3555
        %v3652 = vunpack.c.l.b16 %v3556
        %v3653 = vunpack.c.l.b16 %v3557
        %v3654 = vunpack.c.l.b16 %v3558
        %v3655 = vunpack.c.l.b16 %v3559
        %v3656 = vunpack.c.l.b16 %v3560
        %v3657 = vunpack.c.l.b16 %v3561
        %v3658 = vunpack.c.l.b16 %v3562
        %v3659 = vunpack.c.l.b16 %v3563
        %v3660 = vunpack.c.l.b16 %v3564
        %v3661 = vunpack.c.l.b16 %v3565
        %v3662 = vunpack.c.l.b16 %v3566
        %v3663 = vunpack.c.l.b16 %v3567
        %v3664 = vunpack.c.l.b16 %v3568
        %v3665 = vunpack.c.l.b16 %v3569
        %v3666 = vunpack.c.l.b16 %v3570
        %v3667 = vunpack.c.l.b16 %v3571
        %v3668 = vunpack.c.l.b16 %v3572
        %v3669 = vunpack.c.l.b16 %v3573
        %v3670 = vunpack.c.l.b16 %v3574
        %v3671 = vunpack.c.l.b16 %v3575
        %v3672 = vunpack.c.l.b16 %v3576
        %v3673 = vunpack.c.l.b16 %v3577
        %v3674 = vunpack.c.l.b16 %v3578
        %v3675 = vunpack.c.l.b16 %v3579
        %v3676 = vunpack.c.l.b16 %v3580
        %v3677 = vunpack.c.l.b16 %v3581
        %v3678 = vunpack.c.l.b16 %v3582
        %v3679 = vunpack.c.l.b16 %v3583
        %v3680 = vunpack.c.l.b16 %v3584
        %v3681 = vunpack.c.l.b16 %v3585
        %v3682 = vunpack.c.l.b16 %v3586
        %v3683 = vunpack.c.l.b16 %v3587
        %v3684 = vunpack.c.l.b16 %v3588
        %v3685 = vunpack.c.l.b16 %v3589
        %v3686 = vunpack.c.l.b16 %v3590
        %v3687 = vunpack.c.l.b16 %v3591
        %v3688 = vunpack.c.l.b16 %v3592
        %v3689 = vunpack.c.l.b16 %v3593
        %v3690 = vunpack.c.l.b16 %v3594
        %v3691 = vunpack.c.l.b16 %v3595
        %v3692 = vunpack.c.l.b16 %v3596
        %v3693 = vunpack.c.l.b16 %v3597
        %v3694 = vunpack.c.l.b16 %v3598
        %v3695 = vpack.c.b16 %v3648, %v3647
        %v3696 = vpack.c.b16 %v3650, %v3649
        %v3697 = vpack.c.b16 %v3652, %v3651
        %v3698 = vpack.c.b16 %v3654, %v3653
        %v3699 = vpack.c.b16 %v3656, %v3655
        %v3700 = vpack.c.b16 %v3658, %v3657
        %v3701 = vpack.c.b16 %v3660, %v3659
        %v3702 = vpack.c.b16 %v3662, %v3661
        %v3703 = vpack.c.b16 %v3664, %v3663
        %v3704 = vpack.c.b16 %v3666, %v3665
        %v3705 = vpack.c.b16 %v3668, %v3667
        %v3706 = vpack.c.b16 %v3670, %v3669
        %v3707 = vpack.c.b16 %v3672, %v3671
        %v3708 = vpack.c.b16 %v3674, %v3673
        %v3709 = vpack.c.b16 %v3676, %v3675
        %v3710 = vpack.c.b16 %v3678, %v3677
        %v3711 = vpack.c.b16 %v3680, %v3679
        %v3712 = vpack.c.b16 %v3682, %v3681
        %v3713 = vpack.c.b16 %v3684, %v3683
        %v3714 = vpack.c.b16 %v3686, %v3685
        %v3715 = vpack.c.b16 %v3688, %v3687
        %v3716 = vpack.c.b16 %v3690, %v3689
        %v3717 = vpack.c.b16 %v3692, %v3691
        %v3718 = vpack.c.b16 %v3694, %v3693
        %3743 = vmatprep.subr.bf16.mxu0 0
        %3744 = vmatpush1.bf16.msra.mxu0 %v3702
        %3745 = vmatprep.subr.bf16.mxu0 0
        %3746 = vmatpush1.bf16.msra.mxu0 %v3701
        %3747 = vmatprep.subr.bf16.mxu0 0
        %3748 = vmatpush1.bf16.msra.mxu0 %v3700
        %3749 = vmatprep.subr.bf16.mxu0 0
        %3750 = vmatpush1.bf16.msra.mxu0 %v3699
        %3751 = vmatprep.subr.bf16.mxu0 0
        %3752 = vmatpush1.bf16.msra.mxu0 %v3698
        %3753 = vmatprep.subr.bf16.mxu0 0
        %3754 = vmatpush1.bf16.msra.mxu0 %v3697
        %3755 = vmatprep.subr.bf16.mxu0 0
        %3756 = vmatpush1.bf16.msra.mxu0 %v3696
        %3757 = vmatprep.subr.bf16.mxu0 0
        %3758 = vmatpush1.bf16.msra.mxu0 %v3695
        %3759 = vmatprep.subr.bf16.mxu0 0
        %3760 = vmatpush2.bf16.msra.mxu0 %v3710
        %3761 = vmatprep.subr.bf16.mxu0 0
        %3762 = vmatpush2.bf16.msra.mxu0 %v3709
        %3763 = vmatprep.subr.bf16.mxu0 0
        %3764 = vmatpush2.bf16.msra.mxu0 %v3708
        %3765 = vmatprep.subr.bf16.mxu0 0
        %3766 = vmatpush2.bf16.msra.mxu0 %v3707
        %3767 = vmatprep.subr.bf16.mxu0 0
        %3768 = vmatpush2.bf16.msra.mxu0 %v3706
        %3769 = vmatprep.subr.bf16.mxu0 0
        %3770 = vmatpush2.bf16.msra.mxu0 %v3705
        %3771 = vmatprep.subr.bf16.mxu0 0
        %3772 = vmatpush2.bf16.msra.mxu0 %v3704
        %3773 = vmatprep.subr.bf16.mxu0 0
        %3774 = vmatpush2.bf16.msra.mxu0 %v3703
        %3775 = vmatprep.mubr.bf16.mxu0 %v3503
        %3776 = vmatmul.mubr.bf16.gmra.mxu0 %v3502
        %v3777 = vpop.f32.mrf.mxu0
        %v3778 = vadd.f32 0.0, %v3777
        %v3779 = vpop.f32.mrf.mxu0
        %v3780 = vpop.f32.mrf.mxu0
        %v3781 = vadd.f32 0.0, %v3780
        %v3782 = vpop.f32.mrf.mxu0
        %3783 = vmatprep.mubr.bf16.mxu0 %v3506
        %3784 = vmatmul.mubr.bf16.gmra.mxu0 %v3505
        %v3785 = vpop.f32.mrf.mxu0
        %v3786 = vadd.f32 0.0, %v3785
        %v3787 = vpop.f32.mrf.mxu0
        %v3788 = vpop.f32.mrf.mxu0
        %v3789 = vadd.f32 0.0, %v3788
        %v3790 = vpop.f32.mrf.mxu0
        %3791 = vmatprep.mubr.bf16.mxu0 %v3509
        %3792 = vmatmul.mubr.bf16.gmra.mxu0 %v3508
        %v3793 = vpop.f32.mrf.mxu0
        %v3794 = vadd.f32 0.0, %v3793
        %v3795 = vpop.f32.mrf.mxu0
        %v3796 = vpop.f32.mrf.mxu0
        %v3797 = vadd.f32 0.0, %v3796
        %v3798 = vpop.f32.mrf.mxu0
        %3799 = vmatprep.mubr.bf16.mxu0 %v3512
        %3800 = vmatmul.mubr.bf16.gmra.mxu0 %v3511
        %v3801 = vpop.f32.mrf.mxu0
        %v3802 = vadd.f32 0.0, %v3801
        %v3803 = vpop.f32.mrf.mxu0
        %v3804 = vpop.f32.mrf.mxu0
        %v3805 = vadd.f32 0.0, %v3804
        %v3806 = vpop.f32.mrf.mxu0
        %3807 = vmatprep.mubr.bf16.mxu0 %v3515
        %3808 = vmatmul.mubr.bf16.gmra.mxu0 %v3514
        %v3809 = vpop.f32.mrf.mxu0
        %v3810 = vadd.f32 0.0, %v3809
        %v3811 = vpop.f32.mrf.mxu0
        %v3812 = vpop.f32.mrf.mxu0
        %v3813 = vadd.f32 0.0, %v3812
        %v3814 = vpop.f32.mrf.mxu0
        %3815 = vmatprep.mubr.bf16.mxu0 %v3518
        %3816 = vmatmul.mubr.bf16.gmra.mxu0 %v3517
        %v3817 = vpop.f32.mrf.mxu0
        %v3818 = vadd.f32 0.0, %v3817
        %v3819 = vpop.f32.mrf.mxu0
        %v3820 = vpop.f32.mrf.mxu0
        %v3821 = vadd.f32 0.0, %v3820
        %v3822 = vpop.f32.mrf.mxu0
        %3823 = vmatprep.mubr.bf16.mxu0 %v3521
        %3824 = vmatmul.mubr.bf16.gmra.mxu0 %v3520
        %v3825 = vpop.f32.mrf.mxu0
        %v3826 = vadd.f32 0.0, %v3825
        %v3827 = vpop.f32.mrf.mxu0
        %v3828 = vpop.f32.mrf.mxu0
        %v3829 = vadd.f32 0.0, %v3828
        %v3830 = vpop.f32.mrf.mxu0
        %3831 = vmatprep.mubr.bf16.mxu0 %v3524
        %3832 = vmatmul.mubr.bf16.gmra.mxu0 %v3523
        %v3833 = vpop.f32.mrf.mxu0
        %v3834 = vadd.f32 0.0, %v3833
        %v3835 = vpop.f32.mrf.mxu0
        %v3836 = vpop.f32.mrf.mxu0
        %v3837 = vadd.f32 0.0, %v3836
        %v3838 = vpop.f32.mrf.mxu0
        %3839 = vmatprep.mubr.bf16.mxu0 %v3527
        %3840 = vmatmul.mubr.bf16.gmra.mxu0 %v3526
        %v3841 = vpop.f32.mrf.mxu0
        %v3842 = vadd.f32 0.0, %v3841
        %v3843 = vpop.f32.mrf.mxu0
        %v3844 = vpop.f32.mrf.mxu0
        %v3845 = vadd.f32 0.0, %v3844
        %v3846 = vpop.f32.mrf.mxu0
        %3847 = vmatprep.mubr.bf16.mxu0 %v3530
        %3848 = vmatmul.mubr.bf16.gmra.mxu0 %v3529
        %v3849 = vpop.f32.mrf.mxu0
        %v3850 = vadd.f32 0.0, %v3849
        %v3851 = vpop.f32.mrf.mxu0
        %v3852 = vpop.f32.mrf.mxu0
        %v3853 = vadd.f32 0.0, %v3852
        %v3854 = vpop.f32.mrf.mxu0
        %3855 = vmatprep.mubr.bf16.mxu0 %v3533
        %3856 = vmatmul.mubr.bf16.gmra.mxu0 %v3532
        %v3857 = vpop.f32.mrf.mxu0
        %v3858 = vadd.f32 0.0, %v3857
        %v3859 = vpop.f32.mrf.mxu0
        %v3860 = vpop.f32.mrf.mxu0
        %v3861 = vadd.f32 0.0, %v3860
        %v3862 = vpop.f32.mrf.mxu0
        %3863 = vmatprep.mubr.bf16.mxu0 %v3536
        %3864 = vmatmul.mubr.bf16.gmra.mxu0 %v3535
        %v3865 = vpop.f32.mrf.mxu0
        %v3866 = vadd.f32 0.0, %v3865
        %v3867 = vpop.f32.mrf.mxu0
        %v3868 = vpop.f32.mrf.mxu0
        %v3869 = vadd.f32 0.0, %v3868
        %v3870 = vpop.f32.mrf.mxu0
        %3871 = vmatprep.mubr.bf16.mxu0 %v3539
        %3872 = vmatmul.mubr.bf16.gmra.mxu0 %v3538
        %v3873 = vpop.f32.mrf.mxu0
        %v3874 = vadd.f32 0.0, %v3873
        %v3875 = vpop.f32.mrf.mxu0
        %v3876 = vpop.f32.mrf.mxu0
        %v3877 = vadd.f32 0.0, %v3876
        %v3878 = vpop.f32.mrf.mxu0
        %3879 = vmatprep.mubr.bf16.mxu0 %v3542
        %3880 = vmatmul.mubr.bf16.gmra.mxu0 %v3541
        %v3881 = vpop.f32.mrf.mxu0
        %v3882 = vadd.f32 0.0, %v3881
        %v3883 = vpop.f32.mrf.mxu0
        %v3884 = vpop.f32.mrf.mxu0
        %v3885 = vadd.f32 0.0, %v3884
        %v3886 = vpop.f32.mrf.mxu0
        %3887 = vmatprep.mubr.bf16.mxu0 %v3545
        %3888 = vmatmul.mubr.bf16.gmra.mxu0 %v3544
        %v3889 = vpop.f32.mrf.mxu0
        %v3890 = vadd.f32 0.0, %v3889
        %v3891 = vpop.f32.mrf.mxu0
        %v3892 = vpop.f32.mrf.mxu0
        %v3893 = vadd.f32 0.0, %v3892
        %v3894 = vpop.f32.mrf.mxu0
        %3895 = vmatprep.mubr.bf16.mxu0 %v3548
        %3896 = vmatmul.mubr.bf16.gmra.mxu0 %v3547
        %v3897 = vpop.f32.mrf.mxu0
        %v3898 = vadd.f32 0.0, %v3897
        %v3899 = vpop.f32.mrf.mxu0
        %v3900 = vpop.f32.mrf.mxu0
        %v3901 = vadd.f32 0.0, %v3900
        %v3902 = vpop.f32.mrf.mxu0
        %3903 = vdwg.mxu0
        %3904 = vmatprep.subr.bf16.mxu0 0
        %3905 = vmatpush1.bf16.msra.mxu0 %v3718
        %3906 = vmatprep.subr.bf16.mxu0 0
        %3907 = vmatpush1.bf16.msra.mxu0 %v3717
        %3908 = vmatprep.subr.bf16.mxu0 0
        %3909 = vmatpush1.bf16.msra.mxu0 %v3716
        %3910 = vmatprep.subr.bf16.mxu0 0
        %3911 = vmatpush1.bf16.msra.mxu0 %v3715
        %3912 = vmatprep.subr.bf16.mxu0 0
        %3913 = vmatpush1.bf16.msra.mxu0 %v3714
        %3914 = vmatprep.subr.bf16.mxu0 0
        %3915 = vmatpush1.bf16.msra.mxu0 %v3713
        %3916 = vmatprep.subr.bf16.mxu0 0
        %3917 = vmatpush1.bf16.msra.mxu0 %v3712
        %3918 = vmatprep.subr.bf16.mxu0 0
        %3919 = vmatpush1.bf16.msra.mxu0 %v3711
        %3920 = vmatprep.subr.bf16.mxu0 0
        %3921 = vmatpush2.bf16.msra.mxu0 0
        %3922 = vmatprep.subr.bf16.mxu0 0
        %3923 = vmatpush2.bf16.msra.mxu0 0
        %3924 = vmatprep.subr.bf16.mxu0 0
        %3925 = vmatpush2.bf16.msra.mxu0 0
        %3926 = vmatprep.subr.bf16.mxu0 0
        %3927 = vmatpush2.bf16.msra.mxu0 0
        %3928 = vmatprep.subr.bf16.mxu0 0
        %3929 = vmatpush2.bf16.msra.mxu0 0
        %3930 = vmatprep.subr.bf16.mxu0 0
        %3931 = vmatpush2.bf16.msra.mxu0 0
        %3932 = vmatprep.subr.bf16.mxu0 0
        %3933 = vmatpush2.bf16.msra.mxu0 0
        %3934 = vmatprep.subr.bf16.mxu0 0
        %3935 = vmatpush2.bf16.msra.mxu0 0
        %3936 = vmatprep.mubr.bf16.mxu0 0
        %3937 = vmatmul.mubr.bf16.gmra.mxu0 %v3504
        %v3938 = vpop.f32.mrf.mxu0
        %v3939 = vadd.f32 %v3778, %v3938
        %v3940 = vpop.f32.mrf.mxu0
        %v3941 = vpop.f32.mrf.mxu0
        %v3942 = vadd.f32 %v3781, %v3941
        %v3943 = vpop.f32.mrf.mxu0
        %3944 = vmatprep.mubr.bf16.mxu0 0
        %3945 = vmatmul.mubr.bf16.gmra.mxu0 %v3507
        %v3946 = vpop.f32.mrf.mxu0
        %v3947 = vadd.f32 %v3786, %v3946
        %v3948 = vpop.f32.mrf.mxu0
        %v3949 = vpop.f32.mrf.mxu0
        %v3950 = vadd.f32 %v3789, %v3949
        %v3951 = vpop.f32.mrf.mxu0
        %3952 = vmatprep.mubr.bf16.mxu0 0
        %3953 = vmatmul.mubr.bf16.gmra.mxu0 %v3510
        %v3954 = vpop.f32.mrf.mxu0
        %v3955 = vadd.f32 %v3794, %v3954
        %v3956 = vpop.f32.mrf.mxu0
        %v3957 = vpop.f32.mrf.mxu0
        %v3958 = vadd.f32 %v3797, %v3957
        %v3959 = vpop.f32.mrf.mxu0
        %3960 = vmatprep.mubr.bf16.mxu0 0
        %3961 = vmatmul.mubr.bf16.gmra.mxu0 %v3513
        %v3962 = vpop.f32.mrf.mxu0
        %v3963 = vadd.f32 %v3802, %v3962
        %v3964 = vpop.f32.mrf.mxu0
        %v3965 = vpop.f32.mrf.mxu0
        %v3966 = vadd.f32 %v3805, %v3965
        %v3967 = vpop.f32.mrf.mxu0
        %3968 = vmatprep.mubr.bf16.mxu0 0
        %3969 = vmatmul.mubr.bf16.gmra.mxu0 %v3516
        %v3970 = vpop.f32.mrf.mxu0
        %v3971 = vadd.f32 %v3810, %v3970
        %v3972 = vpop.f32.mrf.mxu0
        %v3973 = vpop.f32.mrf.mxu0
        %v3974 = vadd.f32 %v3813, %v3973
        %v3975 = vpop.f32.mrf.mxu0
        %3976 = vmatprep.mubr.bf16.mxu0 0
        %3977 = vmatmul.mubr.bf16.gmra.mxu0 %v3519
        %v3978 = vpop.f32.mrf.mxu0
        %v3979 = vadd.f32 %v3818, %v3978
        %v3980 = vpop.f32.mrf.mxu0
        %v3981 = vpop.f32.mrf.mxu0
        %v3982 = vadd.f32 %v3821, %v3981
        %v3983 = vpop.f32.mrf.mxu0
        %3984 = vmatprep.mubr.bf16.mxu0 0
        %3985 = vmatmul.mubr.bf16.gmra.mxu0 %v3522
        %v3986 = vpop.f32.mrf.mxu0
        %v3987 = vadd.f32 %v3826, %v3986
        %v3988 = vpop.f32.mrf.mxu0
        %v3989 = vpop.f32.mrf.mxu0
        %v3990 = vadd.f32 %v3829, %v3989
        %v3991 = vpop.f32.mrf.mxu0
        %3992 = vmatprep.mubr.bf16.mxu0 0
        %3993 = vmatmul.mubr.bf16.gmra.mxu0 %v3525
        %v3994 = vpop.f32.mrf.mxu0
        %v3995 = vadd.f32 %v3834, %v3994
        %v3996 = vpop.f32.mrf.mxu0
        %v3997 = vpop.f32.mrf.mxu0
        %v3998 = vadd.f32 %v3837, %v3997
        %v3999 = vpop.f32.mrf.mxu0
        %4000 = vmatprep.mubr.bf16.mxu0 0
        %4001 = vmatmul.mubr.bf16.gmra.mxu0 %v3528
        %v4002 = vpop.f32.mrf.mxu0
        %v4003 = vadd.f32 %v3842, %v4002
        %v4004 = vpop.f32.mrf.mxu0
        %v4005 = vpop.f32.mrf.mxu0
        %v4006 = vadd.f32 %v3845, %v4005
        %v4007 = vpop.f32.mrf.mxu0
        %4008 = vmatprep.mubr.bf16.mxu0 0
        %4009 = vmatmul.mubr.bf16.gmra.mxu0 %v3531
        %v4010 = vpop.f32.mrf.mxu0
        %v4011 = vadd.f32 %v3850, %v4010
        %v4012 = vpop.f32.mrf.mxu0
        %v4013 = vpop.f32.mrf.mxu0
        %v4014 = vadd.f32 %v3853, %v4013
        %v4015 = vpop.f32.mrf.mxu0
        %4016 = vmatprep.mubr.bf16.mxu0 0
        %4017 = vmatmul.mubr.bf16.gmra.mxu0 %v3534
        %v4018 = vpop.f32.mrf.mxu0
        %v4019 = vadd.f32 %v3858, %v4018
        %v4020 = vpop.f32.mrf.mxu0
        %v4021 = vpop.f32.mrf.mxu0
        %v4022 = vadd.f32 %v3861, %v4021
        %v4023 = vpop.f32.mrf.mxu0
        %4024 = vmatprep.mubr.bf16.mxu0 0
        %4025 = vmatmul.mubr.bf16.gmra.mxu0 %v3537
        %v4026 = vpop.f32.mrf.mxu0
        %v4027 = vadd.f32 %v3866, %v4026
        %v4028 = vpop.f32.mrf.mxu0
        %v4029 = vpop.f32.mrf.mxu0
        %v4030 = vadd.f32 %v3869, %v4029
        %v4031 = vpop.f32.mrf.mxu0
        %4032 = vmatprep.mubr.bf16.mxu0 0
        %4033 = vmatmul.mubr.bf16.gmra.mxu0 %v3540
        %v4034 = vpop.f32.mrf.mxu0
        %v4035 = vadd.f32 %v3874, %v4034
        %v4036 = vpop.f32.mrf.mxu0
        %v4037 = vpop.f32.mrf.mxu0
        %v4038 = vadd.f32 %v3877, %v4037
        %v4039 = vpop.f32.mrf.mxu0
        %4040 = vmatprep.mubr.bf16.mxu0 0
        %4041 = vmatmul.mubr.bf16.gmra.mxu0 %v3543
        %v4042 = vpop.f32.mrf.mxu0
        %v4043 = vadd.f32 %v3882, %v4042
        %v4044 = vpop.f32.mrf.mxu0
        %v4045 = vpop.f32.mrf.mxu0
        %v4046 = vadd.f32 %v3885, %v4045
        %v4047 = vpop.f32.mrf.mxu0
        %4048 = vmatprep.mubr.bf16.mxu0 0
        %4049 = vmatmul.mubr.bf16.gmra.mxu0 %v3546
        %v4050 = vpop.f32.mrf.mxu0
        %v4051 = vadd.f32 %v3890, %v4050
        %v4052 = vpop.f32.mrf.mxu0
        %v4053 = vpop.f32.mrf.mxu0
        %v4054 = vadd.f32 %v3893, %v4053
        %v4055 = vpop.f32.mrf.mxu0
        %4056 = vmatprep.mubr.bf16.mxu0 0
        %4057 = vmatmul.mubr.bf16.gmra.mxu0 %v3549
        %v4058 = vpop.f32.mrf.mxu0
        %v4059 = vadd.f32 %v3898, %v4058
        %v4060 = vpop.f32.mrf.mxu0
        %v4061 = vpop.f32.mrf.mxu0
        %v4062 = vadd.f32 %v3901, %v4061
        %v4063 = vpop.f32.mrf.mxu0
        %4064 = vdwg.mxu0
        %v4065 = vadd.f32 %v3184, %v3939
        %v4066 = vadd.f32 %v3187, %v3942
        %v4067 = vadd.f32 %v3192, %v3947
        %v4068 = vadd.f32 %v3195, %v3950
        %v4069 = vadd.f32 %v3200, %v3955
        %v4070 = vadd.f32 %v3203, %v3958
        %v4071 = vadd.f32 %v3208, %v3963
        %v4072 = vadd.f32 %v3211, %v3966
        %v4073 = vadd.f32 %v3216, %v3971
        %v4074 = vadd.f32 %v3219, %v3974
        %v4075 = vadd.f32 %v3224, %v3979
        %v4076 = vadd.f32 %v3227, %v3982
        %v4077 = vadd.f32 %v3232, %v3987
        %v4078 = vadd.f32 %v3235, %v3990
        %v4079 = vadd.f32 %v3240, %v3995
        %v4080 = vadd.f32 %v3243, %v3998
        %v4081 = vadd.f32 %v3248, %v4003
        %v4082 = vadd.f32 %v3251, %v4006
        %v4083 = vadd.f32 %v3256, %v4011
        %v4084 = vadd.f32 %v3259, %v4014
        %v4085 = vadd.f32 %v3264, %v4019
        %v4086 = vadd.f32 %v3267, %v4022
        %v4087 = vadd.f32 %v3272, %v4027
        %v4088 = vadd.f32 %v3275, %v4030
        %v4089 = vadd.f32 %v3280, %v4035
        %v4090 = vadd.f32 %v3283, %v4038
        %v4091 = vadd.f32 %v3288, %v4043
        %v4092 = vadd.f32 %v3291, %v4046
        %v4093 = vadd.f32 %v3296, %v4051
        %v4094 = vadd.f32 %v3299, %v4054
        %v4095 = vadd.f32 %v3304, %v4059
        %v4096 = vadd.f32 %v3307, %v4062
        %v4097 = vld [vmem:[%s5] sm:$0x1]
        %v4099 = vlaneseq
        %v4100 = vshrl.u32 %v4099, 7
        %v4101 = vsub.s32 0, %v4100
        %v4102 = vrot.slane %v4097, %v4101
        %v4104 = vmul.f32 %v4065, %v4102
        %v4105 = vmul.f32 %v4066, %v4102
        %v4106 = vmul.f32 %v4067, %v4102
        %v4107 = vmul.f32 %v4068, %v4102
        %v4108 = vmul.f32 %v4069, %v4102
        %v4109 = vmul.f32 %v4070, %v4102
        %v4110 = vmul.f32 %v4071, %v4102
        %v4111 = vmul.f32 %v4072, %v4102
        %v4112 = vmul.f32 %v4073, %v4102
        %v4113 = vmul.f32 %v4074, %v4102
        %v4114 = vmul.f32 %v4075, %v4102
        %v4115 = vmul.f32 %v4076, %v4102
        %v4116 = vmul.f32 %v4077, %v4102
        %v4117 = vmul.f32 %v4078, %v4102
        %v4118 = vmul.f32 %v4079, %v4102
        %v4119 = vmul.f32 %v4080, %v4102
        %v4120 = vmul.f32 %v4081, %v4102
        %v4121 = vmul.f32 %v4082, %v4102
        %v4122 = vmul.f32 %v4083, %v4102
        %v4123 = vmul.f32 %v4084, %v4102
        %v4124 = vmul.f32 %v4085, %v4102
        %v4125 = vmul.f32 %v4086, %v4102
        %v4126 = vmul.f32 %v4087, %v4102
        %v4127 = vmul.f32 %v4088, %v4102
        %v4128 = vmul.f32 %v4089, %v4102
        %v4129 = vmul.f32 %v4090, %v4102
        %v4130 = vmul.f32 %v4091, %v4102
        %v4131 = vmul.f32 %v4092, %v4102
        %v4132 = vmul.f32 %v4093, %v4102
        %v4133 = vmul.f32 %v4094, %v4102
        %v4134 = vmul.f32 %v4095, %v4102
        %v4135 = vmul.f32 %v4096, %v4102
        %v4136 = vld [vmem:[%s6] sm:$0x1]
        %v4138 = vlaneseq
        %v4139 = vshrl.u32 %v4138, 7
        %v4140 = vsub.s32 0, %v4139
        %v4141 = vrot.slane %v4136, %v4140
        %v4143 = vadd.f32 %v4104, %v4141
        %v4144 = vadd.f32 %v4105, %v4141
        %v4145 = vadd.f32 %v4106, %v4141
        %v4146 = vadd.f32 %v4107, %v4141
        %v4147 = vadd.f32 %v4108, %v4141
        %v4148 = vadd.f32 %v4109, %v4141
        %v4149 = vadd.f32 %v4110, %v4141
        %v4150 = vadd.f32 %v4111, %v4141
        %v4151 = vadd.f32 %v4112, %v4141
        %v4152 = vadd.f32 %v4113, %v4141
        %v4153 = vadd.f32 %v4114, %v4141
        %v4154 = vadd.f32 %v4115, %v4141
        %v4155 = vadd.f32 %v4116, %v4141
        %v4156 = vadd.f32 %v4117, %v4141
        %v4157 = vadd.f32 %v4118, %v4141
        %v4158 = vadd.f32 %v4119, %v4141
        %v4159 = vadd.f32 %v4120, %v4141
        %v4160 = vadd.f32 %v4121, %v4141
        %v4161 = vadd.f32 %v4122, %v4141
        %v4162 = vadd.f32 %v4123, %v4141
        %v4163 = vadd.f32 %v4124, %v4141
        %v4164 = vadd.f32 %v4125, %v4141
        %v4165 = vadd.f32 %v4126, %v4141
        %v4166 = vadd.f32 %v4127, %v4141
        %v4167 = vadd.f32 %v4128, %v4141
        %v4168 = vadd.f32 %v4129, %v4141
        %v4169 = vadd.f32 %v4130, %v4141
        %v4170 = vadd.f32 %v4131, %v4141
        %v4171 = vadd.f32 %v4132, %v4141
        %v4172 = vadd.f32 %v4133, %v4141
        %v4173 = vadd.f32 %v4134, %v4141
        %v4174 = vadd.f32 %v4135, %v4141
        %v4175 = vmax.f32 %v4143, 0.0
        %v4176 = vmax.f32 %v4144, 0.0
        %v4177 = vmax.f32 %v4145, 0.0
        %v4178 = vmax.f32 %v4146, 0.0
        %v4179 = vmax.f32 %v4147, 0.0
        %v4180 = vmax.f32 %v4148, 0.0
        %v4181 = vmax.f32 %v4149, 0.0
        %v4182 = vmax.f32 %v4150, 0.0
        %v4183 = vmax.f32 %v4151, 0.0
        %v4184 = vmax.f32 %v4152, 0.0
        %v4185 = vmax.f32 %v4153, 0.0
        %v4186 = vmax.f32 %v4154, 0.0
        %v4187 = vmax.f32 %v4155, 0.0
        %v4188 = vmax.f32 %v4156, 0.0
        %v4189 = vmax.f32 %v4157, 0.0
        %v4190 = vmax.f32 %v4158, 0.0
        %v4191 = vmax.f32 %v4159, 0.0
        %v4192 = vmax.f32 %v4160, 0.0
        %v4193 = vmax.f32 %v4161, 0.0
        %v4194 = vmax.f32 %v4162, 0.0
        %v4195 = vmax.f32 %v4163, 0.0
        %v4196 = vmax.f32 %v4164, 0.0
        %v4197 = vmax.f32 %v4165, 0.0
        %v4198 = vmax.f32 %v4166, 0.0
        %v4199 = vmax.f32 %v4167, 0.0
        %v4200 = vmax.f32 %v4168, 0.0
        %v4201 = vmax.f32 %v4169, 0.0
        %v4202 = vmax.f32 %v4170, 0.0
        %v4203 = vmax.f32 %v4171, 0.0
        %v4204 = vmax.f32 %v4172, 0.0
        %v4205 = vmax.f32 %v4173, 0.0
        %v4206 = vmax.f32 %v4174, 0.0
        %v4207 = vpack.c.bf16 %v4176, %v4175
        %v4208 = vpack.c.bf16 %v4178, %v4177
        %v4209 = vpack.c.bf16 %v4180, %v4179
        %v4210 = vpack.c.bf16 %v4182, %v4181
        %v4211 = vpack.c.bf16 %v4184, %v4183
        %v4212 = vpack.c.bf16 %v4186, %v4185
        %v4213 = vpack.c.bf16 %v4188, %v4187
        %v4214 = vpack.c.bf16 %v4190, %v4189
        %v4215 = vpack.c.bf16 %v4192, %v4191
        %v4216 = vpack.c.bf16 %v4194, %v4193
        %v4217 = vpack.c.bf16 %v4196, %v4195
        %v4218 = vpack.c.bf16 %v4198, %v4197
        %v4219 = vpack.c.bf16 %v4200, %v4199
        %v4220 = vpack.c.bf16 %v4202, %v4201
        %v4221 = vpack.c.bf16 %v4204, %v4203
        %v4222 = vpack.c.bf16 %v4206, %v4205
        %v4223 = vld [vmem:[#allocation8] sm:$0xf]
        %v4224 = vld [vmem:[#allocation8 + $0x4] sm:$0xf]
        %v4225 = vld [vmem:[#allocation8 + $0x8] sm:$0xf]
        %v4226 = vld [vmem:[#allocation8 + $0xc] sm:$0xf]
        %v4227 = vld [vmem:[#allocation8 + $0x10] sm:$0xf]
        %v4228 = vld [vmem:[#allocation8 + $0x14] sm:$0xf]
        %v4229 = vld [vmem:[#allocation8 + $0x18] sm:$0xf]
        %v4230 = vld [vmem:[#allocation8 + $0x1c] sm:$0xf]
        %v4231 = vld [vmem:[#allocation8 + $0x20] sm:$0xf]
        %v4232 = vld [vmem:[#allocation8 + $0x24] sm:$0xf]
        %v4233 = vld [vmem:[#allocation8 + $0x28] sm:$0xf]
        %v4234 = vld [vmem:[#allocation8 + $0x2c] sm:$0xf]
        %v4235 = vld [vmem:[#allocation8 + $0x30] sm:$0xf]
        %v4236 = vld [vmem:[#allocation8 + $0x34] sm:$0xf]
        %v4237 = vld [vmem:[#allocation8 + $0x38] sm:$0xf]
        %v4238 = vld [vmem:[#allocation8 + $0x3c] sm:$0xf]
        %v4255 = vunpack.c.l.b16 %v4223
        %v4256 = vunpack.c.l.b16 %v4224
        %v4257 = vunpack.c.l.b16 %v4225
        %v4258 = vunpack.c.l.b16 %v4226
        %v4259 = vunpack.c.l.b16 %v4227
        %v4260 = vunpack.c.l.b16 %v4228
        %v4261 = vunpack.c.l.b16 %v4229
        %v4262 = vunpack.c.l.b16 %v4230
        %v4263 = vunpack.c.l.b16 %v4231
        %v4264 = vunpack.c.l.b16 %v4232
        %v4265 = vunpack.c.l.b16 %v4233
        %v4266 = vunpack.c.l.b16 %v4234
        %v4267 = vunpack.c.l.b16 %v4235
        %v4268 = vunpack.c.l.b16 %v4236
        %v4269 = vunpack.c.l.b16 %v4237
        %v4270 = vunpack.c.l.b16 %v4238
        %v4271 = vpack.c.b16 %v4256, %v4255
        %v4272 = vpack.c.b16 %v4258, %v4257
        %v4273 = vpack.c.b16 %v4260, %v4259
        %v4274 = vpack.c.b16 %v4262, %v4261
        %v4275 = vpack.c.b16 %v4264, %v4263
        %v4276 = vpack.c.b16 %v4266, %v4265
        %v4277 = vpack.c.b16 %v4268, %v4267
        %v4278 = vpack.c.b16 %v4270, %v4269
        %4287 = vmatprep.subr.bf16.mxu0 0
        %4288 = vmatpush1.bf16.msra.mxu0 %v4278
        %4289 = vmatprep.subr.bf16.mxu0 0
        %4290 = vmatpush1.bf16.msra.mxu0 %v4277
        %4291 = vmatprep.subr.bf16.mxu0 0
        %4292 = vmatpush1.bf16.msra.mxu0 %v4276
        %4293 = vmatprep.subr.bf16.mxu0 0
        %4294 = vmatpush1.bf16.msra.mxu0 %v4275
        %4295 = vmatprep.subr.bf16.mxu0 0
        %4296 = vmatpush1.bf16.msra.mxu0 %v4274
        %4297 = vmatprep.subr.bf16.mxu0 0
        %4298 = vmatpush1.bf16.msra.mxu0 %v4273
        %4299 = vmatprep.subr.bf16.mxu0 0
        %4300 = vmatpush1.bf16.msra.mxu0 %v4272
        %4301 = vmatprep.subr.bf16.mxu0 0
        %4302 = vmatpush1.bf16.msra.mxu0 %v4271
        %4303 = vmatprep.subr.bf16.mxu0 0
        %4304 = vmatpush2.bf16.msra.mxu0 0
        %4305 = vmatprep.subr.bf16.mxu0 0
        %4306 = vmatpush2.bf16.msra.mxu0 0
        %4307 = vmatprep.subr.bf16.mxu0 0
        %4308 = vmatpush2.bf16.msra.mxu0 0
        %4309 = vmatprep.subr.bf16.mxu0 0
        %4310 = vmatpush2.bf16.msra.mxu0 0
        %4311 = vmatprep.subr.bf16.mxu0 0
        %4312 = vmatpush2.bf16.msra.mxu0 0
        %4313 = vmatprep.subr.bf16.mxu0 0
        %4314 = vmatpush2.bf16.msra.mxu0 0
        %4315 = vmatprep.subr.bf16.mxu0 0
        %4316 = vmatpush2.bf16.msra.mxu0 0
        %4317 = vmatprep.subr.bf16.mxu0 0
        %4318 = vmatpush2.bf16.msra.mxu0 0
        %4319 = vmatprep.mubr.bf16.mxu0 0
        %4320 = vmatmul.mubr.bf16.gmra.mxu0 %v4207
        %v4321 = vpop.f32.mrf.mxu0
        %v4322 = vadd.f32 0.0, %v4321
        %v4323 = vpop.f32.mrf.mxu0
        %v4324 = vpop.f32.mrf.mxu0
        %v4325 = vadd.f32 0.0, %v4324
        %v4326 = vpop.f32.mrf.mxu0
        %4327 = vmatprep.mubr.bf16.mxu0 0
        %4328 = vmatmul.mubr.bf16.gmra.mxu0 %v4208
        %v4329 = vpop.f32.mrf.mxu0
        %v4330 = vadd.f32 0.0, %v4329
        %v4331 = vpop.f32.mrf.mxu0
        %v4332 = vpop.f32.mrf.mxu0
        %v4333 = vadd.f32 0.0, %v4332
        %v4334 = vpop.f32.mrf.mxu0
        %4335 = vmatprep.mubr.bf16.mxu0 0
        %4336 = vmatmul.mubr.bf16.gmra.mxu0 %v4209
        %v4337 = vpop.f32.mrf.mxu0
        %v4338 = vadd.f32 0.0, %v4337
        %v4339 = vpop.f32.mrf.mxu0
        %v4340 = vpop.f32.mrf.mxu0
        %v4341 = vadd.f32 0.0, %v4340
        %v4342 = vpop.f32.mrf.mxu0
        %4343 = vmatprep.mubr.bf16.mxu0 0
        %4344 = vmatmul.mubr.bf16.gmra.mxu0 %v4210
        %v4345 = vpop.f32.mrf.mxu0
        %v4346 = vadd.f32 0.0, %v4345
        %v4347 = vpop.f32.mrf.mxu0
        %v4348 = vpop.f32.mrf.mxu0
        %v4349 = vadd.f32 0.0, %v4348
        %v4350 = vpop.f32.mrf.mxu0
        %4351 = vmatprep.mubr.bf16.mxu0 0
        %4352 = vmatmul.mubr.bf16.gmra.mxu0 %v4211
        %v4353 = vpop.f32.mrf.mxu0
        %v4354 = vadd.f32 0.0, %v4353
        %v4355 = vpop.f32.mrf.mxu0
        %v4356 = vpop.f32.mrf.mxu0
        %v4357 = vadd.f32 0.0, %v4356
        %v4358 = vpop.f32.mrf.mxu0
        %4359 = vmatprep.mubr.bf16.mxu0 0
        %4360 = vmatmul.mubr.bf16.gmra.mxu0 %v4212
        %v4361 = vpop.f32.mrf.mxu0
        %v4362 = vadd.f32 0.0, %v4361
        %v4363 = vpop.f32.mrf.mxu0
        %v4364 = vpop.f32.mrf.mxu0
        %v4365 = vadd.f32 0.0, %v4364
        %v4366 = vpop.f32.mrf.mxu0
        %4367 = vmatprep.mubr.bf16.mxu0 0
        %4368 = vmatmul.mubr.bf16.gmra.mxu0 %v4213
        %v4369 = vpop.f32.mrf.mxu0
        %v4370 = vadd.f32 0.0, %v4369
        %v4371 = vpop.f32.mrf.mxu0
        %v4372 = vpop.f32.mrf.mxu0
        %v4373 = vadd.f32 0.0, %v4372
        %v4374 = vpop.f32.mrf.mxu0
        %4375 = vmatprep.mubr.bf16.mxu0 0
        %4376 = vmatmul.mubr.bf16.gmra.mxu0 %v4214
        %v4377 = vpop.f32.mrf.mxu0
        %v4378 = vadd.f32 0.0, %v4377
        %v4379 = vpop.f32.mrf.mxu0
        %v4380 = vpop.f32.mrf.mxu0
        %v4381 = vadd.f32 0.0, %v4380
        %v4382 = vpop.f32.mrf.mxu0
        %4383 = vmatprep.mubr.bf16.mxu0 0
        %4384 = vmatmul.mubr.bf16.gmra.mxu0 %v4215
        %v4385 = vpop.f32.mrf.mxu0
        %v4386 = vadd.f32 0.0, %v4385
        %v4387 = vpop.f32.mrf.mxu0
        %v4388 = vpop.f32.mrf.mxu0
        %v4389 = vadd.f32 0.0, %v4388
        %v4390 = vpop.f32.mrf.mxu0
        %4391 = vmatprep.mubr.bf16.mxu0 0
        %4392 = vmatmul.mubr.bf16.gmra.mxu0 %v4216
        %v4393 = vpop.f32.mrf.mxu0
        %v4394 = vadd.f32 0.0, %v4393
        %v4395 = vpop.f32.mrf.mxu0
        %v4396 = vpop.f32.mrf.mxu0
        %v4397 = vadd.f32 0.0, %v4396
        %v4398 = vpop.f32.mrf.mxu0
        %4399 = vmatprep.mubr.bf16.mxu0 0
        %4400 = vmatmul.mubr.bf16.gmra.mxu0 %v4217
        %v4401 = vpop.f32.mrf.mxu0
        %v4402 = vadd.f32 0.0, %v4401
        %v4403 = vpop.f32.mrf.mxu0
        %v4404 = vpop.f32.mrf.mxu0
        %v4405 = vadd.f32 0.0, %v4404
        %v4406 = vpop.f32.mrf.mxu0
        %4407 = vmatprep.mubr.bf16.mxu0 0
        %4408 = vmatmul.mubr.bf16.gmra.mxu0 %v4218
        %v4409 = vpop.f32.mrf.mxu0
        %v4410 = vadd.f32 0.0, %v4409
        %v4411 = vpop.f32.mrf.mxu0
        %v4412 = vpop.f32.mrf.mxu0
        %v4413 = vadd.f32 0.0, %v4412
        %v4414 = vpop.f32.mrf.mxu0
        %4415 = vmatprep.mubr.bf16.mxu0 0
        %4416 = vmatmul.mubr.bf16.gmra.mxu0 %v4219
        %v4417 = vpop.f32.mrf.mxu0
        %v4418 = vadd.f32 0.0, %v4417
        %v4419 = vpop.f32.mrf.mxu0
        %v4420 = vpop.f32.mrf.mxu0
        %v4421 = vadd.f32 0.0, %v4420
        %v4422 = vpop.f32.mrf.mxu0
        %4423 = vmatprep.mubr.bf16.mxu0 0
        %4424 = vmatmul.mubr.bf16.gmra.mxu0 %v4220
        %v4425 = vpop.f32.mrf.mxu0
        %v4426 = vadd.f32 0.0, %v4425
        %v4427 = vpop.f32.mrf.mxu0
        %v4428 = vpop.f32.mrf.mxu0
        %v4429 = vadd.f32 0.0, %v4428
        %v4430 = vpop.f32.mrf.mxu0
        %4431 = vmatprep.mubr.bf16.mxu0 0
        %4432 = vmatmul.mubr.bf16.gmra.mxu0 %v4221
        %v4433 = vpop.f32.mrf.mxu0
        %v4434 = vadd.f32 0.0, %v4433
        %v4435 = vpop.f32.mrf.mxu0
        %v4436 = vpop.f32.mrf.mxu0
        %v4437 = vadd.f32 0.0, %v4436
        %v4438 = vpop.f32.mrf.mxu0
        %4439 = vmatprep.mubr.bf16.mxu0 0
        %4440 = vmatmul.mubr.bf16.gmra.mxu0 %v4222
        %v4441 = vpop.f32.mrf.mxu0
        %v4442 = vadd.f32 0.0, %v4441
        %v4443 = vpop.f32.mrf.mxu0
        %v4444 = vpop.f32.mrf.mxu0
        %v4445 = vadd.f32 0.0, %v4444
        %v4446 = vpop.f32.mrf.mxu0
        %4447 = vdwg.mxu0
        %v4448 = vld [vmem:[%s8] sm:$0x1]
        %v4450 = vlaneseq
        %v4451 = vshrl.u32 %v4450, 7
        %v4452 = vsub.s32 0, %v4451
        %v4453 = vrot.slane %v4448, %v4452
        %v4455 = vmul.f32 %v4322, %v4453
        %v4456 = vmul.f32 %v4325, %v4453
        %v4457 = vmul.f32 %v4330, %v4453
        %v4458 = vmul.f32 %v4333, %v4453
        %v4459 = vmul.f32 %v4338, %v4453
        %v4460 = vmul.f32 %v4341, %v4453
        %v4461 = vmul.f32 %v4346, %v4453
        %v4462 = vmul.f32 %v4349, %v4453
        %v4463 = vmul.f32 %v4354, %v4453
        %v4464 = vmul.f32 %v4357, %v4453
        %v4465 = vmul.f32 %v4362, %v4453
        %v4466 = vmul.f32 %v4365, %v4453
        %v4467 = vmul.f32 %v4370, %v4453
        %v4468 = vmul.f32 %v4373, %v4453
        %v4469 = vmul.f32 %v4378, %v4453
        %v4470 = vmul.f32 %v4381, %v4453
        %v4471 = vmul.f32 %v4386, %v4453
        %v4472 = vmul.f32 %v4389, %v4453
        %v4473 = vmul.f32 %v4394, %v4453
        %v4474 = vmul.f32 %v4397, %v4453
        %v4475 = vmul.f32 %v4402, %v4453
        %v4476 = vmul.f32 %v4405, %v4453
        %v4477 = vmul.f32 %v4410, %v4453
        %v4478 = vmul.f32 %v4413, %v4453
        %v4479 = vmul.f32 %v4418, %v4453
        %v4480 = vmul.f32 %v4421, %v4453
        %v4481 = vmul.f32 %v4426, %v4453
        %v4482 = vmul.f32 %v4429, %v4453
        %v4483 = vmul.f32 %v4434, %v4453
        %v4484 = vmul.f32 %v4437, %v4453
        %v4485 = vmul.f32 %v4442, %v4453
        %v4486 = vmul.f32 %v4445, %v4453
        %v4487 = vld [vmem:[%s9] sm:$0x1]
        %v4489 = vlaneseq
        %v4490 = vshrl.u32 %v4489, 7
        %v4491 = vsub.s32 0, %v4490
        %v4492 = vrot.slane %v4487, %v4491
        %v4494 = vadd.f32 %v4455, %v4492
        %v4495 = vadd.f32 %v4456, %v4492
        %v4496 = vadd.f32 %v4457, %v4492
        %v4497 = vadd.f32 %v4458, %v4492
        %v4498 = vadd.f32 %v4459, %v4492
        %v4499 = vadd.f32 %v4460, %v4492
        %v4500 = vadd.f32 %v4461, %v4492
        %v4501 = vadd.f32 %v4462, %v4492
        %v4502 = vadd.f32 %v4463, %v4492
        %v4503 = vadd.f32 %v4464, %v4492
        %v4504 = vadd.f32 %v4465, %v4492
        %v4505 = vadd.f32 %v4466, %v4492
        %v4506 = vadd.f32 %v4467, %v4492
        %v4507 = vadd.f32 %v4468, %v4492
        %v4508 = vadd.f32 %v4469, %v4492
        %v4509 = vadd.f32 %v4470, %v4492
        %v4510 = vadd.f32 %v4471, %v4492
        %v4511 = vadd.f32 %v4472, %v4492
        %v4512 = vadd.f32 %v4473, %v4492
        %v4513 = vadd.f32 %v4474, %v4492
        %v4514 = vadd.f32 %v4475, %v4492
        %v4515 = vadd.f32 %v4476, %v4492
        %v4516 = vadd.f32 %v4477, %v4492
        %v4517 = vadd.f32 %v4478, %v4492
        %v4518 = vadd.f32 %v4479, %v4492
        %v4519 = vadd.f32 %v4480, %v4492
        %v4520 = vadd.f32 %v4481, %v4492
        %v4521 = vadd.f32 %v4482, %v4492
        %v4522 = vadd.f32 %v4483, %v4492
        %v4523 = vadd.f32 %v4484, %v4492
        %v4524 = vadd.f32 %v4485, %v4492
        %v4525 = vadd.f32 %v4486, %v4492
        %v4526 = vadd.f32 %v4494, %v423
        %v4527 = vadd.f32 %v4495, %v424
        %v4528 = vadd.f32 %v4496, %v425
        %v4529 = vadd.f32 %v4497, %v426
        %v4530 = vadd.f32 %v4498, %v427
        %v4531 = vadd.f32 %v4499, %v428
        %v4532 = vadd.f32 %v4500, %v429
        %v4533 = vadd.f32 %v4501, %v430
        %v4534 = vadd.f32 %v4502, %v431
        %v4535 = vadd.f32 %v4503, %v432
        %v4536 = vadd.f32 %v4504, %v433
        %v4537 = vadd.f32 %v4505, %v434
        %v4538 = vadd.f32 %v4506, %v435
        %v4539 = vadd.f32 %v4507, %v436
        %v4540 = vadd.f32 %v4508, %v437
        %v4541 = vadd.f32 %v4509, %v438
        %v4542 = vadd.f32 %v4510, %v439
        %v4543 = vadd.f32 %v4511, %v440
        %v4544 = vadd.f32 %v4512, %v441
        %v4545 = vadd.f32 %v4513, %v442
        %v4546 = vadd.f32 %v4514, %v443
        %v4547 = vadd.f32 %v4515, %v444
        %v4548 = vadd.f32 %v4516, %v445
        %v4549 = vadd.f32 %v4517, %v446
        %v4550 = vadd.f32 %v4518, %v447
        %v4551 = vadd.f32 %v4519, %v448
        %v4552 = vadd.f32 %v4520, %v449
        %v4553 = vadd.f32 %v4521, %v450
        %v4554 = vadd.f32 %v4522, %v451
        %v4555 = vadd.f32 %v4523, %v452
        %v4556 = vadd.f32 %v4524, %v453
        %v4557 = vadd.f32 %v4525, %v454
        %v4558 = vmax.f32 %v4526, 0.0
        %v4559 = vmax.f32 %v4527, 0.0
        %v4560 = vmax.f32 %v4528, 0.0
        %v4561 = vmax.f32 %v4529, 0.0
        %v4562 = vmax.f32 %v4530, 0.0
        %v4563 = vmax.f32 %v4531, 0.0
        %v4564 = vmax.f32 %v4532, 0.0
        %v4565 = vmax.f32 %v4533, 0.0
        %v4566 = vmax.f32 %v4534, 0.0
        %v4567 = vmax.f32 %v4535, 0.0
        %v4568 = vmax.f32 %v4536, 0.0
        %v4569 = vmax.f32 %v4537, 0.0
        %v4570 = vmax.f32 %v4538, 0.0
        %v4571 = vmax.f32 %v4539, 0.0
        %v4572 = vmax.f32 %v4540, 0.0
        %v4573 = vmax.f32 %v4541, 0.0
        %v4574 = vmax.f32 %v4542, 0.0
        %v4575 = vmax.f32 %v4543, 0.0
        %v4576 = vmax.f32 %v4544, 0.0
        %v4577 = vmax.f32 %v4545, 0.0
        %v4578 = vmax.f32 %v4546, 0.0
        %v4579 = vmax.f32 %v4547, 0.0
        %v4580 = vmax.f32 %v4548, 0.0
        %v4581 = vmax.f32 %v4549, 0.0
        %v4582 = vmax.f32 %v4550, 0.0
        %v4583 = vmax.f32 %v4551, 0.0
        %v4584 = vmax.f32 %v4552, 0.0
        %v4585 = vmax.f32 %v4553, 0.0
        %v4586 = vmax.f32 %v4554, 0.0
        %v4587 = vmax.f32 %v4555, 0.0
        %v4588 = vmax.f32 %v4556, 0.0
        %v4589 = vmax.f32 %v4557, 0.0
        %4590 = vst [vmem:[%s421] sm:$0xff] %v4558
        %4591 = vst [vmem:[%s421 + $0x8] sm:$0xff] %v4559
        %4592 = vst [vmem:[%s421 + $0x10] sm:$0xff] %v4560
        %4593 = vst [vmem:[%s421 + $0x18] sm:$0xff] %v4561
        %4594 = vst [vmem:[%s421 + $0x20] sm:$0xff] %v4562
        %4595 = vst [vmem:[%s421 + $0x28] sm:$0xff] %v4563
        %4596 = vst [vmem:[%s421 + $0x30] sm:$0xff] %v4564
        %4597 = vst [vmem:[%s421 + $0x38] sm:$0xff] %v4565
        %4598 = vst [vmem:[%s421 + $0x40] sm:$0xff] %v4566
        %4599 = vst [vmem:[%s421 + $0x48] sm:$0xff] %v4567
        %4600 = vst [vmem:[%s421 + $0x50] sm:$0xff] %v4568
        %4601 = vst [vmem:[%s421 + $0x58] sm:$0xff] %v4569
        %4602 = vst [vmem:[%s421 + $0x60] sm:$0xff] %v4570
        %4603 = vst [vmem:[%s421 + $0x68] sm:$0xff] %v4571
        %4604 = vst [vmem:[%s421 + $0x70] sm:$0xff] %v4572
        %4605 = vst [vmem:[%s421 + $0x78] sm:$0xff] %v4573
        %4606 = vst [vmem:[%s421 + $0x80] sm:$0xff] %v4574
        %4607 = vst [vmem:[%s421 + $0x88] sm:$0xff] %v4575
        %4608 = vst [vmem:[%s421 + $0x90] sm:$0xff] %v4576
        %4609 = vst [vmem:[%s421 + $0x98] sm:$0xff] %v4577
        %4610 = vst [vmem:[%s421 + $0xa0] sm:$0xff] %v4578
        %4611 = vst [vmem:[%s421 + $0xa8] sm:$0xff] %v4579
        %4612 = vst [vmem:[%s421 + $0xb0] sm:$0xff] %v4580
        %4613 = vst [vmem:[%s421 + $0xb8] sm:$0xff] %v4581
        %4614 = vst [vmem:[%s421 + $0xc0] sm:$0xff] %v4582
        %4615 = vst [vmem:[%s421 + $0xc8] sm:$0xff] %v4583
        %4616 = vst [vmem:[%s421 + $0xd0] sm:$0xff] %v4584
        %4617 = vst [vmem:[%s421 + $0xd8] sm:$0xff] %v4585
        %4618 = vst [vmem:[%s421 + $0xe0] sm:$0xff] %v4586
        %4619 = vst [vmem:[%s421 + $0xe8] sm:$0xff] %v4587
        %4620 = vst [vmem:[%s421 + $0xf0] sm:$0xff] %v4588
        %4621 = vst [vmem:[%s421 + $0xf8] sm:$0xff] %v4589
        %s4622 = sand.u32 %s252, 1
        %s4623 = scalar_lea.sflag [#allocation4], %s4622
        %s4624 = sand.u32 %s252, 1
        %s4625 = smul.addr %s4624, 256
        %s4626 = scalar_lea.vmem [#allocation10], %s4625
        // Predicated region
        $region77: #{tpu_custom_call.1} parent=59 // pred_check
          %p4627 = pneg %p262
        $region78: #{tpu_custom_call.1} parent=59 // pred_check_branch
          %4629 = sbr.rel (%p4627) target = $region80
        $region79: #{tpu_custom_call.1} parent=59 // pred_region
          %s4631 = ssub.s32 4096, 4096
          %4632 = vsyncadd %s4623, %s4631
          %s4633 = smul.addr %s29, 32
          %s4634 = smul.addr %s4633, 128
          %s4635 = scalar_lea.hbm %s10, %s4634
          %s4636 = sshll.u32 %s4626, 4
          %s4637 = int_to_ptr.vmem [resolvable:$true] %s4636
          %4642 = dma.vmem_to_hbm [thread:$0]  %s4637, 4096, %s4635, %s4623, 128, 128, 8
        $region80: #{tpu_custom_call.1} parent=59 // pred_fallthru
          _
      $region60: #{tpu_custom_call.1} parent=5 // pred_fallthru
        _
      %p4643 = scmp.le.s32.totalorder 2, %s24
      // Predicated region
      $region81: #{tpu_custom_call.1} parent=5 // pred_check
        %p4644 = pneg %p4643
      $region82: #{tpu_custom_call.1} parent=5 // pred_check_branch
        %4646 = sbr.rel (%p4644) target = $region84
      $region83: #{tpu_custom_call.1} parent=5 // pred_region
        %s4647 = ssub.s32 %s24, 2
        // Predicated region
        $region85: #{tpu_custom_call.1} parent=83 // pred_check
          %p4648 = pneg %p268
        $region86: #{tpu_custom_call.1} parent=83 // pred_check_branch
          %4650 = sbr.rel (%p4648) target = $region88
        $region87: #{tpu_custom_call.1} parent=83 // pred_region
          %s4651 = sand.u32 %s253, 1
          %s4652 = scalar_lea.sflag [#allocation4], %s4651
          %s4653 = sand.u32 %s253, 1
          %s4654 = smul.addr %s4653, 256
          %s4655 = scalar_lea.vmem [#allocation10], %s4654
          %4656 = dma.done %s4652, 4096
        $region88: #{tpu_custom_call.1} parent=83 // pred_fallthru
          _
      $region84: #{tpu_custom_call.1} parent=5 // pred_fallthru
        _
    $region6: #{tpu_custom_call.1} parent=1 // loop_footer
      %s28 = sadd.s32 1, %s24
    $region7: #{tpu_custom_call.1} parent=1 // loop_footer_branch
      %23 = sbr.rel target = $region3
    $region8: #{tpu_custom_call.1} parent=1 // loop_exit
      _
    %4657 = vsyncpa [#allocation3], 1
    %s4658 = scalar_lea.sflag [#allocation3], 1
    %4659 = vsyncpa %s4658, 1
    %4660 = vsyncpa [#allocation6], 1
    %4661 = vsyncpa [#allocation9], 1
    %4662 = vsyncpa [#allocation4], 1
    %s4663 = scalar_lea.sflag [#allocation4], 1
    %4664 = vsyncpa %s4663, 1

</llo_original>
